<compile_context>
chip_gen: v7x
topology: tpu7x:2x2x1
jax: 0.10.0
libtpu: 0.0.40
codegen_flags: <defaults>
</compile_context>

<pallas_src>
import functools
import math

import numpy as np
import jax
import jax.numpy as jnp
from jax import lax
from jax.experimental import pallas as pl
from jax.experimental.pallas import tpu as pltpu

# Hyper-parameters hard-coded in the PyTorch module
LR = 0.01
MOMENTUM = 0.9
DAMPENING = 0.9
WEIGHT_DECAY = 0.001
N_EPOCHS = 100
BATCH_SIZE = 4


def _finetune_kernel(batch_of_ref, z_sup_ref, y1h_ref, w0_ref, b0_ref, zq_ref,
                     scores_ref, w_sc, b_sc, vw_sc, vb_sc,
                     *, steps_per_epoch, last_count):
    """One EPOCH per grid iteration; minibatch SGD steps unrolled inside."""
    epoch = pl.program_id(0)

    # ---- initialize classifier + momentum buffers once ----
    @pl.when(epoch == 0)
    def _():
        w_sc[...] = w0_ref[...]          # (n_way, D) lane-dense
        b_sc[...] = b0_ref[...]          # (1, n_way)
        vw_sc[...] = jnp.zeros_like(vw_sc)
        vb_sc[...] = jnp.zeros_like(vb_sc)

    # Unrolled minibatch loop for this epoch.
    for i in range(steps_per_epoch):
        w = w_sc[...]                    # (n_way, D)
        b = b_sc[...]                    # (1, n_way)

        # Forward over ALL (padded) support rows; rows not in minibatch `i` are masked
        # out of the gradient, which is numerically identical to gathering the batch.
        logits = lax.dot_general(z_sup_ref[...], w, (((1,), (1,)), ((), ())),
                                 preferred_element_type=jnp.float32) + b   # (sup_pad, n_way)
        mx = jnp.max(logits, axis=-1, keepdims=True)
        e = jnp.exp(logits - mx)
        p = e * pl.reciprocal(jnp.sum(e, axis=-1, keepdims=True), approx=True)

        # Row mask: which support rows belong to minibatch i of this epoch.
        sel = (batch_of_ref[...] == i).astype(jnp.float32)                 # (sup_pad, 1)
        inv_cnt = (1.0 / last_count) if i == steps_per_epoch - 1 else (1.0 / BATCH_SIZE)
        g = (p - y1h_ref[...]) * (sel * inv_cnt)                           # (sup_pad, n_way)

        # dW = g^T @ z (n_way, D); db = sum_rows g (1, n_way); + weight decay
        dw = lax.dot_general(g, z_sup_ref[...], (((0,), (0,)), ((), ())),
                             preferred_element_type=jnp.float32) + WEIGHT_DECAY * w
        db = jnp.sum(g, axis=0, keepdims=True) + WEIGHT_DECAY * b

        # SGD(momentum=0.9, dampening=0.9), PyTorch semantics: first step buf = grad.
        # Momentum buffers start at zero, so "coeff = 1 on the very first step" gives buf=grad.
        if i == 0:
            coeff = jnp.where(epoch == 0, 1.0, 1.0 - DAMPENING)
        else:
            coeff = 1.0 - DAMPENING
        vw = MOMENTUM * vw_sc[...] + coeff * dw
        vb = MOMENTUM * vb_sc[...] + coeff * db
        vw_sc[...] = vw
        vb_sc[...] = vb
        w_sc[...] = w - LR * vw
        b_sc[...] = b - LR * vb

    # Score the query set exactly once, with the final weights.
    @pl.when(epoch == pl.num_programs(0) - 1)
    def _():
        scores_ref[...] = (lax.dot_general(zq_ref[...], w_sc[...], (((1,), (1,)), ((), ())),
                                           preferred_element_type=jnp.float32)
                           + b_sc[...])


def baseline_finetune_set_forward(x, n_way, n_support, seed=0):
    """JAX/Pallas equivalent of BaselineFinetune.set_forward(x, is_feature=True).

    x: (n_way, n_support + n_query, feat_dim) pre-extracted features.
    Returns (scores, acc, packed) where packed feeds the pure-NumPy reference.
    """
    x = jnp.asarray(x, jnp.float32)
    n_query = x.shape[1] - n_support
    feat_dim = x.shape[-1]

    # parse_feature + flatten
    z_support = np.asarray(x[:, :n_support]).reshape(n_way * n_support, feat_dim).astype(np.float32)
    z_query = np.asarray(x[:, n_support:]).reshape(n_way * n_query, feat_dim).astype(np.float32)
    y_support = np.repeat(np.arange(n_way), n_support)

    support_size = n_way * n_support
    steps_per_epoch = math.ceil(support_size / BATCH_SIZE)
    last_count = support_size - (steps_per_epoch - 1) * BATCH_SIZE
    sup_pad = ((support_size + 7) // 8) * 8          # pad rows to a sublane multiple

    key = jax.random.PRNGKey(seed)
    k_w, k_b, k_perm = jax.random.split(key, 3)

    # deterministic nn.Linear-style init: U(-1/sqrt(fan_in), 1/sqrt(fan_in)); PyTorch layout (out, in)
    bound = 1.0 / math.sqrt(feat_dim)
    w0 = jax.random.uniform(k_w, (n_way, feat_dim), jnp.float32, -bound, bound)
    b0 = jax.random.uniform(k_b, (1, n_way), jnp.float32, -bound, bound)

    # Deterministic per-epoch permutations in ONE vectorized call (argsort of uniforms).
    u = jax.random.uniform(k_perm, (N_EPOCHS, support_size))
    perms = jnp.argsort(u, axis=1)                                 # (E, S) permutations
    pos = jnp.argsort(perms, axis=1)                               # position of row r in epoch e
    batch_of = (pos // BATCH_SIZE).astype(jnp.int32)               # minibatch index selecting row r
    batch_of = jnp.pad(batch_of, ((0, 0), (0, sup_pad - support_size)), constant_values=-1)
    batch_of = batch_of.reshape(N_EPOCHS * sup_pad, 1)             # streamed (sup_pad, 1) per epoch

    # Zero-padded resident support features and one-hot labels.
    z_sup_p = np.zeros((sup_pad, feat_dim), np.float32)
    z_sup_p[:support_size] = z_support
    y1h = np.zeros((sup_pad, n_way), np.float32)
    y1h[np.arange(support_size), y_support] = 1.0

    nq = n_way * n_query
    kernel = functools.partial(_finetune_kernel,
                               steps_per_epoch=steps_per_epoch,
                               last_count=float(last_count))

    scores = pl.pallas_call(
        kernel,
        out_shape=jax.ShapeDtypeStruct((nq, n_way), jnp.float32),
        grid_spec=pltpu.PrefetchScalarGridSpec(
            num_scalar_prefetch=0,
            grid=(N_EPOCHS,),
            in_specs=[
                pl.BlockSpec((sup_pad, 1), lambda e: (e, 0)),          # per-epoch minibatch table
                pl.BlockSpec((sup_pad, feat_dim), lambda e: (0, 0)),   # support feats (resident)
                pl.BlockSpec((sup_pad, n_way), lambda e: (0, 0)),      # one-hot labels (resident)
                pl.BlockSpec((n_way, feat_dim), lambda e: (0, 0)),     # W init (resident)
                pl.BlockSpec((1, n_way), lambda e: (0, 0)),            # b init (resident)
                pl.BlockSpec((nq, feat_dim), lambda e: (0, 0)),        # query feats (resident)
            ],
            out_specs=pl.BlockSpec((nq, n_way), lambda e: (0, 0)),
            scratch_shapes=[
                pltpu.VMEM((n_way, feat_dim), jnp.float32),   # W        (lane-dense)
                pltpu.VMEM((1, n_way), jnp.float32),          # b
                pltpu.VMEM((n_way, feat_dim), jnp.float32),   # momentum(W)
                pltpu.VMEM((1, n_way), jnp.float32),          # momentum(b)
            ],
        ),
        compiler_params=pltpu.CompilerParams(dimension_semantics=("arbitrary",)),
    )(batch_of, jnp.asarray(z_sup_p), jnp.asarray(y1h), w0, b0, jnp.asarray(z_query))

    # accuracy glue (same as the PyTorch module's numpy post-processing)
    y_query = np.repeat(np.arange(n_way), n_query)
    acc = float(np.mean(np.asarray(jnp.argmax(scores, axis=1)) == y_query) * 100.0)

    packed = (z_support, y_support, np.asarray(perms), np.asarray(w0), np.asarray(b0), z_query)
    return scores, acc, packed


def _reference_scores(z_support, y_support, perms, w0, b0, z_query):
    """Pure-NumPy float64 re-implementation of the PyTorch fine-tuning loop (validation)."""
    w = np.array(w0, dtype=np.float64)               # (n_way, D)
    b = np.array(b0, dtype=np.float64).reshape(-1)   # (n_way,)
    vw = np.zeros_like(w)
    vb = np.zeros_like(b)
    z_sup = np.array(z_support, dtype=np.float64)
    zq = np.array(z_query, dtype=np.float64)
    support_size = z_sup.shape[0]
    first = True
    for e in range(perms.shape[0]):
        rand_id = perms[e]
        for i in range(0, support_size, BATCH_SIZE):
            sel = rand_id[i:min(i + BATCH_SIZE, support_size)]
            zb = z_sup[sel]
            yb = y_support[sel]
            logits = zb @ w.T + b
            logits = logits - logits.max(axis=1, keepdims=True)
            p = np.exp(logits)
            p /= p.sum(axis=1, keepdims=True)
            g = p.copy()
            g[np.arange(len(sel)), yb] -= 1.0
            g /= len(sel)
            dw = g.T @ zb + WEIGHT_DECAY * w
            db = g.sum(axis=0) + WEIGHT_DECAY * b
            if first:
                vw, vb, first = dw, db, False
            else:
                vw = MOMENTUM * vw + (1.0 - DAMPENING) * dw
                vb = MOMENTUM * vb + (1.0 - DAMPENING) * db
            w = w - LR * vw
            b = b - LR * vb
    return zq @ w.T + b


if __name__ == "__main__":
    # Small shapes consistent with the module: 5-way, 5-shot, 3 queries/class,
    # feat_dim=128 (stand-in for the module's default final_feat_dim=2048).
    n_way, n_support, n_query, feat_dim = 5, 5, 3, 128
    key = jax.random.PRNGKey(0)
    x = jax.random.normal(key, (n_way, n_support + n_query, feat_dim), dtype=jnp.float32)

    scores, acc, packed = baseline_finetune_set_forward(x, n_way, n_support, seed=0)
    scores = jax.block_until_ready(scores)

    # numerical sanity check against an independent NumPy float64 reference loop
    ref = _reference_scores(*packed)
    max_diff = float(np.max(np.abs(np.asarray(scores) - ref)))
    assert np.isfinite(max_diff) and max_diff < 0.5, f"mismatch vs reference: {max_diff}"
    assert scores.shape == (n_way * n_query, n_way)

    print("KERNEL_OK")
</pallas_src>

<mosaic_0001>
module attributes {stable_mosaic.version = 11 : i64} {
  func.func @_finetune_kernel(%arg0: i32, %arg1: memref<32x1xi32, #tpu.memory_space<vmem>>, %arg2: memref<32x128xf32, #tpu.memory_space<vmem>>, %arg3: memref<32x5xf32, #tpu.memory_space<vmem>>, %arg4: memref<5x128xf32, #tpu.memory_space<vmem>>, %arg5: memref<1x5xf32, #tpu.memory_space<vmem>>, %arg6: memref<15x128xf32, #tpu.memory_space<vmem>>, %arg7: memref<15x5xf32, #tpu.memory_space<vmem>>, %arg8: memref<5x128xf32, #tpu.memory_space<vmem>>, %arg9: memref<1x5xf32, #tpu.memory_space<vmem>>, %arg10: memref<5x128xf32, #tpu.memory_space<vmem>>, %arg11: memref<1x5xf32, #tpu.memory_space<vmem>>) attributes {dimension_semantics = [#tpu.dimension_semantics<arbitrary>], iteration_bounds = array<i64: 100>, scalar_prefetch = 0 : i64, scratch_operands = 4 : i64, tpu.core_type = #tpu.core_type<tc>, window_params = [{transform_indices = @transform_0, window_bounds = array<i64: 32, 1>}, {pipeline_mode = #tpu.pipeline_mode<synchronous>, transform_indices = @transform_1, window_bounds = array<i64: 32, 128>}, {pipeline_mode = #tpu.pipeline_mode<synchronous>, transform_indices = @transform_2, window_bounds = array<i64: 32, 5>}, {pipeline_mode = #tpu.pipeline_mode<synchronous>, transform_indices = @transform_3, window_bounds = array<i64: 5, 128>}, {pipeline_mode = #tpu.pipeline_mode<synchronous>, transform_indices = @transform_4, window_bounds = array<i64: 1, 5>}, {pipeline_mode = #tpu.pipeline_mode<synchronous>, transform_indices = @transform_5, window_bounds = array<i64: 15, 128>}, {pipeline_mode = #tpu.pipeline_mode<synchronous>, transform_indices = @transform_6, window_bounds = array<i64: 15, 5>}]} {
    %c0_i32 = arith.constant 0 : i32
    %0 = arith.cmpi eq, %arg0, %c0_i32 : i32
    %1 = arith.extui %0 : i1 to i32
    %c0_i32_0 = arith.constant 0 : i32
    %2 = arith.cmpi ne, %1, %c0_i32_0 : i32
    scf.if %2 {
      %c0_268 = arith.constant 0 : index
      %c0_269 = arith.constant 0 : index
      %421 = vector.load %arg4[%c0_268, %c0_269] : memref<5x128xf32, #tpu.memory_space<vmem>>, vector<5x128xf32>
      %c0_270 = arith.constant 0 : index
      %c0_271 = arith.constant 0 : index
      %422 = vector.load %arg8[%c0_270, %c0_271] : memref<5x128xf32, #tpu.memory_space<vmem>>, vector<5x128xf32>
      tpu.vector_store %arg8[%c0_270, %c0_271], %421 {strides = array<i32>} : memref<5x128xf32, #tpu.memory_space<vmem>>, vector<5x128xf32>,
      %c0_272 = arith.constant 0 : index
      %c0_273 = arith.constant 0 : index
      %423 = vector.load %arg5[%c0_272, %c0_273] : memref<1x5xf32, #tpu.memory_space<vmem>>, vector<1x5xf32>
      %c0_274 = arith.constant 0 : index
      %c0_275 = arith.constant 0 : index
      %424 = vector.load %arg9[%c0_274, %c0_275] : memref<1x5xf32, #tpu.memory_space<vmem>>, vector<1x5xf32>
      tpu.vector_store %arg9[%c0_274, %c0_275], %423 {strides = array<i32>} : memref<1x5xf32, #tpu.memory_space<vmem>>, vector<1x5xf32>,
      %cst_276 = arith.constant 0.000000e+00 : f32
      %425 = vector.broadcast %cst_276 : f32 to vector<5x128xf32>
      %c0_277 = arith.constant 0 : index
      %c0_278 = arith.constant 0 : index
      %426 = vector.load %arg10[%c0_277, %c0_278] : memref<5x128xf32, #tpu.memory_space<vmem>>, vector<5x128xf32>
      tpu.vector_store %arg10[%c0_277, %c0_278], %425 {strides = array<i32>} : memref<5x128xf32, #tpu.memory_space<vmem>>, vector<5x128xf32>,
      %cst_279 = arith.constant 0.000000e+00 : f32
      %427 = vector.broadcast %cst_279 : f32 to vector<1x5xf32>
      %c0_280 = arith.constant 0 : index
      %c0_281 = arith.constant 0 : index
      %428 = vector.load %arg11[%c0_280, %c0_281] : memref<1x5xf32, #tpu.memory_space<vmem>>, vector<1x5xf32>
      tpu.vector_store %arg11[%c0_280, %c0_281], %427 {strides = array<i32>} : memref<1x5xf32, #tpu.memory_space<vmem>>, vector<1x5xf32>,
    } else {
    }
    %c0 = arith.constant 0 : index
    %c0_1 = arith.constant 0 : index
    %3 = vector.load %arg8[%c0, %c0_1] : memref<5x128xf32, #tpu.memory_space<vmem>>, vector<5x128xf32>
    %c0_2 = arith.constant 0 : index
    %c0_3 = arith.constant 0 : index
    %4 = vector.load %arg9[%c0_2, %c0_3] : memref<1x5xf32, #tpu.memory_space<vmem>>, vector<1x5xf32>
    %c0_4 = arith.constant 0 : index
    %c0_5 = arith.constant 0 : index
    %5 = vector.load %arg2[%c0_4, %c0_5] : memref<32x128xf32, #tpu.memory_space<vmem>>, vector<32x128xf32>
    %cst = arith.constant dense<0.000000e+00> : vector<32x5xf32>
    %6 = tpu.matmul %5, %3, %cst {dimension_numbers = #tpu.dot_dimension_numbers<[1], [1], [0], [0], [0, 0, 1, 0], [], []>} : vector<32x128xf32>, vector<5x128xf32>, vector<32x5xf32> -> vector<32x5xf32>
    %7 = vector.broadcast %4 : vector<1x5xf32> to vector<32x5xf32>
    %8 = arith.addf %6, %7 : vector<32x5xf32>
    %cst_6 = arith.constant dense<0xFF800000> : vector<32xf32>
    %9 = vector.multi_reduction <maximumf>, %8, %cst_6 [1] : vector<32x5xf32> to vector<32xf32>
    %10 = vector.shape_cast %9 : vector<32xf32> to vector<32x1xf32>
    %11 = vector.broadcast %10 : vector<32x1xf32> to vector<32x5xf32>
    %12 = arith.subf %8, %11 : vector<32x5xf32>
    %13 = math.exp %12 : vector<32x5xf32>
    %cst_7 = arith.constant dense<0.000000e+00> : vector<32xf32>
    %14 = vector.multi_reduction <add>, %13, %cst_7 [1] : vector<32x5xf32> to vector<32xf32>
    %15 = vector.shape_cast %14 : vector<32xf32> to vector<32x1xf32>
    %16 = tpu.reciprocal %15 {approx = true} : vector<32x1xf32> -> vector<32x1xf32>
    %17 = vector.broadcast %16 : vector<32x1xf32> to vector<32x5xf32>
    %18 = arith.mulf %13, %17 : vector<32x5xf32>
    %c0_8 = arith.constant 0 : index
    %c0_9 = arith.constant 0 : index
    %19 = vector.load %arg1[%c0_8, %c0_9] : memref<32x1xi32, #tpu.memory_space<vmem>>, vector<32x1xi32>
    %c0_i32_10 = arith.constant 0 : i32
    %20 = vector.broadcast %c0_i32_10 : i32 to vector<32x1xi32>
    %21 = arith.cmpi eq, %19, %20 : vector<32x1xi32>
    %22 = arith.extui %21 : vector<32x1xi1> to vector<32x1xi32>
    %23 = arith.sitofp %22 : vector<32x1xi32> to vector<32x1xf32>
    %c0_11 = arith.constant 0 : index
    %c0_12 = arith.constant 0 : index
    %24 = vector.load %arg3[%c0_11, %c0_12] : memref<32x5xf32, #tpu.memory_space<vmem>>, vector<32x5xf32>
    %25 = arith.subf %18, %24 : vector<32x5xf32>
    %cst_13 = arith.constant 2.500000e-01 : f32
    %26 = vector.broadcast %cst_13 : f32 to vector<32x1xf32>
    %27 = arith.mulf %23, %26 : vector<32x1xf32>
    %28 = vector.broadcast %27 : vector<32x1xf32> to vector<32x5xf32>
    %29 = arith.mulf %25, %28 : vector<32x5xf32>
    %c0_14 = arith.constant 0 : index
    %c0_15 = arith.constant 0 : index
    %30 = vector.load %arg2[%c0_14, %c0_15] : memref<32x128xf32, #tpu.memory_space<vmem>>, vector<32x128xf32>
    %cst_16 = arith.constant dense<0.000000e+00> : vector<5x128xf32>
    %31 = tpu.matmul %29, %30, %cst_16 {dimension_numbers = #tpu.dot_dimension_numbers<[0], [0], [1], [1], [0, 1, 1, 1], [], []>} : vector<32x5xf32>, vector<32x128xf32>, vector<5x128xf32> -> vector<5x128xf32>
    %cst_17 = arith.constant 1.000000e-03 : f32
    %32 = vector.broadcast %cst_17 : f32 to vector<5x128xf32>
    %33 = arith.mulf %32, %3 : vector<5x128xf32>
    %34 = arith.addf %31, %33 : vector<5x128xf32>
    %cst_18 = arith.constant dense<0.000000e+00> : vector<5xf32>
    %35 = vector.multi_reduction <add>, %29, %cst_18 [0] : vector<32x5xf32> to vector<5xf32>
    %36 = vector.shape_cast %35 : vector<5xf32> to vector<1x5xf32>
    %cst_19 = arith.constant 1.000000e-03 : f32
    %37 = vector.broadcast %cst_19 : f32 to vector<1x5xf32>
    %38 = arith.mulf %37, %4 : vector<1x5xf32>
    %39 = arith.addf %36, %38 : vector<1x5xf32>
    %c0_i32_20 = arith.constant 0 : i32
    %40 = arith.cmpi eq, %arg0, %c0_i32_20 : i32
    %cst_21 = arith.constant 1.000000e+00 : f32
    %cst_22 = arith.constant 1.000000e-01 : f32
    %41 = arith.select %40, %cst_21, %cst_22 : f32
    %c0_23 = arith.constant 0 : index
    %c0_24 = arith.constant 0 : index
    %42 = vector.load %arg10[%c0_23, %c0_24] : memref<5x128xf32, #tpu.memory_space<vmem>>, vector<5x128xf32>
    %cst_25 = arith.constant 0.899999976 : f32
    %43 = vector.broadcast %cst_25 : f32 to vector<5x128xf32>
    %44 = arith.mulf %43, %42 : vector<5x128xf32>
    %45 = vector.broadcast %41 : f32 to vector<5x128xf32>
    %46 = arith.mulf %45, %34 : vector<5x128xf32>
    %47 = arith.addf %44, %46 : vector<5x128xf32>
    %c0_26 = arith.constant 0 : index
    %c0_27 = arith.constant 0 : index
    %48 = vector.load %arg11[%c0_26, %c0_27] : memref<1x5xf32, #tpu.memory_space<vmem>>, vector<1x5xf32>
    %cst_28 = arith.constant 0.899999976 : f32
    %49 = vector.broadcast %cst_28 : f32 to vector<1x5xf32>
    %50 = arith.mulf %49, %48 : vector<1x5xf32>
    %51 = vector.broadcast %41 : f32 to vector<1x5xf32>
    %52 = arith.mulf %51, %39 : vector<1x5xf32>
    %53 = arith.addf %50, %52 : vector<1x5xf32>
    %c0_29 = arith.constant 0 : index
    %c0_30 = arith.constant 0 : index
    %54 = vector.load %arg10[%c0_29, %c0_30] : memref<5x128xf32, #tpu.memory_space<vmem>>, vector<5x128xf32>
    tpu.vector_store %arg10[%c0_29, %c0_30], %47 {strides = array<i32>} : memref<5x128xf32, #tpu.memory_space<vmem>>, vector<5x128xf32>,
    %c0_31 = arith.constant 0 : index
    %c0_32 = arith.constant 0 : index
    %55 = vector.load %arg11[%c0_31, %c0_32] : memref<1x5xf32, #tpu.memory_space<vmem>>, vector<1x5xf32>
    tpu.vector_store %arg11[%c0_31, %c0_32], %53 {strides = array<i32>} : memref<1x5xf32, #tpu.memory_space<vmem>>, vector<1x5xf32>,
    %cst_33 = arith.constant 0.00999999977 : f32
    %56 = vector.broadcast %cst_33 : f32 to vector<5x128xf32>
    %57 = arith.mulf %56, %47 : vector<5x128xf32>
    %58 = arith.subf %3, %57 : vector<5x128xf32>
    %c0_34 = arith.constant 0 : index
    %c0_35 = arith.constant 0 : index
    %59 = vector.load %arg8[%c0_34, %c0_35] : memref<5x128xf32, #tpu.memory_space<vmem>>, vector<5x128xf32>
    tpu.vector_store %arg8[%c0_34, %c0_35], %58 {strides = array<i32>} : memref<5x128xf32, #tpu.memory_space<vmem>>, vector<5x128xf32>,
    %cst_36 = arith.constant 0.00999999977 : f32
    %60 = vector.broadcast %cst_36 : f32 to vector<1x5xf32>
    %61 = arith.mulf %60, %53 : vector<1x5xf32>
    %62 = arith.subf %4, %61 : vector<1x5xf32>
    %c0_37 = arith.constant 0 : index
    %c0_38 = arith.constant 0 : index
    %63 = vector.load %arg9[%c0_37, %c0_38] : memref<1x5xf32, #tpu.memory_space<vmem>>, vector<1x5xf32>
    tpu.vector_store %arg9[%c0_37, %c0_38], %62 {strides = array<i32>} : memref<1x5xf32, #tpu.memory_space<vmem>>, vector<1x5xf32>,
    %c0_39 = arith.constant 0 : index
    %c0_40 = arith.constant 0 : index
    %64 = vector.load %arg8[%c0_39, %c0_40] : memref<5x128xf32, #tpu.memory_space<vmem>>, vector<5x128xf32>
    %c0_41 = arith.constant 0 : index
    %c0_42 = arith.constant 0 : index
    %65 = vector.load %arg9[%c0_41, %c0_42] : memref<1x5xf32, #tpu.memory_space<vmem>>, vector<1x5xf32>
    %c0_43 = arith.constant 0 : index
    %c0_44 = arith.constant 0 : index
    %66 = vector.load %arg2[%c0_43, %c0_44] : memref<32x128xf32, #tpu.memory_space<vmem>>, vector<32x128xf32>
    %cst_45 = arith.constant dense<0.000000e+00> : vector<32x5xf32>
    %67 = tpu.matmul %66, %64, %cst_45 {dimension_numbers = #tpu.dot_dimension_numbers<[1], [1], [0], [0], [0, 0, 1, 0], [], []>} : vector<32x128xf32>, vector<5x128xf32>, vector<32x5xf32> -> vector<32x5xf32>
    %68 = vector.broadcast %65 : vector<1x5xf32> to vector<32x5xf32>
    %69 = arith.addf %67, %68 : vector<32x5xf32>
    %cst_46 = arith.constant dense<0xFF800000> : vector<32xf32>
    %70 = vector.multi_reduction <maximumf>, %69, %cst_46 [1] : vector<32x5xf32> to vector<32xf32>
    %71 = vector.shape_cast %70 : vector<32xf32> to vector<32x1xf32>
    %72 = vector.broadcast %71 : vector<32x1xf32> to vector<32x5xf32>
    %73 = arith.subf %69, %72 : vector<32x5xf32>
    %74 = math.exp %73 : vector<32x5xf32>
    %cst_47 = arith.constant dense<0.000000e+00> : vector<32xf32>
    %75 = vector.multi_reduction <add>, %74, %cst_47 [1] : vector<32x5xf32> to vector<32xf32>
    %76 = vector.shape_cast %75 : vector<32xf32> to vector<32x1xf32>
    %77 = tpu.reciprocal %76 {approx = true} : vector<32x1xf32> -> vector<32x1xf32>
    %78 = vector.broadcast %77 : vector<32x1xf32> to vector<32x5xf32>
    %79 = arith.mulf %74, %78 : vector<32x5xf32>
    %c0_48 = arith.constant 0 : index
    %c0_49 = arith.constant 0 : index
    %80 = vector.load %arg1[%c0_48, %c0_49] : memref<32x1xi32, #tpu.memory_space<vmem>>, vector<32x1xi32>
    %c1_i32 = arith.constant 1 : i32
    %81 = vector.broadcast %c1_i32 : i32 to vector<32x1xi32>
    %82 = arith.cmpi eq, %80, %81 : vector<32x1xi32>
    %83 = arith.extui %82 : vector<32x1xi1> to vector<32x1xi32>
    %84 = arith.sitofp %83 : vector<32x1xi32> to vector<32x1xf32>
    %c0_50 = arith.constant 0 : index
    %c0_51 = arith.constant 0 : index
    %85 = vector.load %arg3[%c0_50, %c0_51] : memref<32x5xf32, #tpu.memory_space<vmem>>, vector<32x5xf32>
    %86 = arith.subf %79, %85 : vector<32x5xf32>
    %cst_52 = arith.constant 2.500000e-01 : f32
    %87 = vector.broadcast %cst_52 : f32 to vector<32x1xf32>
    %88 = arith.mulf %84, %87 : vector<32x1xf32>
    %89 = vector.broadcast %88 : vector<32x1xf32> to vector<32x5xf32>
    %90 = arith.mulf %86, %89 : vector<32x5xf32>
    %c0_53 = arith.constant 0 : index
    %c0_54 = arith.constant 0 : index
    %91 = vector.load %arg2[%c0_53, %c0_54] : memref<32x128xf32, #tpu.memory_space<vmem>>, vector<32x128xf32>
    %cst_55 = arith.constant dense<0.000000e+00> : vector<5x128xf32>
    %92 = tpu.matmul %90, %91, %cst_55 {dimension_numbers = #tpu.dot_dimension_numbers<[0], [0], [1], [1], [0, 1, 1, 1], [], []>} : vector<32x5xf32>, vector<32x128xf32>, vector<5x128xf32> -> vector<5x128xf32>
    %cst_56 = arith.constant 1.000000e-03 : f32
    %93 = vector.broadcast %cst_56 : f32 to vector<5x128xf32>
    %94 = arith.mulf %93, %64 : vector<5x128xf32>
    %95 = arith.addf %92, %94 : vector<5x128xf32>
    %cst_57 = arith.constant dense<0.000000e+00> : vector<5xf32>
    %96 = vector.multi_reduction <add>, %90, %cst_57 [0] : vector<32x5xf32> to vector<5xf32>
    %97 = vector.shape_cast %96 : vector<5xf32> to vector<1x5xf32>
    %cst_58 = arith.constant 1.000000e-03 : f32
    %98 = vector.broadcast %cst_58 : f32 to vector<1x5xf32>
    %99 = arith.mulf %98, %65 : vector<1x5xf32>
    %100 = arith.addf %97, %99 : vector<1x5xf32>
    %c0_59 = arith.constant 0 : index
    %c0_60 = arith.constant 0 : index
    %101 = vector.load %arg10[%c0_59, %c0_60] : memref<5x128xf32, #tpu.memory_space<vmem>>, vector<5x128xf32>
    %cst_61 = arith.constant 0.899999976 : f32
    %102 = vector.broadcast %cst_61 : f32 to vector<5x128xf32>
    %103 = arith.mulf %102, %101 : vector<5x128xf32>
    %cst_62 = arith.constant 1.000000e-01 : f32
    %104 = vector.broadcast %cst_62 : f32 to vector<5x128xf32>
    %105 = arith.mulf %104, %95 : vector<5x128xf32>
    %106 = arith.addf %103, %105 : vector<5x128xf32>
    %c0_63 = arith.constant 0 : index
    %c0_64 = arith.constant 0 : index
    %107 = vector.load %arg11[%c0_63, %c0_64] : memref<1x5xf32, #tpu.memory_space<vmem>>, vector<1x5xf32>
    %cst_65 = arith.constant 0.899999976 : f32
    %108 = vector.broadcast %cst_65 : f32 to vector<1x5xf32>
    %109 = arith.mulf %108, %107 : vector<1x5xf32>
    %cst_66 = arith.constant 1.000000e-01 : f32
    %110 = vector.broadcast %cst_66 : f32 to vector<1x5xf32>
    %111 = arith.mulf %110, %100 : vector<1x5xf32>
    %112 = arith.addf %109, %111 : vector<1x5xf32>
    %c0_67 = arith.constant 0 : index
    %c0_68 = arith.constant 0 : index
    %113 = vector.load %arg10[%c0_67, %c0_68] : memref<5x128xf32, #tpu.memory_space<vmem>>, vector<5x128xf32>
    tpu.vector_store %arg10[%c0_67, %c0_68], %106 {strides = array<i32>} : memref<5x128xf32, #tpu.memory_space<vmem>>, vector<5x128xf32>,
    %c0_69 = arith.constant 0 : index
    %c0_70 = arith.constant 0 : index
    %114 = vector.load %arg11[%c0_69, %c0_70] : memref<1x5xf32, #tpu.memory_space<vmem>>, vector<1x5xf32>
    tpu.vector_store %arg11[%c0_69, %c0_70], %112 {strides = array<i32>} : memref<1x5xf32, #tpu.memory_space<vmem>>, vector<1x5xf32>,
    %cst_71 = arith.constant 0.00999999977 : f32
    %115 = vector.broadcast %cst_71 : f32 to vector<5x128xf32>
    %116 = arith.mulf %115, %106 : vector<5x128xf32>
    %117 = arith.subf %64, %116 : vector<5x128xf32>
    %c0_72 = arith.constant 0 : index
    %c0_73 = arith.constant 0 : index
    %118 = vector.load %arg8[%c0_72, %c0_73] : memref<5x128xf32, #tpu.memory_space<vmem>>, vector<5x128xf32>
    tpu.vector_store %arg8[%c0_72, %c0_73], %117 {strides = array<i32>} : memref<5x128xf32, #tpu.memory_space<vmem>>, vector<5x128xf32>,
    %cst_74 = arith.constant 0.00999999977 : f32
    %119 = vector.broadcast %cst_74 : f32 to vector<1x5xf32>
    %120 = arith.mulf %119, %112 : vector<1x5xf32>
    %121 = arith.subf %65, %120 : vector<1x5xf32>
    %c0_75 = arith.constant 0 : index
    %c0_76 = arith.constant 0 : index
    %122 = vector.load %arg9[%c0_75, %c0_76] : memref<1x5xf32, #tpu.memory_space<vmem>>, vector<1x5xf32>
    tpu.vector_store %arg9[%c0_75, %c0_76], %121 {strides = array<i32>} : memref<1x5xf32, #tpu.memory_space<vmem>>, vector<1x5xf32>,
    %c0_77 = arith.constant 0 : index
    %c0_78 = arith.constant 0 : index
    %123 = vector.load %arg8[%c0_77, %c0_78] : memref<5x128xf32, #tpu.memory_space<vmem>>, vector<5x128xf32>
    %c0_79 = arith.constant 0 : index
    %c0_80 = arith.constant 0 : index
    %124 = vector.load %arg9[%c0_79, %c0_80] : memref<1x5xf32, #tpu.memory_space<vmem>>, vector<1x5xf32>
    %c0_81 = arith.constant 0 : index
    %c0_82 = arith.constant 0 : index
    %125 = vector.load %arg2[%c0_81, %c0_82] : memref<32x128xf32, #tpu.memory_space<vmem>>, vector<32x128xf32>
    %cst_83 = arith.constant dense<0.000000e+00> : vector<32x5xf32>
    %126 = tpu.matmul %125, %123, %cst_83 {dimension_numbers = #tpu.dot_dimension_numbers<[1], [1], [0], [0], [0, 0, 1, 0], [], []>} : vector<32x128xf32>, vector<5x128xf32>, vector<32x5xf32> -> vector<32x5xf32>
    %127 = vector.broadcast %124 : vector<1x5xf32> to vector<32x5xf32>
    %128 = arith.addf %126, %127 : vector<32x5xf32>
    %cst_84 = arith.constant dense<0xFF800000> : vector<32xf32>
    %129 = vector.multi_reduction <maximumf>, %128, %cst_84 [1] : vector<32x5xf32> to vector<32xf32>
    %130 = vector.shape_cast %129 : vector<32xf32> to vector<32x1xf32>
    %131 = vector.broadcast %130 : vector<32x1xf32> to vector<32x5xf32>
    %132 = arith.subf %128, %131 : vector<32x5xf32>
    %133 = math.exp %132 : vector<32x5xf32>
    %cst_85 = arith.constant dense<0.000000e+00> : vector<32xf32>
    %134 = vector.multi_reduction <add>, %133, %cst_85 [1] : vector<32x5xf32> to vector<32xf32>
    %135 = vector.shape_cast %134 : vector<32xf32> to vector<32x1xf32>
    %136 = tpu.reciprocal %135 {approx = true} : vector<32x1xf32> -> vector<32x1xf32>
    %137 = vector.broadcast %136 : vector<32x1xf32> to vector<32x5xf32>
    %138 = arith.mulf %133, %137 : vector<32x5xf32>
    %c0_86 = arith.constant 0 : index
    %c0_87 = arith.constant 0 : index
    %139 = vector.load %arg1[%c0_86, %c0_87] : memref<32x1xi32, #tpu.memory_space<vmem>>, vector<32x1xi32>
    %c2_i32 = arith.constant 2 : i32
    %140 = vector.broadcast %c2_i32 : i32 to vector<32x1xi32>
    %141 = arith.cmpi eq, %139, %140 : vector<32x1xi32>
    %142 = arith.extui %141 : vector<32x1xi1> to vector<32x1xi32>
    %143 = arith.sitofp %142 : vector<32x1xi32> to vector<32x1xf32>
    %c0_88 = arith.constant 0 : index
    %c0_89 = arith.constant 0 : index
    %144 = vector.load %arg3[%c0_88, %c0_89] : memref<32x5xf32, #tpu.memory_space<vmem>>, vector<32x5xf32>
    %145 = arith.subf %138, %144 : vector<32x5xf32>
    %cst_90 = arith.constant 2.500000e-01 : f32
    %146 = vector.broadcast %cst_90 : f32 to vector<32x1xf32>
    %147 = arith.mulf %143, %146 : vector<32x1xf32>
    %148 = vector.broadcast %147 : vector<32x1xf32> to vector<32x5xf32>
    %149 = arith.mulf %145, %148 : vector<32x5xf32>
    %c0_91 = arith.constant 0 : index
    %c0_92 = arith.constant 0 : index
    %150 = vector.load %arg2[%c0_91, %c0_92] : memref<32x128xf32, #tpu.memory_space<vmem>>, vector<32x128xf32>
    %cst_93 = arith.constant dense<0.000000e+00> : vector<5x128xf32>
    %151 = tpu.matmul %149, %150, %cst_93 {dimension_numbers = #tpu.dot_dimension_numbers<[0], [0], [1], [1], [0, 1, 1, 1], [], []>} : vector<32x5xf32>, vector<32x128xf32>, vector<5x128xf32> -> vector<5x128xf32>
    %cst_94 = arith.constant 1.000000e-03 : f32
    %152 = vector.broadcast %cst_94 : f32 to vector<5x128xf32>
    %153 = arith.mulf %152, %123 : vector<5x128xf32>
    %154 = arith.addf %151, %153 : vector<5x128xf32>
    %cst_95 = arith.constant dense<0.000000e+00> : vector<5xf32>
    %155 = vector.multi_reduction <add>, %149, %cst_95 [0] : vector<32x5xf32> to vector<5xf32>
    %156 = vector.shape_cast %155 : vector<5xf32> to vector<1x5xf32>
    %cst_96 = arith.constant 1.000000e-03 : f32
    %157 = vector.broadcast %cst_96 : f32 to vector<1x5xf32>
    %158 = arith.mulf %157, %124 : vector<1x5xf32>
    %159 = arith.addf %156, %158 : vector<1x5xf32>
    %c0_97 = arith.constant 0 : index
    %c0_98 = arith.constant 0 : index
    %160 = vector.load %arg10[%c0_97, %c0_98] : memref<5x128xf32, #tpu.memory_space<vmem>>, vector<5x128xf32>
    %cst_99 = arith.constant 0.899999976 : f32
    %161 = vector.broadcast %cst_99 : f32 to vector<5x128xf32>
    %162 = arith.mulf %161, %160 : vector<5x128xf32>
    %cst_100 = arith.constant 1.000000e-01 : f32
    %163 = vector.broadcast %cst_100 : f32 to vector<5x128xf32>
    %164 = arith.mulf %163, %154 : vector<5x128xf32>
    %165 = arith.addf %162, %164 : vector<5x128xf32>
    %c0_101 = arith.constant 0 : index
    %c0_102 = arith.constant 0 : index
    %166 = vector.load %arg11[%c0_101, %c0_102] : memref<1x5xf32, #tpu.memory_space<vmem>>, vector<1x5xf32>
    %cst_103 = arith.constant 0.899999976 : f32
    %167 = vector.broadcast %cst_103 : f32 to vector<1x5xf32>
    %168 = arith.mulf %167, %166 : vector<1x5xf32>
    %cst_104 = arith.constant 1.000000e-01 : f32
    %169 = vector.broadcast %cst_104 : f32 to vector<1x5xf32>
    %170 = arith.mulf %169, %159 : vector<1x5xf32>
    %171 = arith.addf %168, %170 : vector<1x5xf32>
    %c0_105 = arith.constant 0 : index
    %c0_106 = arith.constant 0 : index
    %172 = vector.load %arg10[%c0_105, %c0_106] : memref<5x128xf32, #tpu.memory_space<vmem>>, vector<5x128xf32>
    tpu.vector_store %arg10[%c0_105, %c0_106], %165 {strides = array<i32>} : memref<5x128xf32, #tpu.memory_space<vmem>>, vector<5x128xf32>,
    %c0_107 = arith.constant 0 : index
    %c0_108 = arith.constant 0 : index
    %173 = vector.load %arg11[%c0_107, %c0_108] : memref<1x5xf32, #tpu.memory_space<vmem>>, vector<1x5xf32>
    tpu.vector_store %arg11[%c0_107, %c0_108], %171 {strides = array<i32>} : memref<1x5xf32, #tpu.memory_space<vmem>>, vector<1x5xf32>,
    %cst_109 = arith.constant 0.00999999977 : f32
    %174 = vector.broadcast %cst_109 : f32 to vector<5x128xf32>
    %175 = arith.mulf %174, %165 : vector<5x128xf32>
    %176 = arith.subf %123, %175 : vector<5x128xf32>
    %c0_110 = arith.constant 0 : index
    %c0_111 = arith.constant 0 : index
    %177 = vector.load %arg8[%c0_110, %c0_111] : memref<5x128xf32, #tpu.memory_space<vmem>>, vector<5x128xf32>
    tpu.vector_store %arg8[%c0_110, %c0_111], %176 {strides = array<i32>} : memref<5x128xf32, #tpu.memory_space<vmem>>, vector<5x128xf32>,
    %cst_112 = arith.constant 0.00999999977 : f32
    %178 = vector.broadcast %cst_112 : f32 to vector<1x5xf32>
    %179 = arith.mulf %178, %171 : vector<1x5xf32>
    %180 = arith.subf %124, %179 : vector<1x5xf32>
    %c0_113 = arith.constant 0 : index
    %c0_114 = arith.constant 0 : index
    %181 = vector.load %arg9[%c0_113, %c0_114] : memref<1x5xf32, #tpu.memory_space<vmem>>, vector<1x5xf32>
    tpu.vector_store %arg9[%c0_113, %c0_114], %180 {strides = array<i32>} : memref<1x5xf32, #tpu.memory_space<vmem>>, vector<1x5xf32>,
    %c0_115 = arith.constant 0 : index
    %c0_116 = arith.constant 0 : index
    %182 = vector.load %arg8[%c0_115, %c0_116] : memref<5x128xf32, #tpu.memory_space<vmem>>, vector<5x128xf32>
    %c0_117 = arith.constant 0 : index
    %c0_118 = arith.constant 0 : index
    %183 = vector.load %arg9[%c0_117, %c0_118] : memref<1x5xf32, #tpu.memory_space<vmem>>, vector<1x5xf32>
    %c0_119 = arith.constant 0 : index
    %c0_120 = arith.constant 0 : index
    %184 = vector.load %arg2[%c0_119, %c0_120] : memref<32x128xf32, #tpu.memory_space<vmem>>, vector<32x128xf32>
    %cst_121 = arith.constant dense<0.000000e+00> : vector<32x5xf32>
    %185 = tpu.matmul %184, %182, %cst_121 {dimension_numbers = #tpu.dot_dimension_numbers<[1], [1], [0], [0], [0, 0, 1, 0], [], []>} : vector<32x128xf32>, vector<5x128xf32>, vector<32x5xf32> -> vector<32x5xf32>
    %186 = vector.broadcast %183 : vector<1x5xf32> to vector<32x5xf32>
    %187 = arith.addf %185, %186 : vector<32x5xf32>
    %cst_122 = arith.constant dense<0xFF800000> : vector<32xf32>
    %188 = vector.multi_reduction <maximumf>, %187, %cst_122 [1] : vector<32x5xf32> to vector<32xf32>
    %189 = vector.shape_cast %188 : vector<32xf32> to vector<32x1xf32>
    %190 = vector.broadcast %189 : vector<32x1xf32> to vector<32x5xf32>
    %191 = arith.subf %187, %190 : vector<32x5xf32>
    %192 = math.exp %191 : vector<32x5xf32>
    %cst_123 = arith.constant dense<0.000000e+00> : vector<32xf32>
    %193 = vector.multi_reduction <add>, %192, %cst_123 [1] : vector<32x5xf32> to vector<32xf32>
    %194 = vector.shape_cast %193 : vector<32xf32> to vector<32x1xf32>
    %195 = tpu.reciprocal %194 {approx = true} : vector<32x1xf32> -> vector<32x1xf32>
    %196 = vector.broadcast %195 : vector<32x1xf32> to vector<32x5xf32>
    %197 = arith.mulf %192, %196 : vector<32x5xf32>
    %c0_124 = arith.constant 0 : index
    %c0_125 = arith.constant 0 : index
    %198 = vector.load %arg1[%c0_124, %c0_125] : memref<32x1xi32, #tpu.memory_space<vmem>>, vector<32x1xi32>
    %c3_i32 = arith.constant 3 : i32
    %199 = vector.broadcast %c3_i32 : i32 to vector<32x1xi32>
    %200 = arith.cmpi eq, %198, %199 : vector<32x1xi32>
    %201 = arith.extui %200 : vector<32x1xi1> to vector<32x1xi32>
    %202 = arith.sitofp %201 : vector<32x1xi32> to vector<32x1xf32>
    %c0_126 = arith.constant 0 : index
    %c0_127 = arith.constant 0 : index
    %203 = vector.load %arg3[%c0_126, %c0_127] : memref<32x5xf32, #tpu.memory_space<vmem>>, vector<32x5xf32>
    %204 = arith.subf %197, %203 : vector<32x5xf32>
    %cst_128 = arith.constant 2.500000e-01 : f32
    %205 = vector.broadcast %cst_128 : f32 to vector<32x1xf32>
    %206 = arith.mulf %202, %205 : vector<32x1xf32>
    %207 = vector.broadcast %206 : vector<32x1xf32> to vector<32x5xf32>
    %208 = arith.mulf %204, %207 : vector<32x5xf32>
    %c0_129 = arith.constant 0 : index
    %c0_130 = arith.constant 0 : index
    %209 = vector.load %arg2[%c0_129, %c0_130] : memref<32x128xf32, #tpu.memory_space<vmem>>, vector<32x128xf32>
    %cst_131 = arith.constant dense<0.000000e+00> : vector<5x128xf32>
    %210 = tpu.matmul %208, %209, %cst_131 {dimension_numbers = #tpu.dot_dimension_numbers<[0], [0], [1], [1], [0, 1, 1, 1], [], []>} : vector<32x5xf32>, vector<32x128xf32>, vector<5x128xf32> -> vector<5x128xf32>
    %cst_132 = arith.constant 1.000000e-03 : f32
    %211 = vector.broadcast %cst_132 : f32 to vector<5x128xf32>
    %212 = arith.mulf %211, %182 : vector<5x128xf32>
    %213 = arith.addf %210, %212 : vector<5x128xf32>
    %cst_133 = arith.constant dense<0.000000e+00> : vector<5xf32>
    %214 = vector.multi_reduction <add>, %208, %cst_133 [0] : vector<32x5xf32> to vector<5xf32>
    %215 = vector.shape_cast %214 : vector<5xf32> to vector<1x5xf32>
    %cst_134 = arith.constant 1.000000e-03 : f32
    %216 = vector.broadcast %cst_134 : f32 to vector<1x5xf32>
    %217 = arith.mulf %216, %183 : vector<1x5xf32>
    %218 = arith.addf %215, %217 : vector<1x5xf32>
    %c0_135 = arith.constant 0 : index
    %c0_136 = arith.constant 0 : index
    %219 = vector.load %arg10[%c0_135, %c0_136] : memref<5x128xf32, #tpu.memory_space<vmem>>, vector<5x128xf32>
    %cst_137 = arith.constant 0.899999976 : f32
    %220 = vector.broadcast %cst_137 : f32 to vector<5x128xf32>
    %221 = arith.mulf %220, %219 : vector<5x128xf32>
    %cst_138 = arith.constant 1.000000e-01 : f32
    %222 = vector.broadcast %cst_138 : f32 to vector<5x128xf32>
    %223 = arith.mulf %222, %213 : vector<5x128xf32>
    %224 = arith.addf %221, %223 : vector<5x128xf32>
    %c0_139 = arith.constant 0 : index
    %c0_140 = arith.constant 0 : index
    %225 = vector.load %arg11[%c0_139, %c0_140] : memref<1x5xf32, #tpu.memory_space<vmem>>, vector<1x5xf32>
    %cst_141 = arith.constant 0.899999976 : f32
    %226 = vector.broadcast %cst_141 : f32 to vector<1x5xf32>
    %227 = arith.mulf %226, %225 : vector<1x5xf32>
    %cst_142 = arith.constant 1.000000e-01 : f32
    %228 = vector.broadcast %cst_142 : f32 to vector<1x5xf32>
    %229 = arith.mulf %228, %218 : vector<1x5xf32>
    %230 = arith.addf %227, %229 : vector<1x5xf32>
    %c0_143 = arith.constant 0 : index
    %c0_144 = arith.constant 0 : index
    %231 = vector.load %arg10[%c0_143, %c0_144] : memref<5x128xf32, #tpu.memory_space<vmem>>, vector<5x128xf32>
    tpu.vector_store %arg10[%c0_143, %c0_144], %224 {strides = array<i32>} : memref<5x128xf32, #tpu.memory_space<vmem>>, vector<5x128xf32>,
    %c0_145 = arith.constant 0 : index
    %c0_146 = arith.constant 0 : index
    %232 = vector.load %arg11[%c0_145, %c0_146] : memref<1x5xf32, #tpu.memory_space<vmem>>, vector<1x5xf32>
    tpu.vector_store %arg11[%c0_145, %c0_146], %230 {strides = array<i32>} : memref<1x5xf32, #tpu.memory_space<vmem>>, vector<1x5xf32>,
    %cst_147 = arith.constant 0.00999999977 : f32
    %233 = vector.broadcast %cst_147 : f32 to vector<5x128xf32>
    %234 = arith.mulf %233, %224 : vector<5x128xf32>
    %235 = arith.subf %182, %234 : vector<5x128xf32>
    %c0_148 = arith.constant 0 : index
    %c0_149 = arith.constant 0 : index
    %236 = vector.load %arg8[%c0_148, %c0_149] : memref<5x128xf32, #tpu.memory_space<vmem>>, vector<5x128xf32>
    tpu.vector_store %arg8[%c0_148, %c0_149], %235 {strides = array<i32>} : memref<5x128xf32, #tpu.memory_space<vmem>>, vector<5x128xf32>,
    %cst_150 = arith.constant 0.00999999977 : f32
    %237 = vector.broadcast %cst_150 : f32 to vector<1x5xf32>
    %238 = arith.mulf %237, %230 : vector<1x5xf32>
    %239 = arith.subf %183, %238 : vector<1x5xf32>
    %c0_151 = arith.constant 0 : index
    %c0_152 = arith.constant 0 : index
    %240 = vector.load %arg9[%c0_151, %c0_152] : memref<1x5xf32, #tpu.memory_space<vmem>>, vector<1x5xf32>
    tpu.vector_store %arg9[%c0_151, %c0_152], %239 {strides = array<i32>} : memref<1x5xf32, #tpu.memory_space<vmem>>, vector<1x5xf32>,
    %c0_153 = arith.constant 0 : index
    %c0_154 = arith.constant 0 : index
    %241 = vector.load %arg8[%c0_153, %c0_154] : memref<5x128xf32, #tpu.memory_space<vmem>>, vector<5x128xf32>
    %c0_155 = arith.constant 0 : index
    %c0_156 = arith.constant 0 : index
    %242 = vector.load %arg9[%c0_155, %c0_156] : memref<1x5xf32, #tpu.memory_space<vmem>>, vector<1x5xf32>
    %c0_157 = arith.constant 0 : index
    %c0_158 = arith.constant 0 : index
    %243 = vector.load %arg2[%c0_157, %c0_158] : memref<32x128xf32, #tpu.memory_space<vmem>>, vector<32x128xf32>
    %cst_159 = arith.constant dense<0.000000e+00> : vector<32x5xf32>
    %244 = tpu.matmul %243, %241, %cst_159 {dimension_numbers = #tpu.dot_dimension_numbers<[1], [1], [0], [0], [0, 0, 1, 0], [], []>} : vector<32x128xf32>, vector<5x128xf32>, vector<32x5xf32> -> vector<32x5xf32>
    %245 = vector.broadcast %242 : vector<1x5xf32> to vector<32x5xf32>
    %246 = arith.addf %244, %245 : vector<32x5xf32>
    %cst_160 = arith.constant dense<0xFF800000> : vector<32xf32>
    %247 = vector.multi_reduction <maximumf>, %246, %cst_160 [1] : vector<32x5xf32> to vector<32xf32>
    %248 = vector.shape_cast %247 : vector<32xf32> to vector<32x1xf32>
    %249 = vector.broadcast %248 : vector<32x1xf32> to vector<32x5xf32>
    %250 = arith.subf %246, %249 : vector<32x5xf32>
    %251 = math.exp %250 : vector<32x5xf32>
    %cst_161 = arith.constant dense<0.000000e+00> : vector<32xf32>
    %252 = vector.multi_reduction <add>, %251, %cst_161 [1] : vector<32x5xf32> to vector<32xf32>
    %253 = vector.shape_cast %252 : vector<32xf32> to vector<32x1xf32>
    %254 = tpu.reciprocal %253 {approx = true} : vector<32x1xf32> -> vector<32x1xf32>
    %255 = vector.broadcast %254 : vector<32x1xf32> to vector<32x5xf32>
    %256 = arith.mulf %251, %255 : vector<32x5xf32>
    %c0_162 = arith.constant 0 : index
    %c0_163 = arith.constant 0 : index
    %257 = vector.load %arg1[%c0_162, %c0_163] : memref<32x1xi32, #tpu.memory_space<vmem>>, vector<32x1xi32>
    %c4_i32 = arith.constant 4 : i32
    %258 = vector.broadcast %c4_i32 : i32 to vector<32x1xi32>
    %259 = arith.cmpi eq, %257, %258 : vector<32x1xi32>
    %260 = arith.extui %259 : vector<32x1xi1> to vector<32x1xi32>
    %261 = arith.sitofp %260 : vector<32x1xi32> to vector<32x1xf32>
    %c0_164 = arith.constant 0 : index
    %c0_165 = arith.constant 0 : index
    %262 = vector.load %arg3[%c0_164, %c0_165] : memref<32x5xf32, #tpu.memory_space<vmem>>, vector<32x5xf32>
    %263 = arith.subf %256, %262 : vector<32x5xf32>
    %cst_166 = arith.constant 2.500000e-01 : f32
    %264 = vector.broadcast %cst_166 : f32 to vector<32x1xf32>
    %265 = arith.mulf %261, %264 : vector<32x1xf32>
    %266 = vector.broadcast %265 : vector<32x1xf32> to vector<32x5xf32>
    %267 = arith.mulf %263, %266 : vector<32x5xf32>
    %c0_167 = arith.constant 0 : index
    %c0_168 = arith.constant 0 : index
    %268 = vector.load %arg2[%c0_167, %c0_168] : memref<32x128xf32, #tpu.memory_space<vmem>>, vector<32x128xf32>
    %cst_169 = arith.constant dense<0.000000e+00> : vector<5x128xf32>
    %269 = tpu.matmul %267, %268, %cst_169 {dimension_numbers = #tpu.dot_dimension_numbers<[0], [0], [1], [1], [0, 1, 1, 1], [], []>} : vector<32x5xf32>, vector<32x128xf32>, vector<5x128xf32> -> vector<5x128xf32>
    %cst_170 = arith.constant 1.000000e-03 : f32
    %270 = vector.broadcast %cst_170 : f32 to vector<5x128xf32>
    %271 = arith.mulf %270, %241 : vector<5x128xf32>
    %272 = arith.addf %269, %271 : vector<5x128xf32>
    %cst_171 = arith.constant dense<0.000000e+00> : vector<5xf32>
    %273 = vector.multi_reduction <add>, %267, %cst_171 [0] : vector<32x5xf32> to vector<5xf32>
    %274 = vector.shape_cast %273 : vector<5xf32> to vector<1x5xf32>
    %cst_172 = arith.constant 1.000000e-03 : f32
    %275 = vector.broadcast %cst_172 : f32 to vector<1x5xf32>
    %276 = arith.mulf %275, %242 : vector<1x5xf32>
    %277 = arith.addf %274, %276 : vector<1x5xf32>
    %c0_173 = arith.constant 0 : index
    %c0_174 = arith.constant 0 : index
    %278 = vector.load %arg10[%c0_173, %c0_174] : memref<5x128xf32, #tpu.memory_space<vmem>>, vector<5x128xf32>
    %cst_175 = arith.constant 0.899999976 : f32
    %279 = vector.broadcast %cst_175 : f32 to vector<5x128xf32>
    %280 = arith.mulf %279, %278 : vector<5x128xf32>
    %cst_176 = arith.constant 1.000000e-01 : f32
    %281 = vector.broadcast %cst_176 : f32 to vector<5x128xf32>
    %282 = arith.mulf %281, %272 : vector<5x128xf32>
    %283 = arith.addf %280, %282 : vector<5x128xf32>
    %c0_177 = arith.constant 0 : index
    %c0_178 = arith.constant 0 : index
    %284 = vector.load %arg11[%c0_177, %c0_178] : memref<1x5xf32, #tpu.memory_space<vmem>>, vector<1x5xf32>
    %cst_179 = arith.constant 0.899999976 : f32
    %285 = vector.broadcast %cst_179 : f32 to vector<1x5xf32>
    %286 = arith.mulf %285, %284 : vector<1x5xf32>
    %cst_180 = arith.constant 1.000000e-01 : f32
    %287 = vector.broadcast %cst_180 : f32 to vector<1x5xf32>
    %288 = arith.mulf %287, %277 : vector<1x5xf32>
    %289 = arith.addf %286, %288 : vector<1x5xf32>
    %c0_181 = arith.constant 0 : index
    %c0_182 = arith.constant 0 : index
    %290 = vector.load %arg10[%c0_181, %c0_182] : memref<5x128xf32, #tpu.memory_space<vmem>>, vector<5x128xf32>
    tpu.vector_store %arg10[%c0_181, %c0_182], %283 {strides = array<i32>} : memref<5x128xf32, #tpu.memory_space<vmem>>, vector<5x128xf32>,
    %c0_183 = arith.constant 0 : index
    %c0_184 = arith.constant 0 : index
    %291 = vector.load %arg11[%c0_183, %c0_184] : memref<1x5xf32, #tpu.memory_space<vmem>>, vector<1x5xf32>
    tpu.vector_store %arg11[%c0_183, %c0_184], %289 {strides = array<i32>} : memref<1x5xf32, #tpu.memory_space<vmem>>, vector<1x5xf32>,
    %cst_185 = arith.constant 0.00999999977 : f32
    %292 = vector.broadcast %cst_185 : f32 to vector<5x128xf32>
    %293 = arith.mulf %292, %283 : vector<5x128xf32>
    %294 = arith.subf %241, %293 : vector<5x128xf32>
    %c0_186 = arith.constant 0 : index
    %c0_187 = arith.constant 0 : index
    %295 = vector.load %arg8[%c0_186, %c0_187] : memref<5x128xf32, #tpu.memory_space<vmem>>, vector<5x128xf32>
    tpu.vector_store %arg8[%c0_186, %c0_187], %294 {strides = array<i32>} : memref<5x128xf32, #tpu.memory_space<vmem>>, vector<5x128xf32>,
    %cst_188 = arith.constant 0.00999999977 : f32
    %296 = vector.broadcast %cst_188 : f32 to vector<1x5xf32>
    %297 = arith.mulf %296, %289 : vector<1x5xf32>
    %298 = arith.subf %242, %297 : vector<1x5xf32>
    %c0_189 = arith.constant 0 : index
    %c0_190 = arith.constant 0 : index
    %299 = vector.load %arg9[%c0_189, %c0_190] : memref<1x5xf32, #tpu.memory_space<vmem>>, vector<1x5xf32>
    tpu.vector_store %arg9[%c0_189, %c0_190], %298 {strides = array<i32>} : memref<1x5xf32, #tpu.memory_space<vmem>>, vector<1x5xf32>,
    %c0_191 = arith.constant 0 : index
    %c0_192 = arith.constant 0 : index
    %300 = vector.load %arg8[%c0_191, %c0_192] : memref<5x128xf32, #tpu.memory_space<vmem>>, vector<5x128xf32>
    %c0_193 = arith.constant 0 : index
    %c0_194 = arith.constant 0 : index
    %301 = vector.load %arg9[%c0_193, %c0_194] : memref<1x5xf32, #tpu.memory_space<vmem>>, vector<1x5xf32>
    %c0_195 = arith.constant 0 : index
    %c0_196 = arith.constant 0 : index
    %302 = vector.load %arg2[%c0_195, %c0_196] : memref<32x128xf32, #tpu.memory_space<vmem>>, vector<32x128xf32>
    %cst_197 = arith.constant dense<0.000000e+00> : vector<32x5xf32>
    %303 = tpu.matmul %302, %300, %cst_197 {dimension_numbers = #tpu.dot_dimension_numbers<[1], [1], [0], [0], [0, 0, 1, 0], [], []>} : vector<32x128xf32>, vector<5x128xf32>, vector<32x5xf32> -> vector<32x5xf32>
    %304 = vector.broadcast %301 : vector<1x5xf32> to vector<32x5xf32>
    %305 = arith.addf %303, %304 : vector<32x5xf32>
    %cst_198 = arith.constant dense<0xFF800000> : vector<32xf32>
    %306 = vector.multi_reduction <maximumf>, %305, %cst_198 [1] : vector<32x5xf32> to vector<32xf32>
    %307 = vector.shape_cast %306 : vector<32xf32> to vector<32x1xf32>
    %308 = vector.broadcast %307 : vector<32x1xf32> to vector<32x5xf32>
    %309 = arith.subf %305, %308 : vector<32x5xf32>
    %310 = math.exp %309 : vector<32x5xf32>
    %cst_199 = arith.constant dense<0.000000e+00> : vector<32xf32>
    %311 = vector.multi_reduction <add>, %310, %cst_199 [1] : vector<32x5xf32> to vector<32xf32>
    %312 = vector.shape_cast %311 : vector<32xf32> to vector<32x1xf32>
    %313 = tpu.reciprocal %312 {approx = true} : vector<32x1xf32> -> vector<32x1xf32>
    %314 = vector.broadcast %313 : vector<32x1xf32> to vector<32x5xf32>
    %315 = arith.mulf %310, %314 : vector<32x5xf32>
    %c0_200 = arith.constant 0 : index
    %c0_201 = arith.constant 0 : index
    %316 = vector.load %arg1[%c0_200, %c0_201] : memref<32x1xi32, #tpu.memory_space<vmem>>, vector<32x1xi32>
    %c5_i32 = arith.constant 5 : i32
    %317 = vector.broadcast %c5_i32 : i32 to vector<32x1xi32>
    %318 = arith.cmpi eq, %316, %317 : vector<32x1xi32>
    %319 = arith.extui %318 : vector<32x1xi1> to vector<32x1xi32>
    %320 = arith.sitofp %319 : vector<32x1xi32> to vector<32x1xf32>
    %c0_202 = arith.constant 0 : index
    %c0_203 = arith.constant 0 : index
    %321 = vector.load %arg3[%c0_202, %c0_203] : memref<32x5xf32, #tpu.memory_space<vmem>>, vector<32x5xf32>
    %322 = arith.subf %315, %321 : vector<32x5xf32>
    %cst_204 = arith.constant 2.500000e-01 : f32
    %323 = vector.broadcast %cst_204 : f32 to vector<32x1xf32>
    %324 = arith.mulf %320, %323 : vector<32x1xf32>
    %325 = vector.broadcast %324 : vector<32x1xf32> to vector<32x5xf32>
    %326 = arith.mulf %322, %325 : vector<32x5xf32>
    %c0_205 = arith.constant 0 : index
    %c0_206 = arith.constant 0 : index
    %327 = vector.load %arg2[%c0_205, %c0_206] : memref<32x128xf32, #tpu.memory_space<vmem>>, vector<32x128xf32>
    %cst_207 = arith.constant dense<0.000000e+00> : vector<5x128xf32>
    %328 = tpu.matmul %326, %327, %cst_207 {dimension_numbers = #tpu.dot_dimension_numbers<[0], [0], [1], [1], [0, 1, 1, 1], [], []>} : vector<32x5xf32>, vector<32x128xf32>, vector<5x128xf32> -> vector<5x128xf32>
    %cst_208 = arith.constant 1.000000e-03 : f32
    %329 = vector.broadcast %cst_208 : f32 to vector<5x128xf32>
    %330 = arith.mulf %329, %300 : vector<5x128xf32>
    %331 = arith.addf %328, %330 : vector<5x128xf32>
    %cst_209 = arith.constant dense<0.000000e+00> : vector<5xf32>
    %332 = vector.multi_reduction <add>, %326, %cst_209 [0] : vector<32x5xf32> to vector<5xf32>
    %333 = vector.shape_cast %332 : vector<5xf32> to vector<1x5xf32>
    %cst_210 = arith.constant 1.000000e-03 : f32
    %334 = vector.broadcast %cst_210 : f32 to vector<1x5xf32>
    %335 = arith.mulf %334, %301 : vector<1x5xf32>
    %336 = arith.addf %333, %335 : vector<1x5xf32>
    %c0_211 = arith.constant 0 : index
    %c0_212 = arith.constant 0 : index
    %337 = vector.load %arg10[%c0_211, %c0_212] : memref<5x128xf32, #tpu.memory_space<vmem>>, vector<5x128xf32>
    %cst_213 = arith.constant 0.899999976 : f32
    %338 = vector.broadcast %cst_213 : f32 to vector<5x128xf32>
    %339 = arith.mulf %338, %337 : vector<5x128xf32>
    %cst_214 = arith.constant 1.000000e-01 : f32
    %340 = vector.broadcast %cst_214 : f32 to vector<5x128xf32>
    %341 = arith.mulf %340, %331 : vector<5x128xf32>
    %342 = arith.addf %339, %341 : vector<5x128xf32>
    %c0_215 = arith.constant 0 : index
    %c0_216 = arith.constant 0 : index
    %343 = vector.load %arg11[%c0_215, %c0_216] : memref<1x5xf32, #tpu.memory_space<vmem>>, vector<1x5xf32>
    %cst_217 = arith.constant 0.899999976 : f32
    %344 = vector.broadcast %cst_217 : f32 to vector<1x5xf32>
    %345 = arith.mulf %344, %343 : vector<1x5xf32>
    %cst_218 = arith.constant 1.000000e-01 : f32
    %346 = vector.broadcast %cst_218 : f32 to vector<1x5xf32>
    %347 = arith.mulf %346, %336 : vector<1x5xf32>
    %348 = arith.addf %345, %347 : vector<1x5xf32>
    %c0_219 = arith.constant 0 : index
    %c0_220 = arith.constant 0 : index
    %349 = vector.load %arg10[%c0_219, %c0_220] : memref<5x128xf32, #tpu.memory_space<vmem>>, vector<5x128xf32>
    tpu.vector_store %arg10[%c0_219, %c0_220], %342 {strides = array<i32>} : memref<5x128xf32, #tpu.memory_space<vmem>>, vector<5x128xf32>,
    %c0_221 = arith.constant 0 : index
    %c0_222 = arith.constant 0 : index
    %350 = vector.load %arg11[%c0_221, %c0_222] : memref<1x5xf32, #tpu.memory_space<vmem>>, vector<1x5xf32>
    tpu.vector_store %arg11[%c0_221, %c0_222], %348 {strides = array<i32>} : memref<1x5xf32, #tpu.memory_space<vmem>>, vector<1x5xf32>,
    %cst_223 = arith.constant 0.00999999977 : f32
    %351 = vector.broadcast %cst_223 : f32 to vector<5x128xf32>
    %352 = arith.mulf %351, %342 : vector<5x128xf32>
    %353 = arith.subf %300, %352 : vector<5x128xf32>
    %c0_224 = arith.constant 0 : index
    %c0_225 = arith.constant 0 : index
    %354 = vector.load %arg8[%c0_224, %c0_225] : memref<5x128xf32, #tpu.memory_space<vmem>>, vector<5x128xf32>
    tpu.vector_store %arg8[%c0_224, %c0_225], %353 {strides = array<i32>} : memref<5x128xf32, #tpu.memory_space<vmem>>, vector<5x128xf32>,
    %cst_226 = arith.constant 0.00999999977 : f32
    %355 = vector.broadcast %cst_226 : f32 to vector<1x5xf32>
    %356 = arith.mulf %355, %348 : vector<1x5xf32>
    %357 = arith.subf %301, %356 : vector<1x5xf32>
    %c0_227 = arith.constant 0 : index
    %c0_228 = arith.constant 0 : index
    %358 = vector.load %arg9[%c0_227, %c0_228] : memref<1x5xf32, #tpu.memory_space<vmem>>, vector<1x5xf32>
    tpu.vector_store %arg9[%c0_227, %c0_228], %357 {strides = array<i32>} : memref<1x5xf32, #tpu.memory_space<vmem>>, vector<1x5xf32>,
    %c0_229 = arith.constant 0 : index
    %c0_230 = arith.constant 0 : index
    %359 = vector.load %arg8[%c0_229, %c0_230] : memref<5x128xf32, #tpu.memory_space<vmem>>, vector<5x128xf32>
    %c0_231 = arith.constant 0 : index
    %c0_232 = arith.constant 0 : index
    %360 = vector.load %arg9[%c0_231, %c0_232] : memref<1x5xf32, #tpu.memory_space<vmem>>, vector<1x5xf32>
    %c0_233 = arith.constant 0 : index
    %c0_234 = arith.constant 0 : index
    %361 = vector.load %arg2[%c0_233, %c0_234] : memref<32x128xf32, #tpu.memory_space<vmem>>, vector<32x128xf32>
    %cst_235 = arith.constant dense<0.000000e+00> : vector<32x5xf32>
    %362 = tpu.matmul %361, %359, %cst_235 {dimension_numbers = #tpu.dot_dimension_numbers<[1], [1], [0], [0], [0, 0, 1, 0], [], []>} : vector<32x128xf32>, vector<5x128xf32>, vector<32x5xf32> -> vector<32x5xf32>
    %363 = vector.broadcast %360 : vector<1x5xf32> to vector<32x5xf32>
    %364 = arith.addf %362, %363 : vector<32x5xf32>
    %cst_236 = arith.constant dense<0xFF800000> : vector<32xf32>
    %365 = vector.multi_reduction <maximumf>, %364, %cst_236 [1] : vector<32x5xf32> to vector<32xf32>
    %366 = vector.shape_cast %365 : vector<32xf32> to vector<32x1xf32>
    %367 = vector.broadcast %366 : vector<32x1xf32> to vector<32x5xf32>
    %368 = arith.subf %364, %367 : vector<32x5xf32>
    %369 = math.exp %368 : vector<32x5xf32>
    %cst_237 = arith.constant dense<0.000000e+00> : vector<32xf32>
    %370 = vector.multi_reduction <add>, %369, %cst_237 [1] : vector<32x5xf32> to vector<32xf32>
    %371 = vector.shape_cast %370 : vector<32xf32> to vector<32x1xf32>
    %372 = tpu.reciprocal %371 {approx = true} : vector<32x1xf32> -> vector<32x1xf32>
    %373 = vector.broadcast %372 : vector<32x1xf32> to vector<32x5xf32>
    %374 = arith.mulf %369, %373 : vector<32x5xf32>
    %c0_238 = arith.constant 0 : index
    %c0_239 = arith.constant 0 : index
    %375 = vector.load %arg1[%c0_238, %c0_239] : memref<32x1xi32, #tpu.memory_space<vmem>>, vector<32x1xi32>
    %c6_i32 = arith.constant 6 : i32
    %376 = vector.broadcast %c6_i32 : i32 to vector<32x1xi32>
    %377 = arith.cmpi eq, %375, %376 : vector<32x1xi32>
    %378 = arith.extui %377 : vector<32x1xi1> to vector<32x1xi32>
    %379 = arith.sitofp %378 : vector<32x1xi32> to vector<32x1xf32>
    %c0_240 = arith.constant 0 : index
    %c0_241 = arith.constant 0 : index
    %380 = vector.load %arg3[%c0_240, %c0_241] : memref<32x5xf32, #tpu.memory_space<vmem>>, vector<32x5xf32>
    %381 = arith.subf %374, %380 : vector<32x5xf32>
    %cst_242 = arith.constant 1.000000e+00 : f32
    %382 = vector.broadcast %cst_242 : f32 to vector<32x1xf32>
    %383 = arith.mulf %379, %382 : vector<32x1xf32>
    %384 = vector.broadcast %383 : vector<32x1xf32> to vector<32x5xf32>
    %385 = arith.mulf %381, %384 : vector<32x5xf32>
    %c0_243 = arith.constant 0 : index
    %c0_244 = arith.constant 0 : index
    %386 = vector.load %arg2[%c0_243, %c0_244] : memref<32x128xf32, #tpu.memory_space<vmem>>, vector<32x128xf32>
    %cst_245 = arith.constant dense<0.000000e+00> : vector<5x128xf32>
    %387 = tpu.matmul %385, %386, %cst_245 {dimension_numbers = #tpu.dot_dimension_numbers<[0], [0], [1], [1], [0, 1, 1, 1], [], []>} : vector<32x5xf32>, vector<32x128xf32>, vector<5x128xf32> -> vector<5x128xf32>
    %cst_246 = arith.constant 1.000000e-03 : f32
    %388 = vector.broadcast %cst_246 : f32 to vector<5x128xf32>
    %389 = arith.mulf %388, %359 : vector<5x128xf32>
    %390 = arith.addf %387, %389 : vector<5x128xf32>
    %cst_247 = arith.constant dense<0.000000e+00> : vector<5xf32>
    %391 = vector.multi_reduction <add>, %385, %cst_247 [0] : vector<32x5xf32> to vector<5xf32>
    %392 = vector.shape_cast %391 : vector<5xf32> to vector<1x5xf32>
    %cst_248 = arith.constant 1.000000e-03 : f32
    %393 = vector.broadcast %cst_248 : f32 to vector<1x5xf32>
    %394 = arith.mulf %393, %360 : vector<1x5xf32>
    %395 = arith.addf %392, %394 : vector<1x5xf32>
    %c0_249 = arith.constant 0 : index
    %c0_250 = arith.constant 0 : index
    %396 = vector.load %arg10[%c0_249, %c0_250] : memref<5x128xf32, #tpu.memory_space<vmem>>, vector<5x128xf32>
    %cst_251 = arith.constant 0.899999976 : f32
    %397 = vector.broadcast %cst_251 : f32 to vector<5x128xf32>
    %398 = arith.mulf %397, %396 : vector<5x128xf32>
    %cst_252 = arith.constant 1.000000e-01 : f32
    %399 = vector.broadcast %cst_252 : f32 to vector<5x128xf32>
    %400 = arith.mulf %399, %390 : vector<5x128xf32>
    %401 = arith.addf %398, %400 : vector<5x128xf32>
    %c0_253 = arith.constant 0 : index
    %c0_254 = arith.constant 0 : index
    %402 = vector.load %arg11[%c0_253, %c0_254] : memref<1x5xf32, #tpu.memory_space<vmem>>, vector<1x5xf32>
    %cst_255 = arith.constant 0.899999976 : f32
    %403 = vector.broadcast %cst_255 : f32 to vector<1x5xf32>
    %404 = arith.mulf %403, %402 : vector<1x5xf32>
    %cst_256 = arith.constant 1.000000e-01 : f32
    %405 = vector.broadcast %cst_256 : f32 to vector<1x5xf32>
    %406 = arith.mulf %405, %395 : vector<1x5xf32>
    %407 = arith.addf %404, %406 : vector<1x5xf32>
    %c0_257 = arith.constant 0 : index
    %c0_258 = arith.constant 0 : index
    %408 = vector.load %arg10[%c0_257, %c0_258] : memref<5x128xf32, #tpu.memory_space<vmem>>, vector<5x128xf32>
    tpu.vector_store %arg10[%c0_257, %c0_258], %401 {strides = array<i32>} : memref<5x128xf32, #tpu.memory_space<vmem>>, vector<5x128xf32>,
    %c0_259 = arith.constant 0 : index
    %c0_260 = arith.constant 0 : index
    %409 = vector.load %arg11[%c0_259, %c0_260] : memref<1x5xf32, #tpu.memory_space<vmem>>, vector<1x5xf32>
    tpu.vector_store %arg11[%c0_259, %c0_260], %407 {strides = array<i32>} : memref<1x5xf32, #tpu.memory_space<vmem>>, vector<1x5xf32>,
    %cst_261 = arith.constant 0.00999999977 : f32
    %410 = vector.broadcast %cst_261 : f32 to vector<5x128xf32>
    %411 = arith.mulf %410, %401 : vector<5x128xf32>
    %412 = arith.subf %359, %411 : vector<5x128xf32>
    %c0_262 = arith.constant 0 : index
    %c0_263 = arith.constant 0 : index
    %413 = vector.load %arg8[%c0_262, %c0_263] : memref<5x128xf32, #tpu.memory_space<vmem>>, vector<5x128xf32>
    tpu.vector_store %arg8[%c0_262, %c0_263], %412 {strides = array<i32>} : memref<5x128xf32, #tpu.memory_space<vmem>>, vector<5x128xf32>,
    %cst_264 = arith.constant 0.00999999977 : f32
    %414 = vector.broadcast %cst_264 : f32 to vector<1x5xf32>
    %415 = arith.mulf %414, %407 : vector<1x5xf32>
    %416 = arith.subf %360, %415 : vector<1x5xf32>
    %c0_265 = arith.constant 0 : index
    %c0_266 = arith.constant 0 : index
    %417 = vector.load %arg9[%c0_265, %c0_266] : memref<1x5xf32, #tpu.memory_space<vmem>>, vector<1x5xf32>
    tpu.vector_store %arg9[%c0_265, %c0_266], %416 {strides = array<i32>} : memref<1x5xf32, #tpu.memory_space<vmem>>, vector<1x5xf32>,
    %c99_i32 = arith.constant 99 : i32
    %418 = arith.cmpi eq, %arg0, %c99_i32 : i32
    %419 = arith.extui %418 : i1 to i32
    %c0_i32_267 = arith.constant 0 : i32
    %420 = arith.cmpi ne, %419, %c0_i32_267 : i32
    scf.if %420 {
      %c0_268 = arith.constant 0 : index
      %c0_269 = arith.constant 0 : index
      %421 = vector.load %arg6[%c0_268, %c0_269] : memref<15x128xf32, #tpu.memory_space<vmem>>, vector<15x128xf32>
      %c0_270 = arith.constant 0 : index
      %c0_271 = arith.constant 0 : index
      %422 = vector.load %arg8[%c0_270, %c0_271] : memref<5x128xf32, #tpu.memory_space<vmem>>, vector<5x128xf32>
      %cst_272 = arith.constant dense<0.000000e+00> : vector<15x5xf32>
      %423 = tpu.matmul %421, %422, %cst_272 {dimension_numbers = #tpu.dot_dimension_numbers<[1], [1], [0], [0], [0, 0, 1, 0], [], []>} : vector<15x128xf32>, vector<5x128xf32>, vector<15x5xf32> -> vector<15x5xf32>
      %c0_273 = arith.constant 0 : index
      %c0_274 = arith.constant 0 : index
      %424 = vector.load %arg9[%c0_273, %c0_274] : memref<1x5xf32, #tpu.memory_space<vmem>>, vector<1x5xf32>
      %425 = vector.broadcast %424 : vector<1x5xf32> to vector<15x5xf32>
      %426 = arith.addf %423, %425 : vector<15x5xf32>
      %c0_275 = arith.constant 0 : index
      %c0_276 = arith.constant 0 : index
      %427 = vector.load %arg7[%c0_275, %c0_276] : memref<15x5xf32, #tpu.memory_space<vmem>>, vector<15x5xf32>
      tpu.vector_store %arg7[%c0_275, %c0_276], %426 {strides = array<i32>} : memref<15x5xf32, #tpu.memory_space<vmem>>, vector<15x5xf32>,
    } else {
    }
    return
  }
  func.func @transform_0(%arg0: i32) -> (i32, i32) {
    %c0_i32 = arith.constant 0 : i32
    %c0_i32_0 = arith.constant 0 : i32
    return %arg0, %c0_i32 : i32, i32
  }
  func.func @transform_1(%arg0: i32) -> (i32, i32) {
    %c0_i32 = arith.constant 0 : i32
    %c0_i32_0 = arith.constant 0 : i32
    %c0_i32_1 = arith.constant 0 : i32
    return %c0_i32, %c0_i32_0 : i32, i32
  }
  func.func @transform_2(%arg0: i32) -> (i32, i32) {
    %c0_i32 = arith.constant 0 : i32
    %c0_i32_0 = arith.constant 0 : i32
    %c0_i32_1 = arith.constant 0 : i32
    return %c0_i32, %c0_i32_0 : i32, i32
  }
  func.func @transform_3(%arg0: i32) -> (i32, i32) {
    %c0_i32 = arith.constant 0 : i32
    %c0_i32_0 = arith.constant 0 : i32
    %c0_i32_1 = arith.constant 0 : i32
    return %c0_i32, %c0_i32_0 : i32, i32
  }
  func.func @transform_4(%arg0: i32) -> (i32, i32) {
    %c0_i32 = arith.constant 0 : i32
    %c0_i32_0 = arith.constant 0 : i32
    %c0_i32_1 = arith.constant 0 : i32
    return %c0_i32, %c0_i32_0 : i32, i32
  }
  func.func @transform_5(%arg0: i32) -> (i32, i32) {
    %c0_i32 = arith.constant 0 : i32
    %c0_i32_0 = arith.constant 0 : i32
    %c0_i32_1 = arith.constant 0 : i32
    return %c0_i32, %c0_i32_0 : i32, i32
  }
  func.func @transform_6(%arg0: i32) -> (i32, i32) {
    %c0_i32 = arith.constant 0 : i32
    %c0_i32_0 = arith.constant 0 : i32
    %c0_i32_1 = arith.constant 0 : i32
    return %c0_i32, %c0_i32_0 : i32, i32
  }
}

</mosaic_0001>

<llo_original>
// kernel: tpu_custom_call.1
$region0: #{tpu_custom_call.1}
  #allocation0 [shape = 'u32[]', space=smem, size = 0x4, offset = 0x4, fixed_abs, tag = 'smem constant byte address 0x4 - core index']
  #allocation1 [shape = 'u32[144,128]{1,0:T(1,128)}', space=vmem, size = 0x12000, scoped, tag = 'internal scratch']
  #allocation2 [shape = 'f32[5,128]{1,0:T(8,128)}', space=vmem, size = 0x1000, scoped, tag = 'scratch operand']
  #allocation3 [shape = 'f32[1,5]{1,0:T(1,128)}', space=vmem, size = 0x200, scoped, tag = 'scratch operand']
  #allocation4 [shape = 'f32[5,128]{1,0:T(8,128)}', space=vmem, size = 0x1000, scoped, tag = 'scratch operand']
  #allocation5 [shape = 'f32[1,5]{1,0:T(1,128)}', space=vmem, size = 0x200, scoped, tag = 'scratch operand']
  %s0 = inlined_call_operand.vmem [shape: s32[3200,1], index: 0, kind: input, shape index: {}]
  %s1 = inlined_call_operand.vmem [shape: f32[32,128], index: 1, kind: input, shape index: {}]
  %s2 = inlined_call_operand.vmem [shape: f32[32,5], index: 2, kind: input, shape index: {}]
  %s3 = inlined_call_operand.vmem [shape: f32[5,128], index: 3, kind: input, shape index: {}]
  %s4 = inlined_call_operand.vmem [shape: f32[1,5], index: 4, kind: input, shape index: {}]
  %s5 = inlined_call_operand.vmem [shape: f32[15,128], index: 5, kind: input, shape index: {}]
  %s6 = inlined_call_operand.vmem [shape: f32[15,5], index: 6, kind: output, shape index: {}]
  %s7 = sld [smem:[#allocation0]]
  $region65: #{tpu_custom_call.1} parent=0
    _
  %s9 = ssub.s32 1, %s7
  %s10 = scalar_select 0, %s9, %s7
  loop: start=0, step=1, limit=102
  $region2: #{tpu_custom_call.1} parent=0 // loop_pre_header
    _
  $region3: #{tpu_custom_call.1} parent=0 // loop_header
    %s12 = sphi 0, %s16
    %p13 = scmp.ge.s32.totalorder %s12, 102
    %s22 = sphi 0, %s24
    %s25 = sphi 0, %s22
    %s26 = sphi 0, %s25
    %s42 = sphi 0, %s26
    %s46 = sphi 0, %s46
    %s48 = sphi 0, %s46
    %s49 = sphi 0, %s48
    %s63 = sphi 0, %s49
    %s67 = sphi 0, %s67
    %s69 = sphi 0, %s67
    %s70 = sphi 0, %s69
    %s84 = sphi 0, %s70
    %s88 = sphi 0, %s88
    %s90 = sphi 0, %s88
    %s91 = sphi 0, %s90
    %s105 = sphi 0, %s91
    %s109 = sphi 0, %s109
    %s111 = sphi 0, %s109
    %s112 = sphi 0, %s111
    %s126 = sphi 0, %s112
    %s130 = sphi 0, %s130
    %s132 = sphi 0, %s130
    %s133 = sphi 0, %s132
    %s147 = sphi 0, %s133
    %s151 = sphi 0, %s151
    %s153 = sphi 0, %s151
    %s154 = sphi 0, %s153
    %s168 = sphi 0, %s154
  $region4: #{tpu_custom_call.1} parent=0 // loop_header_branch
    %15 = sbr.rel (%p13) target = $region8
  $region5: #{tpu_custom_call.1} parent=0 // loop_body
    %s17 = ssub.s32 %s12, 1
    %s18 = ssub.s32 %s12, 2
    %s19 = sadd.s32 %s12, 1
    %s20 = ssub.s32 %s12, %s19
    %p21 = scmp.eq.s32.totalorder %s20, 0
    %s23 = sadd.s32 %s22, 1
    %s24 = scalar_select %p21, %s22, %s23
    %p27 = pneg %p21
    %p28 = scmp.eq.s32.totalorder %s12, 99
    %p29 = por %p27, %p28
    %p30 = scmp.ne.s32.totalorder %s22, %s25
    %p31 = scmp.eq.s32.totalorder %s12, 0
    %p32 = por %p30, %p31
    %p33 = scmp.ne.s32.totalorder %s22, %s25
    %p34 = scmp.eq.s32.totalorder %s17, 99
    %p35 = por %p33, %p34
    %p36 = scmp.ne.s32.totalorder %s25, %s26
    %p37 = scmp.eq.s32.totalorder %s17, 0
    %p38 = por %p36, %p37
    %p39 = scmp.ne.s32.totalorder %s25, %s26
    %p40 = scmp.eq.s32.totalorder %s18, 99
    %p41 = por %p39, %p40
    %p43 = scmp.ne.s32.totalorder %s26, %s42
    %p44 = scmp.eq.s32.totalorder %s18, 0
    %p45 = por %p43, %p44
    %s47 = sadd.s32 %s46, 1
    %p50 = scmp.eq.s32.totalorder %s12, 99
    %p51 = scmp.ne.s32.totalorder %s46, %s48
    %p52 = scmp.eq.s32.totalorder %s12, 0
    %p53 = por %p51, %p52
    %p54 = scmp.ne.s32.totalorder %s46, %s48
    %p55 = scmp.eq.s32.totalorder %s17, 99
    %p56 = por %p54, %p55
    %p57 = scmp.ne.s32.totalorder %s48, %s49
    %p58 = scmp.eq.s32.totalorder %s17, 0
    %p59 = por %p57, %p58
    %p60 = scmp.ne.s32.totalorder %s48, %s49
    %p61 = scmp.eq.s32.totalorder %s18, 99
    %p62 = por %p60, %p61
    %p64 = scmp.ne.s32.totalorder %s49, %s63
    %p65 = scmp.eq.s32.totalorder %s18, 0
    %p66 = por %p64, %p65
    %s68 = sadd.s32 %s67, 1
    %p71 = scmp.eq.s32.totalorder %s12, 99
    %p72 = scmp.ne.s32.totalorder %s67, %s69
    %p73 = scmp.eq.s32.totalorder %s12, 0
    %p74 = por %p72, %p73
    %p75 = scmp.ne.s32.totalorder %s67, %s69
    %p76 = scmp.eq.s32.totalorder %s17, 99
    %p77 = por %p75, %p76
    %p78 = scmp.ne.s32.totalorder %s69, %s70
    %p79 = scmp.eq.s32.totalorder %s17, 0
    %p80 = por %p78, %p79
    %p81 = scmp.ne.s32.totalorder %s69, %s70
    %p82 = scmp.eq.s32.totalorder %s18, 99
    %p83 = por %p81, %p82
    %p85 = scmp.ne.s32.totalorder %s70, %s84
    %p86 = scmp.eq.s32.totalorder %s18, 0
    %p87 = por %p85, %p86
    %s89 = sadd.s32 %s88, 1
    %p92 = scmp.eq.s32.totalorder %s12, 99
    %p93 = scmp.ne.s32.totalorder %s88, %s90
    %p94 = scmp.eq.s32.totalorder %s12, 0
    %p95 = por %p93, %p94
    %p96 = scmp.ne.s32.totalorder %s88, %s90
    %p97 = scmp.eq.s32.totalorder %s17, 99
    %p98 = por %p96, %p97
    %p99 = scmp.ne.s32.totalorder %s90, %s91
    %p100 = scmp.eq.s32.totalorder %s17, 0
    %p101 = por %p99, %p100
    %p102 = scmp.ne.s32.totalorder %s90, %s91
    %p103 = scmp.eq.s32.totalorder %s18, 99
    %p104 = por %p102, %p103
    %p106 = scmp.ne.s32.totalorder %s91, %s105
    %p107 = scmp.eq.s32.totalorder %s18, 0
    %p108 = por %p106, %p107
    %s110 = sadd.s32 %s109, 1
    %p113 = scmp.eq.s32.totalorder %s12, 99
    %p114 = scmp.ne.s32.totalorder %s109, %s111
    %p115 = scmp.eq.s32.totalorder %s12, 0
    %p116 = por %p114, %p115
    %p117 = scmp.ne.s32.totalorder %s109, %s111
    %p118 = scmp.eq.s32.totalorder %s17, 99
    %p119 = por %p117, %p118
    %p120 = scmp.ne.s32.totalorder %s111, %s112
    %p121 = scmp.eq.s32.totalorder %s17, 0
    %p122 = por %p120, %p121
    %p123 = scmp.ne.s32.totalorder %s111, %s112
    %p124 = scmp.eq.s32.totalorder %s18, 99
    %p125 = por %p123, %p124
    %p127 = scmp.ne.s32.totalorder %s112, %s126
    %p128 = scmp.eq.s32.totalorder %s18, 0
    %p129 = por %p127, %p128
    %s131 = sadd.s32 %s130, 1
    %p134 = scmp.eq.s32.totalorder %s12, 99
    %p135 = scmp.ne.s32.totalorder %s130, %s132
    %p136 = scmp.eq.s32.totalorder %s12, 0
    %p137 = por %p135, %p136
    %p138 = scmp.ne.s32.totalorder %s130, %s132
    %p139 = scmp.eq.s32.totalorder %s17, 99
    %p140 = por %p138, %p139
    %p141 = scmp.ne.s32.totalorder %s132, %s133
    %p142 = scmp.eq.s32.totalorder %s17, 0
    %p143 = por %p141, %p142
    %p144 = scmp.ne.s32.totalorder %s132, %s133
    %p145 = scmp.eq.s32.totalorder %s18, 99
    %p146 = por %p144, %p145
    %p148 = scmp.ne.s32.totalorder %s133, %s147
    %p149 = scmp.eq.s32.totalorder %s18, 0
    %p150 = por %p148, %p149
    %s152 = sadd.s32 %s151, 1
    %p155 = scmp.eq.s32.totalorder %s12, 99
    %p156 = scmp.ne.s32.totalorder %s151, %s153
    %p157 = scmp.eq.s32.totalorder %s12, 0
    %p158 = por %p156, %p157
    %p159 = scmp.ne.s32.totalorder %s151, %s153
    %p160 = scmp.eq.s32.totalorder %s17, 99
    %p161 = por %p159, %p160
    %p162 = scmp.ne.s32.totalorder %s153, %s154
    %p163 = scmp.eq.s32.totalorder %s17, 0
    %p164 = por %p162, %p163
    %p165 = scmp.ne.s32.totalorder %s153, %s154
    %p166 = scmp.eq.s32.totalorder %s18, 99
    %p167 = por %p165, %p166
    %p169 = scmp.ne.s32.totalorder %s154, %s168
    %p170 = scmp.eq.s32.totalorder %s18, 0
    %p171 = por %p169, %p170
    %p172 = scmp.le.s32.totalorder 1, %s12
    %p173 = scmp.lt.s32.totalorder %s12, 101
    %p174 = pnand %p172, %p173
    %p175 = pneg %p174
    // Predicated region
    $region9: #{tpu_custom_call.1} parent=5 // pred_check
      _
    $region10: #{tpu_custom_call.1} parent=5 // pred_check_branch
      %177 = sbr.rel (%p174) target = $region12
    $region11: #{tpu_custom_call.1} parent=5 // pred_region
      %s178 = ssub.s32 %s12, 1
      // Predicated region
      $region13: #{tpu_custom_call.1} parent=11 // pred_check
        %p179 = pneg %p59
      $region14: #{tpu_custom_call.1} parent=11 // pred_check_branch
        %181 = sbr.rel (%p179) target = $region16
      $region15: #{tpu_custom_call.1} parent=11 // pred_region
        _
      $region16: #{tpu_custom_call.1} parent=11 // pred_fallthru
        _
      // Predicated region
      $region17: #{tpu_custom_call.1} parent=11 // pred_check
        %p182 = pneg %p80
      $region18: #{tpu_custom_call.1} parent=11 // pred_check_branch
        %184 = sbr.rel (%p182) target = $region20
      $region19: #{tpu_custom_call.1} parent=11 // pred_region
        _
      $region20: #{tpu_custom_call.1} parent=11 // pred_fallthru
        _
      // Predicated region
      $region21: #{tpu_custom_call.1} parent=11 // pred_check
        %p185 = pneg %p101
      $region22: #{tpu_custom_call.1} parent=11 // pred_check_branch
        %187 = sbr.rel (%p185) target = $region24
      $region23: #{tpu_custom_call.1} parent=11 // pred_region
        _
      $region24: #{tpu_custom_call.1} parent=11 // pred_fallthru
        _
      // Predicated region
      $region25: #{tpu_custom_call.1} parent=11 // pred_check
        %p188 = pneg %p122
      $region26: #{tpu_custom_call.1} parent=11 // pred_check_branch
        %190 = sbr.rel (%p188) target = $region28
      $region27: #{tpu_custom_call.1} parent=11 // pred_region
        _
      $region28: #{tpu_custom_call.1} parent=11 // pred_fallthru
        _
      // Predicated region
      $region29: #{tpu_custom_call.1} parent=11 // pred_check
        %p191 = pneg %p143
      $region30: #{tpu_custom_call.1} parent=11 // pred_check_branch
        %193 = sbr.rel (%p191) target = $region32
      $region31: #{tpu_custom_call.1} parent=11 // pred_region
        _
      $region32: #{tpu_custom_call.1} parent=11 // pred_fallthru
        _
    $region12: #{tpu_custom_call.1} parent=5 // pred_fallthru
      _
    %p194 = scmp.lt.s32.totalorder %s12, 100
    // Predicated region
    $region33: #{tpu_custom_call.1} parent=5 // pred_check
      %p195 = pneg %p194
    $region34: #{tpu_custom_call.1} parent=5 // pred_check_branch
      %197 = sbr.rel (%p195) target = $region36
    $region35: #{tpu_custom_call.1} parent=5 // pred_region
      // Predicated region
      $region37: #{tpu_custom_call.1} parent=35 // pred_check
        %p198 = pneg %p32
      $region38: #{tpu_custom_call.1} parent=35 // pred_check_branch
        %200 = sbr.rel (%p198) target = $region40
      $region39: #{tpu_custom_call.1} parent=35 // pred_region
        %s201 = smul.u32 4, %s12
        %p202 = scmp.lt.s32.totalorder %s201, 399
        %s203 = scalar_select %p202, %s201, 399
        %s204 = smul.addr %s203, 8
        %s205 = scalar_lea.vmem %s0, %s204
        %s206 = smul.u32 4, %s12
      $region40: #{tpu_custom_call.1} parent=35 // pred_fallthru
        _
    $region36: #{tpu_custom_call.1} parent=5 // pred_fallthru
      _
    %p207 = scmp.le.s32.totalorder 1, %s12
    %p208 = scmp.lt.s32.totalorder %s12, 101
    %p209 = pnand %p207, %p208
    %p210 = pneg %p209
    // Predicated region
    $region41: #{tpu_custom_call.1} parent=5 // pred_check
      _
    $region42: #{tpu_custom_call.1} parent=5 // pred_check_branch
      %212 = sbr.rel (%p209) target = $region44
    $region43: #{tpu_custom_call.1} parent=5 // pred_region
      %s213 = ssub.s32 %s12, 1
      %s214 = smul.u32 4, %s17
      %p215 = scmp.lt.s32.totalorder %s214, 399
      %s216 = scalar_select %p215, %s214, 399
      %s217 = smul.addr %s216, 8
      %s218 = scalar_lea.vmem %s0, %s217
      %p219 = pneg %p38
      %p220 = pneg %p35
      %p221 = pneg %p59
      %p222 = pneg %p56
      %p223 = pneg %p80
      %p224 = pneg %p77
      %p225 = pneg %p101
      %p226 = pneg %p98
      %p227 = pneg %p122
      %p228 = pneg %p119
      %p229 = pneg %p143
      %p230 = pneg %p140
      %p231 = pneg %p164
      %p232 = pneg %p161
      %s233 = smul.u32 4, %s17
      %p234 = scmp.lt.s32.totalorder %s233, 399
      %s235 = scalar_select %p234, %s233, 399
      %s236 = smul.addr %s235, 8
      %s237 = scalar_lea.vmem %s0, %s236
      %s238 = smul.u32 4, %s17
      %p239 = scmp.eq.s32.totalorder %s17, 0
      // Predicated region
      $region45: #{tpu_custom_call.1} parent=43 // pred_check
        %p240 = pneg %p239
      $region46: #{tpu_custom_call.1} parent=43 // pred_check_branch
        %242 = sbr.rel (%p240) target = $region48
      $region47: #{tpu_custom_call.1} parent=43 // pred_region
        %v243 = vld [vmem:[%s3] sm:$0x1f]
        %244 = vst [vmem:[#allocation2] sm:$0x1f] %v243
        %v245 = vld [vmem:[%s4] sm:$0x1]
        %vm246 = vcmask 32768
        %247 = vst.msk [vmem:[#allocation3] sm:$0x1] %vm246, %v245
        %248 = vst [vmem:[#allocation4] sm:$0x1f] 0.0
        %249 = vst.msk [vmem:[#allocation5] sm:$0x1] %vm246, 0.0
      $region48: #{tpu_custom_call.1} parent=43 // pred_fallthru
        _
      %v250 = vld [vmem:[#allocation2] sm:$0x1f]
      %v251 = vld [vmem:[#allocation3] sm:$0x1]
      %v252 = vld [vmem:[%s1] sm:$0xff]
      %v253 = vld [vmem:[%s1 + $0x8] sm:$0xff]
      %v254 = vld [vmem:[%s1 + $0x10] sm:$0xff]
      %v255 = vld [vmem:[%s1 + $0x18] sm:$0xff]
      %v257 = vlaneseq
      %v258 = vshrl.u32 %v257, 7
      %v259 = vsub.s32 0, %v258
      %v260 = vrot.slane %v251, %v259
      %262 = vmatprep.subr.mxu0 0.0
      %263 = vmatpush1.xpose.msra.mxu0 %v250
      %264 = vmatprep.subr.mxu0 0.0
      %265 = vmatpush1.xpose.msra.mxu0 0.0
      %266 = vmatprep.subr.mxu0 0.0
      %267 = vmatpush1.xpose.msra.mxu0 0.0
      %268 = vmatprep.subr.mxu0 0.0
      %269 = vmatpush1.xpose.msra.mxu0 0.0
      %270 = vmatprep.subr.mxu0 0.0
      %271 = vmatpush1.xpose.msra.mxu0 0.0
      %272 = vmatprep.subr.mxu0 0.0
      %273 = vmatpush1.xpose.msra.mxu0 0.0
      %274 = vmatprep.subr.mxu0 0.0
      %275 = vmatpush1.xpose.msra.mxu0 0.0
      %276 = vmatprep.subr.mxu0 0.0
      %277 = vmatpush1.xpose.msra.mxu0 0.0
      %278 = vmatprep.subr.mxu0 0.0
      %279 = vmatpush1.xpose.msra.mxu0 0.0
      %280 = vmatprep.subr.mxu0 0.0
      %281 = vmatpush1.xpose.msra.mxu0 0.0
      %282 = vmatprep.subr.mxu0 0.0
      %283 = vmatpush1.xpose.msra.mxu0 0.0
      %284 = vmatprep.subr.mxu0 0.0
      %285 = vmatpush1.xpose.msra.mxu0 0.0
      %286 = vmatprep.subr.mxu0 0.0
      %287 = vmatpush1.xpose.msra.mxu0 0.0
      %288 = vmatprep.subr.mxu0 0.0
      %289 = vmatpush1.xpose.msra.mxu0 0.0
      %290 = vmatprep.subr.mxu0 0.0
      %291 = vmatpush1.xpose.msra.mxu0 0.0
      %292 = vmatprep.subr.mxu0 0.0
      %293 = vmatpush1.xpose.msra.mxu0 0.0
      %294 = vmatprep.subr.mxu0 0.0
      %295 = vmatpush1.xpose.msra.mxu0 0.0
      %296 = vmatprep.subr.mxu0 0.0
      %297 = vmatpush1.xpose.msra.mxu0 0.0
      %298 = vmatprep.subr.mxu0 0.0
      %299 = vmatpush1.xpose.msra.mxu0 0.0
      %300 = vmatprep.subr.mxu0 0.0
      %301 = vmatpush1.xpose.msra.mxu0 0.0
      %302 = vmatprep.subr.mxu0 0.0
      %303 = vmatpush1.xpose.msra.mxu0 0.0
      %304 = vmatprep.subr.mxu0 0.0
      %305 = vmatpush1.xpose.msra.mxu0 0.0
      %306 = vmatprep.subr.mxu0 0.0
      %307 = vmatpush1.xpose.msra.mxu0 0.0
      %308 = vmatprep.subr.mxu0 0.0
      %309 = vmatpush1.xpose.msra.mxu0 0.0
      %310 = vmatprep.subr.mxu0 0.0
      %311 = vmatpush1.xpose.msra.mxu0 0.0
      %312 = vmatprep.subr.mxu0 0.0
      %313 = vmatpush1.xpose.msra.mxu0 0.0
      %314 = vmatprep.subr.mxu0 0.0
      %315 = vmatpush1.xpose.msra.mxu0 0.0
      %316 = vmatprep.subr.mxu0 0.0
      %317 = vmatpush1.xpose.msra.mxu0 0.0
      %318 = vmatprep.subr.mxu0 0.0
      %319 = vmatpush1.xpose.msra.mxu0 0.0
      %320 = vmatprep.subr.mxu0 0.0
      %321 = vmatpush1.xpose.msra.mxu0 0.0
      %322 = vmatprep.subr.mxu0 0.0
      %323 = vmatpush1.xpose.msra.mxu0 0.0
      %324 = vmatprep.subr.mxu0 0.0
      %325 = vmatpush1.xpose.msra.mxu0 0.0
      %326 = vmatprep.mubr.f32.mxu0 0.0
      %327 = vmatmul.mubr.f32.gmra.mrb[0].mxu0 %v252
      %v328 = vpop.f32.mrb[0].mxu0
      %v329 = vadd.f32 %v260, %v328
      %v330 = vpop.f32.mrb[0].mxu0
      %331 = vmatprep.mubr.f32.mxu0 0.0
      %332 = vmatmul.mubr.f32.gmra.mrb[0].mxu0 %v253
      %v333 = vpop.f32.mrb[0].mxu0
      %v334 = vadd.f32 %v260, %v333
      %v335 = vpop.f32.mrb[0].mxu0
      %336 = vmatprep.mubr.f32.mxu0 0.0
      %337 = vmatmul.mubr.f32.gmra.mrb[0].mxu0 %v254
      %v338 = vpop.f32.mrb[0].mxu0
      %v339 = vadd.f32 %v260, %v338
      %v340 = vpop.f32.mrb[0].mxu0
      %341 = vmatprep.mubr.f32.mxu0 0.0
      %342 = vmatmul.mubr.f32.gmra.mrb[0].mxu0 %v255
      %v343 = vpop.f32.mrb[0].mxu0
      %v344 = vadd.f32 %v260, %v343
      %v345 = vpop.f32.mrb[0].mxu0
      %346 = vdwg.mxu0
      %vm347 = vcmask 39936
      %v348 = vsel %vm347, %v329, -inf
      %349 = vmax.xlane.f32.xlu0 %v348
      %v350 = vpop.xlane.xlu0 %349
      %v351 = vsel %vm347, %v334, -inf
      %352 = vmax.xlane.f32.xlu0 %v351
      %v353 = vpop.xlane.xlu0 %352
      %v354 = vsel %vm347, %v339, -inf
      %355 = vmax.xlane.f32.xlu0 %v354
      %v356 = vpop.xlane.xlu0 %355
      %v357 = vsel %vm347, %v344, -inf
      %358 = vmax.xlane.f32.xlu0 %v357
      %v359 = vpop.xlane.xlu0 %358
      %v360 = vsub.f32 %v329, %v350
      %v361 = vsub.f32 %v334, %v353
      %v362 = vsub.f32 %v339, %v356
      %v363 = vsub.f32 %v344, %v359
      %v364 = vmul.f32 %v360, 1.442695
      %v365 = vpow.pop %v364
      %v366 = vmul.f32 %v361, 1.442695
      %v367 = vpow.pop %v366
      %v368 = vmul.f32 %v362, 1.442695
      %v369 = vpow.pop %v368
      %v370 = vmul.f32 %v363, 1.442695
      %v371 = vpow.pop %v370
      %v372 = vsel %vm347, %v365, 0.0
      %373 = vadd.xlane.f32.xlu0 %v372
      %v374 = vpop.xlane.xlu0 %373
      %v375 = vsel %vm347, %v367, 0.0
      %376 = vadd.xlane.f32.xlu0 %v375
      %v377 = vpop.xlane.xlu0 %376
      %v378 = vsel %vm347, %v369, 0.0
      %379 = vadd.xlane.f32.xlu0 %v378
      %v380 = vpop.xlane.xlu0 %379
      %v381 = vsel %vm347, %v371, 0.0
      %382 = vadd.xlane.f32.xlu0 %v381
      %v383 = vpop.xlane.xlu0 %382
      %v384 = vrcp.pop %v374
      %v385 = vrcp.pop %v377
      %v386 = vrcp.pop %v380
      %v387 = vrcp.pop %v383
      %v388 = vmul.f32 %v365, %v384
      %v389 = vmul.f32 %v367, %v385
      %v390 = vmul.f32 %v369, %v386
      %v391 = vmul.f32 %v371, %v387
      %v392 = vld [vmem:[%s237] sm:$0xff]
      %v393 = vld [vmem:[%s237 + $0x8] sm:$0xff]
      %v394 = vld [vmem:[%s237 + $0x10] sm:$0xff]
      %v395 = vld [vmem:[%s237 + $0x18] sm:$0xff]
      %vm396 = vcmp.eq.s32.totalorder %v392, 0
      %vm397 = vcmp.eq.s32.totalorder %v393, 0
      %vm398 = vcmp.eq.s32.totalorder %v394, 0
      %vm399 = vcmp.eq.s32.totalorder %v395, 0
      %v400 = vsel %vm396, 1, 0
      %v401 = vsel %vm397, 1, 0
      %v402 = vsel %vm398, 1, 0
      %v403 = vsel %vm399, 1, 0
      %v404 = vcvt.s32.f32 %v400
      %v405 = vcvt.s32.f32 %v401
      %v406 = vcvt.s32.f32 %v402
      %v407 = vcvt.s32.f32 %v403
      %v408 = vld [vmem:[%s2] sm:$0xff]
      %v409 = vld [vmem:[%s2 + $0x8] sm:$0xff]
      %v410 = vld [vmem:[%s2 + $0x10] sm:$0xff]
      %v411 = vld [vmem:[%s2 + $0x18] sm:$0xff]
      %v412 = vsub.f32 %v388, %v408
      %v413 = vsub.f32 %v389, %v409
      %v414 = vsub.f32 %v390, %v410
      %v415 = vsub.f32 %v391, %v411
      %v416 = vmul.f32 %v404, 0.25
      %v417 = vmul.f32 %v405, 0.25
      %v418 = vmul.f32 %v406, 0.25
      %v419 = vmul.f32 %v407, 0.25
      %421 = vset.pattern.permute.xlu0 0
      %422 = vperm.xlu0 %421, %v416
      %v423 = vpop.permute.xlu0 %422
      %426 = vset.pattern.permute.xlu0 0
      %427 = vperm.xlu0 %426, %v417
      %v428 = vpop.permute.xlu0 %427
      %431 = vset.pattern.permute.xlu0 0
      %432 = vperm.xlu0 %431, %v418
      %v433 = vpop.permute.xlu0 %432
      %436 = vset.pattern.permute.xlu0 0
      %437 = vperm.xlu0 %436, %v419
      %v438 = vpop.permute.xlu0 %437
      %v440 = vmul.f32 %v412, %v423
      %v441 = vmul.f32 %v413, %v428
      %v442 = vmul.f32 %v414, %v433
      %v443 = vmul.f32 %v415, %v438
      %v444 = vmul.f32 %v250, 0.001
      %445 = vxpose.xlu0.b32.start [1/16] %v440, 128
      %446 = vxpose.xlu0.b32.cont [2/16] %v441, 128
      %447 = vxpose.xlu0.b32.cont [3/16] %v442, 128
      %448 = vxpose.xlu0.b32.cont [4/16] %v443, 128
      %449 = vxpose.xlu0.b32.cont [5/16] 0.0, 128
      %450 = vxpose.xlu0.b32.cont [6/16] 0.0, 128
      %451 = vxpose.xlu0.b32.cont [7/16] 0.0, 128
      %452 = vxpose.xlu0.b32.cont [8/16] 0.0, 128
      %453 = vxpose.xlu0.b32.cont [9/16] 0.0, 128
      %454 = vxpose.xlu0.b32.cont [10/16] 0.0, 128
      %455 = vxpose.xlu0.b32.cont [11/16] 0.0, 128
      %456 = vxpose.xlu0.b32.cont [12/16] 0.0, 128
      %457 = vxpose.xlu0.b32.cont [13/16] 0.0, 128
      %458 = vxpose.xlu0.b32.cont [14/16] 0.0, 128
      %459 = vxpose.xlu0.b32.cont [15/16] 0.0, 128
      %460 = vxpose.xlu0.b32.end [16/16] 0.0, 128
      %v461 = vpop.trf.xlu0
      %v462 = vpop.trf.xlu0
      %v463 = vpop.trf.xlu0
      %v464 = vpop.trf.xlu0
      %v465 = vpop.trf.xlu0
      %v466 = vpop.trf.xlu0
      %v467 = vpop.trf.xlu0
      %v468 = vpop.trf.xlu0
      %v469 = vpop.trf.xlu0
      %v470 = vpop.trf.xlu0
      %v471 = vpop.trf.xlu0
      %v472 = vpop.trf.xlu0
      %v473 = vpop.trf.xlu0
      %v474 = vpop.trf.xlu0
      %v475 = vpop.trf.xlu0
      %v476 = vpop.trf.xlu0
      %vm477 = vcmask 261120
      %v479 = vsel %vm477, %v461, 0
      %481 = vmatprep.subr.mxu0 0.0
      %482 = vmatpush1.msra.mxu0 %v252
      %483 = vmatprep.subr.mxu0 0.0
      %484 = vmatpush1.msra.mxu0 %v253
      %485 = vmatprep.subr.mxu0 0.0
      %486 = vmatpush1.msra.mxu0 %v254
      %487 = vmatprep.subr.mxu0 0.0
      %488 = vmatpush1.msra.mxu0 %v255
      %489 = vmatprep.subr.mxu0 0.0
      %490 = vmatpush1.msra.mxu0 0.0
      %491 = vmatprep.subr.mxu0 0.0
      %492 = vmatpush1.msra.mxu0 0.0
      %493 = vmatprep.subr.mxu0 0.0
      %494 = vmatpush1.msra.mxu0 0.0
      %495 = vmatprep.subr.mxu0 0.0
      %496 = vmatpush1.msra.mxu0 0.0
      %497 = vmatprep.subr.mxu0 0.0
      %498 = vmatpush1.msra.mxu0 0.0
      %499 = vmatprep.subr.mxu0 0.0
      %500 = vmatpush1.msra.mxu0 0.0
      %501 = vmatprep.subr.mxu0 0.0
      %502 = vmatpush1.msra.mxu0 0.0
      %503 = vmatprep.subr.mxu0 0.0
      %504 = vmatpush1.msra.mxu0 0.0
      %505 = vmatprep.subr.mxu0 0.0
      %506 = vmatpush1.msra.mxu0 0.0
      %507 = vmatprep.subr.mxu0 0.0
      %508 = vmatpush1.msra.mxu0 0.0
      %509 = vmatprep.subr.mxu0 0.0
      %510 = vmatpush1.msra.mxu0 0.0
      %511 = vmatprep.subr.mxu0 0.0
      %512 = vmatpush1.msra.mxu0 0.0
      %513 = vmatprep.subr.mxu0 0.0
      %514 = vmatpush1.msra.mxu0 0.0
      %515 = vmatprep.subr.mxu0 0.0
      %516 = vmatpush1.msra.mxu0 0.0
      %517 = vmatprep.subr.mxu0 0.0
      %518 = vmatpush1.msra.mxu0 0.0
      %519 = vmatprep.subr.mxu0 0.0
      %520 = vmatpush1.msra.mxu0 0.0
      %521 = vmatprep.subr.mxu0 0.0
      %522 = vmatpush1.msra.mxu0 0.0
      %523 = vmatprep.subr.mxu0 0.0
      %524 = vmatpush1.msra.mxu0 0.0
      %525 = vmatprep.subr.mxu0 0.0
      %526 = vmatpush1.msra.mxu0 0.0
      %527 = vmatprep.subr.mxu0 0.0
      %528 = vmatpush1.msra.mxu0 0.0
      %529 = vmatprep.subr.mxu0 0.0
      %530 = vmatpush1.msra.mxu0 0.0
      %531 = vmatprep.subr.mxu0 0.0
      %532 = vmatpush1.msra.mxu0 0.0
      %533 = vmatprep.subr.mxu0 0.0
      %534 = vmatpush1.msra.mxu0 0.0
      %535 = vmatprep.subr.mxu0 0.0
      %536 = vmatpush1.msra.mxu0 0.0
      %537 = vmatprep.subr.mxu0 0.0
      %538 = vmatpush1.msra.mxu0 0.0
      %539 = vmatprep.subr.mxu0 0.0
      %540 = vmatpush1.msra.mxu0 0.0
      %541 = vmatprep.subr.mxu0 0.0
      %542 = vmatpush1.msra.mxu0 0.0
      %543 = vmatprep.subr.mxu0 0.0
      %544 = vmatpush1.msra.mxu0 0.0
      %545 = vmatprep.mubr.f32.mxu0 0.0
      %546 = vmatmul.mubr.f32.gmra.mrb[0].mxu0 %v479
      %v547 = vpop.f32.mrb[0].mxu0
      %v548 = vadd.f32 %v444, %v547
      %v549 = vpop.f32.mrb[0].mxu0
      %550 = vdwg.mxu0
      %v551 = vsel %vm347, %v440, 0.0
      %v552 = vsel %vm347, %v441, 0.0
      %v553 = vadd.f32 %v551, %v552
      %v554 = vsel %vm347, %v442, 0.0
      %v555 = vadd.f32 %v553, %v554
      %v556 = vsel %vm347, %v443, 0.0
      %v557 = vadd.f32 %v555, %v556
      %v558 = vrot.slane %v557, 4
      %v559 = vadd.f32 %v557, %v558
      %v560 = vrot.slane %v559, 2
      %v561 = vadd.f32 %v559, %v560
      %v562 = vrot.slane %v561, 1
      %v563 = vadd.f32 %v561, %v562
      %v564 = vmul.f32 %v251, 0.001
      %v565 = vadd.f32 %v563, %v564
      %s566 = scalar_select %p239, 1.0, 0.1
      %v567 = vld [vmem:[#allocation4] sm:$0x1f]
      %v568 = vmul.f32 %v567, 0.9
      %v569 = vstv %s566
      %v570 = vmul.f32 %v569, %v548
      %v571 = vadd.f32 %v568, %v570
      %v572 = vld [vmem:[#allocation5] sm:$0x1]
      %v573 = vmul.f32 %v572, 0.9
      %v574 = vmul.f32 %v569, %v565
      %v575 = vadd.f32 %v573, %v574
      %576 = vst [vmem:[#allocation4] sm:$0x1f] %v571
      %vm577 = vcmask 32768
      %578 = vst.msk [vmem:[#allocation5] sm:$0x1] %vm577, %v575
      %v579 = vmul.f32 %v571, 0.01
      %v580 = vsub.f32 %v250, %v579
      %581 = vst [vmem:[#allocation2] sm:$0x1f] %v580
      %v582 = vmul.f32 %v575, 0.01
      %v583 = vsub.f32 %v251, %v582
      %584 = vst.msk [vmem:[#allocation3] sm:$0x1] %vm577, %v583
      %v585 = vld [vmem:[#allocation2] sm:$0x1f]
      %v586 = vld [vmem:[#allocation3] sm:$0x1]
      %v587 = vld [vmem:[%s1] sm:$0xff]
      %v588 = vld [vmem:[%s1 + $0x8] sm:$0xff]
      %v589 = vld [vmem:[%s1 + $0x10] sm:$0xff]
      %v590 = vld [vmem:[%s1 + $0x18] sm:$0xff]
      %v592 = vlaneseq
      %v593 = vshrl.u32 %v592, 7
      %v594 = vsub.s32 0, %v593
      %v595 = vrot.slane %v586, %v594
      %597 = vmatprep.subr.mxu0 0.0
      %598 = vmatpush1.xpose.msra.mxu0 %v585
      %599 = vmatprep.subr.mxu0 0.0
      %600 = vmatpush1.xpose.msra.mxu0 0.0
      %601 = vmatprep.subr.mxu0 0.0
      %602 = vmatpush1.xpose.msra.mxu0 0.0
      %603 = vmatprep.subr.mxu0 0.0
      %604 = vmatpush1.xpose.msra.mxu0 0.0
      %605 = vmatprep.subr.mxu0 0.0
      %606 = vmatpush1.xpose.msra.mxu0 0.0
      %607 = vmatprep.subr.mxu0 0.0
      %608 = vmatpush1.xpose.msra.mxu0 0.0
      %609 = vmatprep.subr.mxu0 0.0
      %610 = vmatpush1.xpose.msra.mxu0 0.0
      %611 = vmatprep.subr.mxu0 0.0
      %612 = vmatpush1.xpose.msra.mxu0 0.0
      %613 = vmatprep.subr.mxu0 0.0
      %614 = vmatpush1.xpose.msra.mxu0 0.0
      %615 = vmatprep.subr.mxu0 0.0
      %616 = vmatpush1.xpose.msra.mxu0 0.0
      %617 = vmatprep.subr.mxu0 0.0
      %618 = vmatpush1.xpose.msra.mxu0 0.0
      %619 = vmatprep.subr.mxu0 0.0
      %620 = vmatpush1.xpose.msra.mxu0 0.0
      %621 = vmatprep.subr.mxu0 0.0
      %622 = vmatpush1.xpose.msra.mxu0 0.0
      %623 = vmatprep.subr.mxu0 0.0
      %624 = vmatpush1.xpose.msra.mxu0 0.0
      %625 = vmatprep.subr.mxu0 0.0
      %626 = vmatpush1.xpose.msra.mxu0 0.0
      %627 = vmatprep.subr.mxu0 0.0
      %628 = vmatpush1.xpose.msra.mxu0 0.0
      %629 = vmatprep.subr.mxu0 0.0
      %630 = vmatpush1.xpose.msra.mxu0 0.0
      %631 = vmatprep.subr.mxu0 0.0
      %632 = vmatpush1.xpose.msra.mxu0 0.0
      %633 = vmatprep.subr.mxu0 0.0
      %634 = vmatpush1.xpose.msra.mxu0 0.0
      %635 = vmatprep.subr.mxu0 0.0
      %636 = vmatpush1.xpose.msra.mxu0 0.0
      %637 = vmatprep.subr.mxu0 0.0
      %638 = vmatpush1.xpose.msra.mxu0 0.0
      %639 = vmatprep.subr.mxu0 0.0
      %640 = vmatpush1.xpose.msra.mxu0 0.0
      %641 = vmatprep.subr.mxu0 0.0
      %642 = vmatpush1.xpose.msra.mxu0 0.0
      %643 = vmatprep.subr.mxu0 0.0
      %644 = vmatpush1.xpose.msra.mxu0 0.0
      %645 = vmatprep.subr.mxu0 0.0
      %646 = vmatpush1.xpose.msra.mxu0 0.0
      %647 = vmatprep.subr.mxu0 0.0
      %648 = vmatpush1.xpose.msra.mxu0 0.0
      %649 = vmatprep.subr.mxu0 0.0
      %650 = vmatpush1.xpose.msra.mxu0 0.0
      %651 = vmatprep.subr.mxu0 0.0
      %652 = vmatpush1.xpose.msra.mxu0 0.0
      %653 = vmatprep.subr.mxu0 0.0
      %654 = vmatpush1.xpose.msra.mxu0 0.0
      %655 = vmatprep.subr.mxu0 0.0
      %656 = vmatpush1.xpose.msra.mxu0 0.0
      %657 = vmatprep.subr.mxu0 0.0
      %658 = vmatpush1.xpose.msra.mxu0 0.0
      %659 = vmatprep.subr.mxu0 0.0
      %660 = vmatpush1.xpose.msra.mxu0 0.0
      %661 = vmatprep.mubr.f32.mxu0 0.0
      %662 = vmatmul.mubr.f32.gmra.mrb[0].mxu0 %v587
      %v663 = vpop.f32.mrb[0].mxu0
      %v664 = vadd.f32 %v595, %v663
      %v665 = vpop.f32.mrb[0].mxu0
      %666 = vmatprep.mubr.f32.mxu0 0.0
      %667 = vmatmul.mubr.f32.gmra.mrb[0].mxu0 %v588
      %v668 = vpop.f32.mrb[0].mxu0
      %v669 = vadd.f32 %v595, %v668
      %v670 = vpop.f32.mrb[0].mxu0
      %671 = vmatprep.mubr.f32.mxu0 0.0
      %672 = vmatmul.mubr.f32.gmra.mrb[0].mxu0 %v589
      %v673 = vpop.f32.mrb[0].mxu0
      %v674 = vadd.f32 %v595, %v673
      %v675 = vpop.f32.mrb[0].mxu0
      %676 = vmatprep.mubr.f32.mxu0 0.0
      %677 = vmatmul.mubr.f32.gmra.mrb[0].mxu0 %v590
      %v678 = vpop.f32.mrb[0].mxu0
      %v679 = vadd.f32 %v595, %v678
      %v680 = vpop.f32.mrb[0].mxu0
      %681 = vdwg.mxu0
      %v682 = vsel %vm347, %v664, -inf
      %683 = vmax.xlane.f32.xlu0 %v682
      %v684 = vpop.xlane.xlu0 %683
      %v685 = vsel %vm347, %v669, -inf
      %686 = vmax.xlane.f32.xlu0 %v685
      %v687 = vpop.xlane.xlu0 %686
      %v688 = vsel %vm347, %v674, -inf
      %689 = vmax.xlane.f32.xlu0 %v688
      %v690 = vpop.xlane.xlu0 %689
      %v691 = vsel %vm347, %v679, -inf
      %692 = vmax.xlane.f32.xlu0 %v691
      %v693 = vpop.xlane.xlu0 %692
      %v694 = vsub.f32 %v664, %v684
      %v695 = vsub.f32 %v669, %v687
      %v696 = vsub.f32 %v674, %v690
      %v697 = vsub.f32 %v679, %v693
      %v698 = vmul.f32 %v694, 1.442695
      %v699 = vpow.pop %v698
      %v700 = vmul.f32 %v695, 1.442695
      %v701 = vpow.pop %v700
      %v702 = vmul.f32 %v696, 1.442695
      %v703 = vpow.pop %v702
      %v704 = vmul.f32 %v697, 1.442695
      %v705 = vpow.pop %v704
      %v706 = vsel %vm347, %v699, 0.0
      %707 = vadd.xlane.f32.xlu0 %v706
      %v708 = vpop.xlane.xlu0 %707
      %v709 = vsel %vm347, %v701, 0.0
      %710 = vadd.xlane.f32.xlu0 %v709
      %v711 = vpop.xlane.xlu0 %710
      %v712 = vsel %vm347, %v703, 0.0
      %713 = vadd.xlane.f32.xlu0 %v712
      %v714 = vpop.xlane.xlu0 %713
      %v715 = vsel %vm347, %v705, 0.0
      %716 = vadd.xlane.f32.xlu0 %v715
      %v717 = vpop.xlane.xlu0 %716
      %v718 = vrcp.pop %v708
      %v719 = vrcp.pop %v711
      %v720 = vrcp.pop %v714
      %v721 = vrcp.pop %v717
      %v722 = vmul.f32 %v699, %v718
      %v723 = vmul.f32 %v701, %v719
      %v724 = vmul.f32 %v703, %v720
      %v725 = vmul.f32 %v705, %v721
      %v726 = vld [vmem:[%s237] sm:$0xff]
      %v727 = vld [vmem:[%s237 + $0x8] sm:$0xff]
      %v728 = vld [vmem:[%s237 + $0x10] sm:$0xff]
      %v729 = vld [vmem:[%s237 + $0x18] sm:$0xff]
      %vm730 = vcmp.eq.s32.totalorder %v726, 1
      %vm731 = vcmp.eq.s32.totalorder %v727, 1
      %vm732 = vcmp.eq.s32.totalorder %v728, 1
      %vm733 = vcmp.eq.s32.totalorder %v729, 1
      %v734 = vsel %vm730, 1, 0
      %v735 = vsel %vm731, 1, 0
      %v736 = vsel %vm732, 1, 0
      %v737 = vsel %vm733, 1, 0
      %v738 = vcvt.s32.f32 %v734
      %v739 = vcvt.s32.f32 %v735
      %v740 = vcvt.s32.f32 %v736
      %v741 = vcvt.s32.f32 %v737
      %v742 = vld [vmem:[%s2] sm:$0xff]
      %v743 = vld [vmem:[%s2 + $0x8] sm:$0xff]
      %v744 = vld [vmem:[%s2 + $0x10] sm:$0xff]
      %v745 = vld [vmem:[%s2 + $0x18] sm:$0xff]
      %v746 = vsub.f32 %v722, %v742
      %v747 = vsub.f32 %v723, %v743
      %v748 = vsub.f32 %v724, %v744
      %v749 = vsub.f32 %v725, %v745
      %v750 = vmul.f32 %v738, 0.25
      %v751 = vmul.f32 %v739, 0.25
      %v752 = vmul.f32 %v740, 0.25
      %v753 = vmul.f32 %v741, 0.25
      %755 = vset.pattern.permute.xlu0 0
      %756 = vperm.xlu0 %755, %v750
      %v757 = vpop.permute.xlu0 %756
      %760 = vset.pattern.permute.xlu0 0
      %761 = vperm.xlu0 %760, %v751
      %v762 = vpop.permute.xlu0 %761
      %765 = vset.pattern.permute.xlu0 0
      %766 = vperm.xlu0 %765, %v752
      %v767 = vpop.permute.xlu0 %766
      %770 = vset.pattern.permute.xlu0 0
      %771 = vperm.xlu0 %770, %v753
      %v772 = vpop.permute.xlu0 %771
      %v774 = vmul.f32 %v746, %v757
      %v775 = vmul.f32 %v747, %v762
      %v776 = vmul.f32 %v748, %v767
      %v777 = vmul.f32 %v749, %v772
      %v778 = vmul.f32 %v585, 0.001
      %779 = vxpose.xlu0.b32.start [1/16] %v774, 128
      %780 = vxpose.xlu0.b32.cont [2/16] %v775, 128
      %781 = vxpose.xlu0.b32.cont [3/16] %v776, 128
      %782 = vxpose.xlu0.b32.cont [4/16] %v777, 128
      %783 = vxpose.xlu0.b32.cont [5/16] 0.0, 128
      %784 = vxpose.xlu0.b32.cont [6/16] 0.0, 128
      %785 = vxpose.xlu0.b32.cont [7/16] 0.0, 128
      %786 = vxpose.xlu0.b32.cont [8/16] 0.0, 128
      %787 = vxpose.xlu0.b32.cont [9/16] 0.0, 128
      %788 = vxpose.xlu0.b32.cont [10/16] 0.0, 128
      %789 = vxpose.xlu0.b32.cont [11/16] 0.0, 128
      %790 = vxpose.xlu0.b32.cont [12/16] 0.0, 128
      %791 = vxpose.xlu0.b32.cont [13/16] 0.0, 128
      %792 = vxpose.xlu0.b32.cont [14/16] 0.0, 128
      %793 = vxpose.xlu0.b32.cont [15/16] 0.0, 128
      %794 = vxpose.xlu0.b32.end [16/16] 0.0, 128
      %v795 = vpop.trf.xlu0
      %v796 = vpop.trf.xlu0
      %v797 = vpop.trf.xlu0
      %v798 = vpop.trf.xlu0
      %v799 = vpop.trf.xlu0
      %v800 = vpop.trf.xlu0
      %v801 = vpop.trf.xlu0
      %v802 = vpop.trf.xlu0
      %v803 = vpop.trf.xlu0
      %v804 = vpop.trf.xlu0
      %v805 = vpop.trf.xlu0
      %v806 = vpop.trf.xlu0
      %v807 = vpop.trf.xlu0
      %v808 = vpop.trf.xlu0
      %v809 = vpop.trf.xlu0
      %v810 = vpop.trf.xlu0
      %v812 = vsel %vm477, %v795, 0
      %814 = vmatprep.subr.mxu0 0.0
      %815 = vmatpush1.msra.mxu0 %v587
      %816 = vmatprep.subr.mxu0 0.0
      %817 = vmatpush1.msra.mxu0 %v588
      %818 = vmatprep.subr.mxu0 0.0
      %819 = vmatpush1.msra.mxu0 %v589
      %820 = vmatprep.subr.mxu0 0.0
      %821 = vmatpush1.msra.mxu0 %v590
      %822 = vmatprep.subr.mxu0 0.0
      %823 = vmatpush1.msra.mxu0 0.0
      %824 = vmatprep.subr.mxu0 0.0
      %825 = vmatpush1.msra.mxu0 0.0
      %826 = vmatprep.subr.mxu0 0.0
      %827 = vmatpush1.msra.mxu0 0.0
      %828 = vmatprep.subr.mxu0 0.0
      %829 = vmatpush1.msra.mxu0 0.0
      %830 = vmatprep.subr.mxu0 0.0
      %831 = vmatpush1.msra.mxu0 0.0
      %832 = vmatprep.subr.mxu0 0.0
      %833 = vmatpush1.msra.mxu0 0.0
      %834 = vmatprep.subr.mxu0 0.0
      %835 = vmatpush1.msra.mxu0 0.0
      %836 = vmatprep.subr.mxu0 0.0
      %837 = vmatpush1.msra.mxu0 0.0
      %838 = vmatprep.subr.mxu0 0.0
      %839 = vmatpush1.msra.mxu0 0.0
      %840 = vmatprep.subr.mxu0 0.0
      %841 = vmatpush1.msra.mxu0 0.0
      %842 = vmatprep.subr.mxu0 0.0
      %843 = vmatpush1.msra.mxu0 0.0
      %844 = vmatprep.subr.mxu0 0.0
      %845 = vmatpush1.msra.mxu0 0.0
      %846 = vmatprep.subr.mxu0 0.0
      %847 = vmatpush1.msra.mxu0 0.0
      %848 = vmatprep.subr.mxu0 0.0
      %849 = vmatpush1.msra.mxu0 0.0
      %850 = vmatprep.subr.mxu0 0.0
      %851 = vmatpush1.msra.mxu0 0.0
      %852 = vmatprep.subr.mxu0 0.0
      %853 = vmatpush1.msra.mxu0 0.0
      %854 = vmatprep.subr.mxu0 0.0
      %855 = vmatpush1.msra.mxu0 0.0
      %856 = vmatprep.subr.mxu0 0.0
      %857 = vmatpush1.msra.mxu0 0.0
      %858 = vmatprep.subr.mxu0 0.0
      %859 = vmatpush1.msra.mxu0 0.0
      %860 = vmatprep.subr.mxu0 0.0
      %861 = vmatpush1.msra.mxu0 0.0
      %862 = vmatprep.subr.mxu0 0.0
      %863 = vmatpush1.msra.mxu0 0.0
      %864 = vmatprep.subr.mxu0 0.0
      %865 = vmatpush1.msra.mxu0 0.0
      %866 = vmatprep.subr.mxu0 0.0
      %867 = vmatpush1.msra.mxu0 0.0
      %868 = vmatprep.subr.mxu0 0.0
      %869 = vmatpush1.msra.mxu0 0.0
      %870 = vmatprep.subr.mxu0 0.0
      %871 = vmatpush1.msra.mxu0 0.0
      %872 = vmatprep.subr.mxu0 0.0
      %873 = vmatpush1.msra.mxu0 0.0
      %874 = vmatprep.subr.mxu0 0.0
      %875 = vmatpush1.msra.mxu0 0.0
      %876 = vmatprep.subr.mxu0 0.0
      %877 = vmatpush1.msra.mxu0 0.0
      %878 = vmatprep.mubr.f32.mxu0 0.0
      %879 = vmatmul.mubr.f32.gmra.mrb[0].mxu0 %v812
      %v880 = vpop.f32.mrb[0].mxu0
      %v881 = vadd.f32 %v778, %v880
      %v882 = vpop.f32.mrb[0].mxu0
      %883 = vdwg.mxu0
      %v884 = vsel %vm347, %v774, 0.0
      %v885 = vsel %vm347, %v775, 0.0
      %v886 = vadd.f32 %v884, %v885
      %v887 = vsel %vm347, %v776, 0.0
      %v888 = vadd.f32 %v886, %v887
      %v889 = vsel %vm347, %v777, 0.0
      %v890 = vadd.f32 %v888, %v889
      %v891 = vrot.slane %v890, 4
      %v892 = vadd.f32 %v890, %v891
      %v893 = vrot.slane %v892, 2
      %v894 = vadd.f32 %v892, %v893
      %v895 = vrot.slane %v894, 1
      %v896 = vadd.f32 %v894, %v895
      %v897 = vmul.f32 %v586, 0.001
      %v898 = vadd.f32 %v896, %v897
      %v899 = vld [vmem:[#allocation4] sm:$0x1f]
      %v900 = vmul.f32 %v899, 0.9
      %v901 = vmul.f32 %v881, 0.1
      %v902 = vadd.f32 %v900, %v901
      %v903 = vld [vmem:[#allocation5] sm:$0x1]
      %v904 = vmul.f32 %v903, 0.9
      %v905 = vmul.f32 %v898, 0.1
      %v906 = vadd.f32 %v904, %v905
      %907 = vst [vmem:[#allocation4] sm:$0x1f] %v902
      %908 = vst.msk [vmem:[#allocation5] sm:$0x1] %vm577, %v906
      %v909 = vmul.f32 %v902, 0.01
      %v910 = vsub.f32 %v585, %v909
      %911 = vst [vmem:[#allocation2] sm:$0x1f] %v910
      %v912 = vmul.f32 %v906, 0.01
      %v913 = vsub.f32 %v586, %v912
      %914 = vst.msk [vmem:[#allocation3] sm:$0x1] %vm577, %v913
      %v915 = vld [vmem:[#allocation2] sm:$0x1f]
      %v916 = vld [vmem:[#allocation3] sm:$0x1]
      %v917 = vld [vmem:[%s1] sm:$0xff]
      %v918 = vld [vmem:[%s1 + $0x8] sm:$0xff]
      %v919 = vld [vmem:[%s1 + $0x10] sm:$0xff]
      %v920 = vld [vmem:[%s1 + $0x18] sm:$0xff]
      %v922 = vlaneseq
      %v923 = vshrl.u32 %v922, 7
      %v924 = vsub.s32 0, %v923
      %v925 = vrot.slane %v916, %v924
      %927 = vmatprep.subr.mxu0 0.0
      %928 = vmatpush1.xpose.msra.mxu0 %v915
      %929 = vmatprep.subr.mxu0 0.0
      %930 = vmatpush1.xpose.msra.mxu0 0.0
      %931 = vmatprep.subr.mxu0 0.0
      %932 = vmatpush1.xpose.msra.mxu0 0.0
      %933 = vmatprep.subr.mxu0 0.0
      %934 = vmatpush1.xpose.msra.mxu0 0.0
      %935 = vmatprep.subr.mxu0 0.0
      %936 = vmatpush1.xpose.msra.mxu0 0.0
      %937 = vmatprep.subr.mxu0 0.0
      %938 = vmatpush1.xpose.msra.mxu0 0.0
      %939 = vmatprep.subr.mxu0 0.0
      %940 = vmatpush1.xpose.msra.mxu0 0.0
      %941 = vmatprep.subr.mxu0 0.0
      %942 = vmatpush1.xpose.msra.mxu0 0.0
      %943 = vmatprep.subr.mxu0 0.0
      %944 = vmatpush1.xpose.msra.mxu0 0.0
      %945 = vmatprep.subr.mxu0 0.0
      %946 = vmatpush1.xpose.msra.mxu0 0.0
      %947 = vmatprep.subr.mxu0 0.0
      %948 = vmatpush1.xpose.msra.mxu0 0.0
      %949 = vmatprep.subr.mxu0 0.0
      %950 = vmatpush1.xpose.msra.mxu0 0.0
      %951 = vmatprep.subr.mxu0 0.0
      %952 = vmatpush1.xpose.msra.mxu0 0.0
      %953 = vmatprep.subr.mxu0 0.0
      %954 = vmatpush1.xpose.msra.mxu0 0.0
      %955 = vmatprep.subr.mxu0 0.0
      %956 = vmatpush1.xpose.msra.mxu0 0.0
      %957 = vmatprep.subr.mxu0 0.0
      %958 = vmatpush1.xpose.msra.mxu0 0.0
      %959 = vmatprep.subr.mxu0 0.0
      %960 = vmatpush1.xpose.msra.mxu0 0.0
      %961 = vmatprep.subr.mxu0 0.0
      %962 = vmatpush1.xpose.msra.mxu0 0.0
      %963 = vmatprep.subr.mxu0 0.0
      %964 = vmatpush1.xpose.msra.mxu0 0.0
      %965 = vmatprep.subr.mxu0 0.0
      %966 = vmatpush1.xpose.msra.mxu0 0.0
      %967 = vmatprep.subr.mxu0 0.0
      %968 = vmatpush1.xpose.msra.mxu0 0.0
      %969 = vmatprep.subr.mxu0 0.0
      %970 = vmatpush1.xpose.msra.mxu0 0.0
      %971 = vmatprep.subr.mxu0 0.0
      %972 = vmatpush1.xpose.msra.mxu0 0.0
      %973 = vmatprep.subr.mxu0 0.0
      %974 = vmatpush1.xpose.msra.mxu0 0.0
      %975 = vmatprep.subr.mxu0 0.0
      %976 = vmatpush1.xpose.msra.mxu0 0.0
      %977 = vmatprep.subr.mxu0 0.0
      %978 = vmatpush1.xpose.msra.mxu0 0.0
      %979 = vmatprep.subr.mxu0 0.0
      %980 = vmatpush1.xpose.msra.mxu0 0.0
      %981 = vmatprep.subr.mxu0 0.0
      %982 = vmatpush1.xpose.msra.mxu0 0.0
      %983 = vmatprep.subr.mxu0 0.0
      %984 = vmatpush1.xpose.msra.mxu0 0.0
      %985 = vmatprep.subr.mxu0 0.0
      %986 = vmatpush1.xpose.msra.mxu0 0.0
      %987 = vmatprep.subr.mxu0 0.0
      %988 = vmatpush1.xpose.msra.mxu0 0.0
      %989 = vmatprep.subr.mxu0 0.0
      %990 = vmatpush1.xpose.msra.mxu0 0.0
      %991 = vmatprep.mubr.f32.mxu0 0.0
      %992 = vmatmul.mubr.f32.gmra.mrb[0].mxu0 %v917
      %v993 = vpop.f32.mrb[0].mxu0
      %v994 = vadd.f32 %v925, %v993
      %v995 = vpop.f32.mrb[0].mxu0
      %996 = vmatprep.mubr.f32.mxu0 0.0
      %997 = vmatmul.mubr.f32.gmra.mrb[0].mxu0 %v918
      %v998 = vpop.f32.mrb[0].mxu0
      %v999 = vadd.f32 %v925, %v998
      %v1000 = vpop.f32.mrb[0].mxu0
      %1001 = vmatprep.mubr.f32.mxu0 0.0
      %1002 = vmatmul.mubr.f32.gmra.mrb[0].mxu0 %v919
      %v1003 = vpop.f32.mrb[0].mxu0
      %v1004 = vadd.f32 %v925, %v1003
      %v1005 = vpop.f32.mrb[0].mxu0
      %1006 = vmatprep.mubr.f32.mxu0 0.0
      %1007 = vmatmul.mubr.f32.gmra.mrb[0].mxu0 %v920
      %v1008 = vpop.f32.mrb[0].mxu0
      %v1009 = vadd.f32 %v925, %v1008
      %v1010 = vpop.f32.mrb[0].mxu0
      %1011 = vdwg.mxu0
      %v1012 = vsel %vm347, %v994, -inf
      %1013 = vmax.xlane.f32.xlu0 %v1012
      %v1014 = vpop.xlane.xlu0 %1013
      %v1015 = vsel %vm347, %v999, -inf
      %1016 = vmax.xlane.f32.xlu0 %v1015
      %v1017 = vpop.xlane.xlu0 %1016
      %v1018 = vsel %vm347, %v1004, -inf
      %1019 = vmax.xlane.f32.xlu0 %v1018
      %v1020 = vpop.xlane.xlu0 %1019
      %v1021 = vsel %vm347, %v1009, -inf
      %1022 = vmax.xlane.f32.xlu0 %v1021
      %v1023 = vpop.xlane.xlu0 %1022
      %v1024 = vsub.f32 %v994, %v1014
      %v1025 = vsub.f32 %v999, %v1017
      %v1026 = vsub.f32 %v1004, %v1020
      %v1027 = vsub.f32 %v1009, %v1023
      %v1028 = vmul.f32 %v1024, 1.442695
      %v1029 = vpow.pop %v1028
      %v1030 = vmul.f32 %v1025, 1.442695
      %v1031 = vpow.pop %v1030
      %v1032 = vmul.f32 %v1026, 1.442695
      %v1033 = vpow.pop %v1032
      %v1034 = vmul.f32 %v1027, 1.442695
      %v1035 = vpow.pop %v1034
      %v1036 = vsel %vm347, %v1029, 0.0
      %1037 = vadd.xlane.f32.xlu0 %v1036
      %v1038 = vpop.xlane.xlu0 %1037
      %v1039 = vsel %vm347, %v1031, 0.0
      %1040 = vadd.xlane.f32.xlu0 %v1039
      %v1041 = vpop.xlane.xlu0 %1040
      %v1042 = vsel %vm347, %v1033, 0.0
      %1043 = vadd.xlane.f32.xlu0 %v1042
      %v1044 = vpop.xlane.xlu0 %1043
      %v1045 = vsel %vm347, %v1035, 0.0
      %1046 = vadd.xlane.f32.xlu0 %v1045
      %v1047 = vpop.xlane.xlu0 %1046
      %v1048 = vrcp.pop %v1038
      %v1049 = vrcp.pop %v1041
      %v1050 = vrcp.pop %v1044
      %v1051 = vrcp.pop %v1047
      %v1052 = vmul.f32 %v1029, %v1048
      %v1053 = vmul.f32 %v1031, %v1049
      %v1054 = vmul.f32 %v1033, %v1050
      %v1055 = vmul.f32 %v1035, %v1051
      %v1056 = vld [vmem:[%s237] sm:$0xff]
      %v1057 = vld [vmem:[%s237 + $0x8] sm:$0xff]
      %v1058 = vld [vmem:[%s237 + $0x10] sm:$0xff]
      %v1059 = vld [vmem:[%s237 + $0x18] sm:$0xff]
      %vm1060 = vcmp.eq.s32.totalorder %v1056, 2
      %vm1061 = vcmp.eq.s32.totalorder %v1057, 2
      %vm1062 = vcmp.eq.s32.totalorder %v1058, 2
      %vm1063 = vcmp.eq.s32.totalorder %v1059, 2
      %v1064 = vsel %vm1060, 1, 0
      %v1065 = vsel %vm1061, 1, 0
      %v1066 = vsel %vm1062, 1, 0
      %v1067 = vsel %vm1063, 1, 0
      %v1068 = vcvt.s32.f32 %v1064
      %v1069 = vcvt.s32.f32 %v1065
      %v1070 = vcvt.s32.f32 %v1066
      %v1071 = vcvt.s32.f32 %v1067
      %v1072 = vld [vmem:[%s2] sm:$0xff]
      %v1073 = vld [vmem:[%s2 + $0x8] sm:$0xff]
      %v1074 = vld [vmem:[%s2 + $0x10] sm:$0xff]
      %v1075 = vld [vmem:[%s2 + $0x18] sm:$0xff]
      %v1076 = vsub.f32 %v1052, %v1072
      %v1077 = vsub.f32 %v1053, %v1073
      %v1078 = vsub.f32 %v1054, %v1074
      %v1079 = vsub.f32 %v1055, %v1075
      %v1080 = vmul.f32 %v1068, 0.25
      %v1081 = vmul.f32 %v1069, 0.25
      %v1082 = vmul.f32 %v1070, 0.25
      %v1083 = vmul.f32 %v1071, 0.25
      %1085 = vset.pattern.permute.xlu0 0
      %1086 = vperm.xlu0 %1085, %v1080
      %v1087 = vpop.permute.xlu0 %1086
      %1090 = vset.pattern.permute.xlu0 0
      %1091 = vperm.xlu0 %1090, %v1081
      %v1092 = vpop.permute.xlu0 %1091
      %1095 = vset.pattern.permute.xlu0 0
      %1096 = vperm.xlu0 %1095, %v1082
      %v1097 = vpop.permute.xlu0 %1096
      %1100 = vset.pattern.permute.xlu0 0
      %1101 = vperm.xlu0 %1100, %v1083
      %v1102 = vpop.permute.xlu0 %1101
      %v1104 = vmul.f32 %v1076, %v1087
      %v1105 = vmul.f32 %v1077, %v1092
      %v1106 = vmul.f32 %v1078, %v1097
      %v1107 = vmul.f32 %v1079, %v1102
      %v1108 = vmul.f32 %v915, 0.001
      %1109 = vxpose.xlu0.b32.start [1/16] %v1104, 128
      %1110 = vxpose.xlu0.b32.cont [2/16] %v1105, 128
      %1111 = vxpose.xlu0.b32.cont [3/16] %v1106, 128
      %1112 = vxpose.xlu0.b32.cont [4/16] %v1107, 128
      %1113 = vxpose.xlu0.b32.cont [5/16] 0.0, 128
      %1114 = vxpose.xlu0.b32.cont [6/16] 0.0, 128
      %1115 = vxpose.xlu0.b32.cont [7/16] 0.0, 128
      %1116 = vxpose.xlu0.b32.cont [8/16] 0.0, 128
      %1117 = vxpose.xlu0.b32.cont [9/16] 0.0, 128
      %1118 = vxpose.xlu0.b32.cont [10/16] 0.0, 128
      %1119 = vxpose.xlu0.b32.cont [11/16] 0.0, 128
      %1120 = vxpose.xlu0.b32.cont [12/16] 0.0, 128
      %1121 = vxpose.xlu0.b32.cont [13/16] 0.0, 128
      %1122 = vxpose.xlu0.b32.cont [14/16] 0.0, 128
      %1123 = vxpose.xlu0.b32.cont [15/16] 0.0, 128
      %1124 = vxpose.xlu0.b32.end [16/16] 0.0, 128
      %v1125 = vpop.trf.xlu0
      %v1126 = vpop.trf.xlu0
      %v1127 = vpop.trf.xlu0
      %v1128 = vpop.trf.xlu0
      %v1129 = vpop.trf.xlu0
      %v1130 = vpop.trf.xlu0
      %v1131 = vpop.trf.xlu0
      %v1132 = vpop.trf.xlu0
      %v1133 = vpop.trf.xlu0
      %v1134 = vpop.trf.xlu0
      %v1135 = vpop.trf.xlu0
      %v1136 = vpop.trf.xlu0
      %v1137 = vpop.trf.xlu0
      %v1138 = vpop.trf.xlu0
      %v1139 = vpop.trf.xlu0
      %v1140 = vpop.trf.xlu0
      %v1142 = vsel %vm477, %v1125, 0
      %1144 = vmatprep.subr.mxu0 0.0
      %1145 = vmatpush1.msra.mxu0 %v917
      %1146 = vmatprep.subr.mxu0 0.0
      %1147 = vmatpush1.msra.mxu0 %v918
      %1148 = vmatprep.subr.mxu0 0.0
      %1149 = vmatpush1.msra.mxu0 %v919
      %1150 = vmatprep.subr.mxu0 0.0
      %1151 = vmatpush1.msra.mxu0 %v920
      %1152 = vmatprep.subr.mxu0 0.0
      %1153 = vmatpush1.msra.mxu0 0.0
      %1154 = vmatprep.subr.mxu0 0.0
      %1155 = vmatpush1.msra.mxu0 0.0
      %1156 = vmatprep.subr.mxu0 0.0
      %1157 = vmatpush1.msra.mxu0 0.0
      %1158 = vmatprep.subr.mxu0 0.0
      %1159 = vmatpush1.msra.mxu0 0.0
      %1160 = vmatprep.subr.mxu0 0.0
      %1161 = vmatpush1.msra.mxu0 0.0
      %1162 = vmatprep.subr.mxu0 0.0
      %1163 = vmatpush1.msra.mxu0 0.0
      %1164 = vmatprep.subr.mxu0 0.0
      %1165 = vmatpush1.msra.mxu0 0.0
      %1166 = vmatprep.subr.mxu0 0.0
      %1167 = vmatpush1.msra.mxu0 0.0
      %1168 = vmatprep.subr.mxu0 0.0
      %1169 = vmatpush1.msra.mxu0 0.0
      %1170 = vmatprep.subr.mxu0 0.0
      %1171 = vmatpush1.msra.mxu0 0.0
      %1172 = vmatprep.subr.mxu0 0.0
      %1173 = vmatpush1.msra.mxu0 0.0
      %1174 = vmatprep.subr.mxu0 0.0
      %1175 = vmatpush1.msra.mxu0 0.0
      %1176 = vmatprep.subr.mxu0 0.0
      %1177 = vmatpush1.msra.mxu0 0.0
      %1178 = vmatprep.subr.mxu0 0.0
      %1179 = vmatpush1.msra.mxu0 0.0
      %1180 = vmatprep.subr.mxu0 0.0
      %1181 = vmatpush1.msra.mxu0 0.0
      %1182 = vmatprep.subr.mxu0 0.0
      %1183 = vmatpush1.msra.mxu0 0.0
      %1184 = vmatprep.subr.mxu0 0.0
      %1185 = vmatpush1.msra.mxu0 0.0
      %1186 = vmatprep.subr.mxu0 0.0
      %1187 = vmatpush1.msra.mxu0 0.0
      %1188 = vmatprep.subr.mxu0 0.0
      %1189 = vmatpush1.msra.mxu0 0.0
      %1190 = vmatprep.subr.mxu0 0.0
      %1191 = vmatpush1.msra.mxu0 0.0
      %1192 = vmatprep.subr.mxu0 0.0
      %1193 = vmatpush1.msra.mxu0 0.0
      %1194 = vmatprep.subr.mxu0 0.0
      %1195 = vmatpush1.msra.mxu0 0.0
      %1196 = vmatprep.subr.mxu0 0.0
      %1197 = vmatpush1.msra.mxu0 0.0
      %1198 = vmatprep.subr.mxu0 0.0
      %1199 = vmatpush1.msra.mxu0 0.0
      %1200 = vmatprep.subr.mxu0 0.0
      %1201 = vmatpush1.msra.mxu0 0.0
      %1202 = vmatprep.subr.mxu0 0.0
      %1203 = vmatpush1.msra.mxu0 0.0
      %1204 = vmatprep.subr.mxu0 0.0
      %1205 = vmatpush1.msra.mxu0 0.0
      %1206 = vmatprep.subr.mxu0 0.0
      %1207 = vmatpush1.msra.mxu0 0.0
      %1208 = vmatprep.mubr.f32.mxu0 0.0
      %1209 = vmatmul.mubr.f32.gmra.mrb[0].mxu0 %v1142
      %v1210 = vpop.f32.mrb[0].mxu0
      %v1211 = vadd.f32 %v1108, %v1210
      %v1212 = vpop.f32.mrb[0].mxu0
      %1213 = vdwg.mxu0
      %v1214 = vsel %vm347, %v1104, 0.0
      %v1215 = vsel %vm347, %v1105, 0.0
      %v1216 = vadd.f32 %v1214, %v1215
      %v1217 = vsel %vm347, %v1106, 0.0
      %v1218 = vadd.f32 %v1216, %v1217
      %v1219 = vsel %vm347, %v1107, 0.0
      %v1220 = vadd.f32 %v1218, %v1219
      %v1221 = vrot.slane %v1220, 4
      %v1222 = vadd.f32 %v1220, %v1221
      %v1223 = vrot.slane %v1222, 2
      %v1224 = vadd.f32 %v1222, %v1223
      %v1225 = vrot.slane %v1224, 1
      %v1226 = vadd.f32 %v1224, %v1225
      %v1227 = vmul.f32 %v916, 0.001
      %v1228 = vadd.f32 %v1226, %v1227
      %v1229 = vld [vmem:[#allocation4] sm:$0x1f]
      %v1230 = vmul.f32 %v1229, 0.9
      %v1231 = vmul.f32 %v1211, 0.1
      %v1232 = vadd.f32 %v1230, %v1231
      %v1233 = vld [vmem:[#allocation5] sm:$0x1]
      %v1234 = vmul.f32 %v1233, 0.9
      %v1235 = vmul.f32 %v1228, 0.1
      %v1236 = vadd.f32 %v1234, %v1235
      %1237 = vst [vmem:[#allocation4] sm:$0x1f] %v1232
      %1238 = vst.msk [vmem:[#allocation5] sm:$0x1] %vm577, %v1236
      %v1239 = vmul.f32 %v1232, 0.01
      %v1240 = vsub.f32 %v915, %v1239
      %1241 = vst [vmem:[#allocation2] sm:$0x1f] %v1240
      %v1242 = vmul.f32 %v1236, 0.01
      %v1243 = vsub.f32 %v916, %v1242
      %1244 = vst.msk [vmem:[#allocation3] sm:$0x1] %vm577, %v1243
      %v1245 = vld [vmem:[#allocation2] sm:$0x1f]
      %v1246 = vld [vmem:[#allocation3] sm:$0x1]
      %v1247 = vld [vmem:[%s1] sm:$0xff]
      %v1248 = vld [vmem:[%s1 + $0x8] sm:$0xff]
      %v1249 = vld [vmem:[%s1 + $0x10] sm:$0xff]
      %v1250 = vld [vmem:[%s1 + $0x18] sm:$0xff]
      %v1252 = vlaneseq
      %v1253 = vshrl.u32 %v1252, 7
      %v1254 = vsub.s32 0, %v1253
      %v1255 = vrot.slane %v1246, %v1254
      %1257 = vmatprep.subr.mxu0 0.0
      %1258 = vmatpush1.xpose.msra.mxu0 %v1245
      %1259 = vmatprep.subr.mxu0 0.0
      %1260 = vmatpush1.xpose.msra.mxu0 0.0
      %1261 = vmatprep.subr.mxu0 0.0
      %1262 = vmatpush1.xpose.msra.mxu0 0.0
      %1263 = vmatprep.subr.mxu0 0.0
      %1264 = vmatpush1.xpose.msra.mxu0 0.0
      %1265 = vmatprep.subr.mxu0 0.0
      %1266 = vmatpush1.xpose.msra.mxu0 0.0
      %1267 = vmatprep.subr.mxu0 0.0
      %1268 = vmatpush1.xpose.msra.mxu0 0.0
      %1269 = vmatprep.subr.mxu0 0.0
      %1270 = vmatpush1.xpose.msra.mxu0 0.0
      %1271 = vmatprep.subr.mxu0 0.0
      %1272 = vmatpush1.xpose.msra.mxu0 0.0
      %1273 = vmatprep.subr.mxu0 0.0
      %1274 = vmatpush1.xpose.msra.mxu0 0.0
      %1275 = vmatprep.subr.mxu0 0.0
      %1276 = vmatpush1.xpose.msra.mxu0 0.0
      %1277 = vmatprep.subr.mxu0 0.0
      %1278 = vmatpush1.xpose.msra.mxu0 0.0
      %1279 = vmatprep.subr.mxu0 0.0
      %1280 = vmatpush1.xpose.msra.mxu0 0.0
      %1281 = vmatprep.subr.mxu0 0.0
      %1282 = vmatpush1.xpose.msra.mxu0 0.0
      %1283 = vmatprep.subr.mxu0 0.0
      %1284 = vmatpush1.xpose.msra.mxu0 0.0
      %1285 = vmatprep.subr.mxu0 0.0
      %1286 = vmatpush1.xpose.msra.mxu0 0.0
      %1287 = vmatprep.subr.mxu0 0.0
      %1288 = vmatpush1.xpose.msra.mxu0 0.0
      %1289 = vmatprep.subr.mxu0 0.0
      %1290 = vmatpush1.xpose.msra.mxu0 0.0
      %1291 = vmatprep.subr.mxu0 0.0
      %1292 = vmatpush1.xpose.msra.mxu0 0.0
      %1293 = vmatprep.subr.mxu0 0.0
      %1294 = vmatpush1.xpose.msra.mxu0 0.0
      %1295 = vmatprep.subr.mxu0 0.0
      %1296 = vmatpush1.xpose.msra.mxu0 0.0
      %1297 = vmatprep.subr.mxu0 0.0
      %1298 = vmatpush1.xpose.msra.mxu0 0.0
      %1299 = vmatprep.subr.mxu0 0.0
      %1300 = vmatpush1.xpose.msra.mxu0 0.0
      %1301 = vmatprep.subr.mxu0 0.0
      %1302 = vmatpush1.xpose.msra.mxu0 0.0
      %1303 = vmatprep.subr.mxu0 0.0
      %1304 = vmatpush1.xpose.msra.mxu0 0.0
      %1305 = vmatprep.subr.mxu0 0.0
      %1306 = vmatpush1.xpose.msra.mxu0 0.0
      %1307 = vmatprep.subr.mxu0 0.0
      %1308 = vmatpush1.xpose.msra.mxu0 0.0
      %1309 = vmatprep.subr.mxu0 0.0
      %1310 = vmatpush1.xpose.msra.mxu0 0.0
      %1311 = vmatprep.subr.mxu0 0.0
      %1312 = vmatpush1.xpose.msra.mxu0 0.0
      %1313 = vmatprep.subr.mxu0 0.0
      %1314 = vmatpush1.xpose.msra.mxu0 0.0
      %1315 = vmatprep.subr.mxu0 0.0
      %1316 = vmatpush1.xpose.msra.mxu0 0.0
      %1317 = vmatprep.subr.mxu0 0.0
      %1318 = vmatpush1.xpose.msra.mxu0 0.0
      %1319 = vmatprep.subr.mxu0 0.0
      %1320 = vmatpush1.xpose.msra.mxu0 0.0
      %1321 = vmatprep.mubr.f32.mxu0 0.0
      %1322 = vmatmul.mubr.f32.gmra.mrb[0].mxu0 %v1247
      %v1323 = vpop.f32.mrb[0].mxu0
      %v1324 = vadd.f32 %v1255, %v1323
      %v1325 = vpop.f32.mrb[0].mxu0
      %1326 = vmatprep.mubr.f32.mxu0 0.0
      %1327 = vmatmul.mubr.f32.gmra.mrb[0].mxu0 %v1248
      %v1328 = vpop.f32.mrb[0].mxu0
      %v1329 = vadd.f32 %v1255, %v1328
      %v1330 = vpop.f32.mrb[0].mxu0
      %1331 = vmatprep.mubr.f32.mxu0 0.0
      %1332 = vmatmul.mubr.f32.gmra.mrb[0].mxu0 %v1249
      %v1333 = vpop.f32.mrb[0].mxu0
      %v1334 = vadd.f32 %v1255, %v1333
      %v1335 = vpop.f32.mrb[0].mxu0
      %1336 = vmatprep.mubr.f32.mxu0 0.0
      %1337 = vmatmul.mubr.f32.gmra.mrb[0].mxu0 %v1250
      %v1338 = vpop.f32.mrb[0].mxu0
      %v1339 = vadd.f32 %v1255, %v1338
      %v1340 = vpop.f32.mrb[0].mxu0
      %1341 = vdwg.mxu0
      %v1342 = vsel %vm347, %v1324, -inf
      %1343 = vmax.xlane.f32.xlu0 %v1342
      %v1344 = vpop.xlane.xlu0 %1343
      %v1345 = vsel %vm347, %v1329, -inf
      %1346 = vmax.xlane.f32.xlu0 %v1345
      %v1347 = vpop.xlane.xlu0 %1346
      %v1348 = vsel %vm347, %v1334, -inf
      %1349 = vmax.xlane.f32.xlu0 %v1348
      %v1350 = vpop.xlane.xlu0 %1349
      %v1351 = vsel %vm347, %v1339, -inf
      %1352 = vmax.xlane.f32.xlu0 %v1351
      %v1353 = vpop.xlane.xlu0 %1352
      %v1354 = vsub.f32 %v1324, %v1344
      %v1355 = vsub.f32 %v1329, %v1347
      %v1356 = vsub.f32 %v1334, %v1350
      %v1357 = vsub.f32 %v1339, %v1353
      %v1358 = vmul.f32 %v1354, 1.442695
      %v1359 = vpow.pop %v1358
      %v1360 = vmul.f32 %v1355, 1.442695
      %v1361 = vpow.pop %v1360
      %v1362 = vmul.f32 %v1356, 1.442695
      %v1363 = vpow.pop %v1362
      %v1364 = vmul.f32 %v1357, 1.442695
      %v1365 = vpow.pop %v1364
      %v1366 = vsel %vm347, %v1359, 0.0
      %1367 = vadd.xlane.f32.xlu0 %v1366
      %v1368 = vpop.xlane.xlu0 %1367
      %v1369 = vsel %vm347, %v1361, 0.0
      %1370 = vadd.xlane.f32.xlu0 %v1369
      %v1371 = vpop.xlane.xlu0 %1370
      %v1372 = vsel %vm347, %v1363, 0.0
      %1373 = vadd.xlane.f32.xlu0 %v1372
      %v1374 = vpop.xlane.xlu0 %1373
      %v1375 = vsel %vm347, %v1365, 0.0
      %1376 = vadd.xlane.f32.xlu0 %v1375
      %v1377 = vpop.xlane.xlu0 %1376
      %v1378 = vrcp.pop %v1368
      %v1379 = vrcp.pop %v1371
      %v1380 = vrcp.pop %v1374
      %v1381 = vrcp.pop %v1377
      %v1382 = vmul.f32 %v1359, %v1378
      %v1383 = vmul.f32 %v1361, %v1379
      %v1384 = vmul.f32 %v1363, %v1380
      %v1385 = vmul.f32 %v1365, %v1381
      %v1386 = vld [vmem:[%s237] sm:$0xff]
      %v1387 = vld [vmem:[%s237 + $0x8] sm:$0xff]
      %v1388 = vld [vmem:[%s237 + $0x10] sm:$0xff]
      %v1389 = vld [vmem:[%s237 + $0x18] sm:$0xff]
      %vm1390 = vcmp.eq.s32.totalorder %v1386, 3
      %vm1391 = vcmp.eq.s32.totalorder %v1387, 3
      %vm1392 = vcmp.eq.s32.totalorder %v1388, 3
      %vm1393 = vcmp.eq.s32.totalorder %v1389, 3
      %v1394 = vsel %vm1390, 1, 0
      %v1395 = vsel %vm1391, 1, 0
      %v1396 = vsel %vm1392, 1, 0
      %v1397 = vsel %vm1393, 1, 0
      %v1398 = vcvt.s32.f32 %v1394
      %v1399 = vcvt.s32.f32 %v1395
      %v1400 = vcvt.s32.f32 %v1396
      %v1401 = vcvt.s32.f32 %v1397
      %v1402 = vld [vmem:[%s2] sm:$0xff]
      %v1403 = vld [vmem:[%s2 + $0x8] sm:$0xff]
      %v1404 = vld [vmem:[%s2 + $0x10] sm:$0xff]
      %v1405 = vld [vmem:[%s2 + $0x18] sm:$0xff]
      %v1406 = vsub.f32 %v1382, %v1402
      %v1407 = vsub.f32 %v1383, %v1403
      %v1408 = vsub.f32 %v1384, %v1404
      %v1409 = vsub.f32 %v1385, %v1405
      %v1410 = vmul.f32 %v1398, 0.25
      %v1411 = vmul.f32 %v1399, 0.25
      %v1412 = vmul.f32 %v1400, 0.25
      %v1413 = vmul.f32 %v1401, 0.25
      %1415 = vset.pattern.permute.xlu0 0
      %1416 = vperm.xlu0 %1415, %v1410
      %v1417 = vpop.permute.xlu0 %1416
      %1420 = vset.pattern.permute.xlu0 0
      %1421 = vperm.xlu0 %1420, %v1411
      %v1422 = vpop.permute.xlu0 %1421
      %1425 = vset.pattern.permute.xlu0 0
      %1426 = vperm.xlu0 %1425, %v1412
      %v1427 = vpop.permute.xlu0 %1426
      %1430 = vset.pattern.permute.xlu0 0
      %1431 = vperm.xlu0 %1430, %v1413
      %v1432 = vpop.permute.xlu0 %1431
      %v1434 = vmul.f32 %v1406, %v1417
      %v1435 = vmul.f32 %v1407, %v1422
      %v1436 = vmul.f32 %v1408, %v1427
      %v1437 = vmul.f32 %v1409, %v1432
      %v1438 = vmul.f32 %v1245, 0.001
      %1439 = vxpose.xlu0.b32.start [1/16] %v1434, 128
      %1440 = vxpose.xlu0.b32.cont [2/16] %v1435, 128
      %1441 = vxpose.xlu0.b32.cont [3/16] %v1436, 128
      %1442 = vxpose.xlu0.b32.cont [4/16] %v1437, 128
      %1443 = vxpose.xlu0.b32.cont [5/16] 0.0, 128
      %1444 = vxpose.xlu0.b32.cont [6/16] 0.0, 128
      %1445 = vxpose.xlu0.b32.cont [7/16] 0.0, 128
      %1446 = vxpose.xlu0.b32.cont [8/16] 0.0, 128
      %1447 = vxpose.xlu0.b32.cont [9/16] 0.0, 128
      %1448 = vxpose.xlu0.b32.cont [10/16] 0.0, 128
      %1449 = vxpose.xlu0.b32.cont [11/16] 0.0, 128
      %1450 = vxpose.xlu0.b32.cont [12/16] 0.0, 128
      %1451 = vxpose.xlu0.b32.cont [13/16] 0.0, 128
      %1452 = vxpose.xlu0.b32.cont [14/16] 0.0, 128
      %1453 = vxpose.xlu0.b32.cont [15/16] 0.0, 128
      %1454 = vxpose.xlu0.b32.end [16/16] 0.0, 128
      %v1455 = vpop.trf.xlu0
      %v1456 = vpop.trf.xlu0
      %v1457 = vpop.trf.xlu0
      %v1458 = vpop.trf.xlu0
      %v1459 = vpop.trf.xlu0
      %v1460 = vpop.trf.xlu0
      %v1461 = vpop.trf.xlu0
      %v1462 = vpop.trf.xlu0
      %v1463 = vpop.trf.xlu0
      %v1464 = vpop.trf.xlu0
      %v1465 = vpop.trf.xlu0
      %v1466 = vpop.trf.xlu0
      %v1467 = vpop.trf.xlu0
      %v1468 = vpop.trf.xlu0
      %v1469 = vpop.trf.xlu0
      %v1470 = vpop.trf.xlu0
      %v1472 = vsel %vm477, %v1455, 0
      %1474 = vmatprep.subr.mxu0 0.0
      %1475 = vmatpush1.msra.mxu0 %v1247
      %1476 = vmatprep.subr.mxu0 0.0
      %1477 = vmatpush1.msra.mxu0 %v1248
      %1478 = vmatprep.subr.mxu0 0.0
      %1479 = vmatpush1.msra.mxu0 %v1249
      %1480 = vmatprep.subr.mxu0 0.0
      %1481 = vmatpush1.msra.mxu0 %v1250
      %1482 = vmatprep.subr.mxu0 0.0
      %1483 = vmatpush1.msra.mxu0 0.0
      %1484 = vmatprep.subr.mxu0 0.0
      %1485 = vmatpush1.msra.mxu0 0.0
      %1486 = vmatprep.subr.mxu0 0.0
      %1487 = vmatpush1.msra.mxu0 0.0
      %1488 = vmatprep.subr.mxu0 0.0
      %1489 = vmatpush1.msra.mxu0 0.0
      %1490 = vmatprep.subr.mxu0 0.0
      %1491 = vmatpush1.msra.mxu0 0.0
      %1492 = vmatprep.subr.mxu0 0.0
      %1493 = vmatpush1.msra.mxu0 0.0
      %1494 = vmatprep.subr.mxu0 0.0
      %1495 = vmatpush1.msra.mxu0 0.0
      %1496 = vmatprep.subr.mxu0 0.0
      %1497 = vmatpush1.msra.mxu0 0.0
      %1498 = vmatprep.subr.mxu0 0.0
      %1499 = vmatpush1.msra.mxu0 0.0
      %1500 = vmatprep.subr.mxu0 0.0
      %1501 = vmatpush1.msra.mxu0 0.0
      %1502 = vmatprep.subr.mxu0 0.0
      %1503 = vmatpush1.msra.mxu0 0.0
      %1504 = vmatprep.subr.mxu0 0.0
      %1505 = vmatpush1.msra.mxu0 0.0
      %1506 = vmatprep.subr.mxu0 0.0
      %1507 = vmatpush1.msra.mxu0 0.0
      %1508 = vmatprep.subr.mxu0 0.0
      %1509 = vmatpush1.msra.mxu0 0.0
      %1510 = vmatprep.subr.mxu0 0.0
      %1511 = vmatpush1.msra.mxu0 0.0
      %1512 = vmatprep.subr.mxu0 0.0
      %1513 = vmatpush1.msra.mxu0 0.0
      %1514 = vmatprep.subr.mxu0 0.0
      %1515 = vmatpush1.msra.mxu0 0.0
      %1516 = vmatprep.subr.mxu0 0.0
      %1517 = vmatpush1.msra.mxu0 0.0
      %1518 = vmatprep.subr.mxu0 0.0
      %1519 = vmatpush1.msra.mxu0 0.0
      %1520 = vmatprep.subr.mxu0 0.0
      %1521 = vmatpush1.msra.mxu0 0.0
      %1522 = vmatprep.subr.mxu0 0.0
      %1523 = vmatpush1.msra.mxu0 0.0
      %1524 = vmatprep.subr.mxu0 0.0
      %1525 = vmatpush1.msra.mxu0 0.0
      %1526 = vmatprep.subr.mxu0 0.0
      %1527 = vmatpush1.msra.mxu0 0.0
      %1528 = vmatprep.subr.mxu0 0.0
      %1529 = vmatpush1.msra.mxu0 0.0
      %1530 = vmatprep.subr.mxu0 0.0
      %1531 = vmatpush1.msra.mxu0 0.0
      %1532 = vmatprep.subr.mxu0 0.0
      %1533 = vmatpush1.msra.mxu0 0.0
      %1534 = vmatprep.subr.mxu0 0.0
      %1535 = vmatpush1.msra.mxu0 0.0
      %1536 = vmatprep.subr.mxu0 0.0
      %1537 = vmatpush1.msra.mxu0 0.0
      %1538 = vmatprep.mubr.f32.mxu0 0.0
      %1539 = vmatmul.mubr.f32.gmra.mrb[0].mxu0 %v1472
      %v1540 = vpop.f32.mrb[0].mxu0
      %v1541 = vadd.f32 %v1438, %v1540
      %v1542 = vpop.f32.mrb[0].mxu0
      %1543 = vdwg.mxu0
      %v1544 = vsel %vm347, %v1434, 0.0
      %v1545 = vsel %vm347, %v1435, 0.0
      %v1546 = vadd.f32 %v1544, %v1545
      %v1547 = vsel %vm347, %v1436, 0.0
      %v1548 = vadd.f32 %v1546, %v1547
      %v1549 = vsel %vm347, %v1437, 0.0
      %v1550 = vadd.f32 %v1548, %v1549
      %v1551 = vrot.slane %v1550, 4
      %v1552 = vadd.f32 %v1550, %v1551
      %v1553 = vrot.slane %v1552, 2
      %v1554 = vadd.f32 %v1552, %v1553
      %v1555 = vrot.slane %v1554, 1
      %v1556 = vadd.f32 %v1554, %v1555
      %v1557 = vmul.f32 %v1246, 0.001
      %v1558 = vadd.f32 %v1556, %v1557
      %v1559 = vld [vmem:[#allocation4] sm:$0x1f]
      %v1560 = vmul.f32 %v1559, 0.9
      %v1561 = vmul.f32 %v1541, 0.1
      %v1562 = vadd.f32 %v1560, %v1561
      %v1563 = vld [vmem:[#allocation5] sm:$0x1]
      %v1564 = vmul.f32 %v1563, 0.9
      %v1565 = vmul.f32 %v1558, 0.1
      %v1566 = vadd.f32 %v1564, %v1565
      %1567 = vst [vmem:[#allocation4] sm:$0x1f] %v1562
      %1568 = vst.msk [vmem:[#allocation5] sm:$0x1] %vm577, %v1566
      %v1569 = vmul.f32 %v1562, 0.01
      %v1570 = vsub.f32 %v1245, %v1569
      %1571 = vst [vmem:[#allocation2] sm:$0x1f] %v1570
      %v1572 = vmul.f32 %v1566, 0.01
      %v1573 = vsub.f32 %v1246, %v1572
      %1574 = vst.msk [vmem:[#allocation3] sm:$0x1] %vm577, %v1573
      %v1575 = vld [vmem:[#allocation2] sm:$0x1f]
      %v1576 = vld [vmem:[#allocation3] sm:$0x1]
      %v1577 = vld [vmem:[%s1] sm:$0xff]
      %v1578 = vld [vmem:[%s1 + $0x8] sm:$0xff]
      %v1579 = vld [vmem:[%s1 + $0x10] sm:$0xff]
      %v1580 = vld [vmem:[%s1 + $0x18] sm:$0xff]
      %v1582 = vlaneseq
      %v1583 = vshrl.u32 %v1582, 7
      %v1584 = vsub.s32 0, %v1583
      %v1585 = vrot.slane %v1576, %v1584
      %1587 = vmatprep.subr.mxu0 0.0
      %1588 = vmatpush1.xpose.msra.mxu0 %v1575
      %1589 = vmatprep.subr.mxu0 0.0
      %1590 = vmatpush1.xpose.msra.mxu0 0.0
      %1591 = vmatprep.subr.mxu0 0.0
      %1592 = vmatpush1.xpose.msra.mxu0 0.0
      %1593 = vmatprep.subr.mxu0 0.0
      %1594 = vmatpush1.xpose.msra.mxu0 0.0
      %1595 = vmatprep.subr.mxu0 0.0
      %1596 = vmatpush1.xpose.msra.mxu0 0.0
      %1597 = vmatprep.subr.mxu0 0.0
      %1598 = vmatpush1.xpose.msra.mxu0 0.0
      %1599 = vmatprep.subr.mxu0 0.0
      %1600 = vmatpush1.xpose.msra.mxu0 0.0
      %1601 = vmatprep.subr.mxu0 0.0
      %1602 = vmatpush1.xpose.msra.mxu0 0.0
      %1603 = vmatprep.subr.mxu0 0.0
      %1604 = vmatpush1.xpose.msra.mxu0 0.0
      %1605 = vmatprep.subr.mxu0 0.0
      %1606 = vmatpush1.xpose.msra.mxu0 0.0
      %1607 = vmatprep.subr.mxu0 0.0
      %1608 = vmatpush1.xpose.msra.mxu0 0.0
      %1609 = vmatprep.subr.mxu0 0.0
      %1610 = vmatpush1.xpose.msra.mxu0 0.0
      %1611 = vmatprep.subr.mxu0 0.0
      %1612 = vmatpush1.xpose.msra.mxu0 0.0
      %1613 = vmatprep.subr.mxu0 0.0
      %1614 = vmatpush1.xpose.msra.mxu0 0.0
      %1615 = vmatprep.subr.mxu0 0.0
      %1616 = vmatpush1.xpose.msra.mxu0 0.0
      %1617 = vmatprep.subr.mxu0 0.0
      %1618 = vmatpush1.xpose.msra.mxu0 0.0
      %1619 = vmatprep.subr.mxu0 0.0
      %1620 = vmatpush1.xpose.msra.mxu0 0.0
      %1621 = vmatprep.subr.mxu0 0.0
      %1622 = vmatpush1.xpose.msra.mxu0 0.0
      %1623 = vmatprep.subr.mxu0 0.0
      %1624 = vmatpush1.xpose.msra.mxu0 0.0
      %1625 = vmatprep.subr.mxu0 0.0
      %1626 = vmatpush1.xpose.msra.mxu0 0.0
      %1627 = vmatprep.subr.mxu0 0.0
      %1628 = vmatpush1.xpose.msra.mxu0 0.0
      %1629 = vmatprep.subr.mxu0 0.0
      %1630 = vmatpush1.xpose.msra.mxu0 0.0
      %1631 = vmatprep.subr.mxu0 0.0
      %1632 = vmatpush1.xpose.msra.mxu0 0.0
      %1633 = vmatprep.subr.mxu0 0.0
      %1634 = vmatpush1.xpose.msra.mxu0 0.0
      %1635 = vmatprep.subr.mxu0 0.0
      %1636 = vmatpush1.xpose.msra.mxu0 0.0
      %1637 = vmatprep.subr.mxu0 0.0
      %1638 = vmatpush1.xpose.msra.mxu0 0.0
      %1639 = vmatprep.subr.mxu0 0.0
      %1640 = vmatpush1.xpose.msra.mxu0 0.0
      %1641 = vmatprep.subr.mxu0 0.0
      %1642 = vmatpush1.xpose.msra.mxu0 0.0
      %1643 = vmatprep.subr.mxu0 0.0
      %1644 = vmatpush1.xpose.msra.mxu0 0.0
      %1645 = vmatprep.subr.mxu0 0.0
      %1646 = vmatpush1.xpose.msra.mxu0 0.0
      %1647 = vmatprep.subr.mxu0 0.0
      %1648 = vmatpush1.xpose.msra.mxu0 0.0
      %1649 = vmatprep.subr.mxu0 0.0
      %1650 = vmatpush1.xpose.msra.mxu0 0.0
      %1651 = vmatprep.mubr.f32.mxu0 0.0
      %1652 = vmatmul.mubr.f32.gmra.mrb[0].mxu0 %v1577
      %v1653 = vpop.f32.mrb[0].mxu0
      %v1654 = vadd.f32 %v1585, %v1653
      %v1655 = vpop.f32.mrb[0].mxu0
      %1656 = vmatprep.mubr.f32.mxu0 0.0
      %1657 = vmatmul.mubr.f32.gmra.mrb[0].mxu0 %v1578
      %v1658 = vpop.f32.mrb[0].mxu0
      %v1659 = vadd.f32 %v1585, %v1658
      %v1660 = vpop.f32.mrb[0].mxu0
      %1661 = vmatprep.mubr.f32.mxu0 0.0
      %1662 = vmatmul.mubr.f32.gmra.mrb[0].mxu0 %v1579
      %v1663 = vpop.f32.mrb[0].mxu0
      %v1664 = vadd.f32 %v1585, %v1663
      %v1665 = vpop.f32.mrb[0].mxu0
      %1666 = vmatprep.mubr.f32.mxu0 0.0
      %1667 = vmatmul.mubr.f32.gmra.mrb[0].mxu0 %v1580
      %v1668 = vpop.f32.mrb[0].mxu0
      %v1669 = vadd.f32 %v1585, %v1668
      %v1670 = vpop.f32.mrb[0].mxu0
      %1671 = vdwg.mxu0
      %v1672 = vsel %vm347, %v1654, -inf
      %1673 = vmax.xlane.f32.xlu0 %v1672
      %v1674 = vpop.xlane.xlu0 %1673
      %v1675 = vsel %vm347, %v1659, -inf
      %1676 = vmax.xlane.f32.xlu0 %v1675
      %v1677 = vpop.xlane.xlu0 %1676
      %v1678 = vsel %vm347, %v1664, -inf
      %1679 = vmax.xlane.f32.xlu0 %v1678
      %v1680 = vpop.xlane.xlu0 %1679
      %v1681 = vsel %vm347, %v1669, -inf
      %1682 = vmax.xlane.f32.xlu0 %v1681
      %v1683 = vpop.xlane.xlu0 %1682
      %v1684 = vsub.f32 %v1654, %v1674
      %v1685 = vsub.f32 %v1659, %v1677
      %v1686 = vsub.f32 %v1664, %v1680
      %v1687 = vsub.f32 %v1669, %v1683
      %v1688 = vmul.f32 %v1684, 1.442695
      %v1689 = vpow.pop %v1688
      %v1690 = vmul.f32 %v1685, 1.442695
      %v1691 = vpow.pop %v1690
      %v1692 = vmul.f32 %v1686, 1.442695
      %v1693 = vpow.pop %v1692
      %v1694 = vmul.f32 %v1687, 1.442695
      %v1695 = vpow.pop %v1694
      %v1696 = vsel %vm347, %v1689, 0.0
      %1697 = vadd.xlane.f32.xlu0 %v1696
      %v1698 = vpop.xlane.xlu0 %1697
      %v1699 = vsel %vm347, %v1691, 0.0
      %1700 = vadd.xlane.f32.xlu0 %v1699
      %v1701 = vpop.xlane.xlu0 %1700
      %v1702 = vsel %vm347, %v1693, 0.0
      %1703 = vadd.xlane.f32.xlu0 %v1702
      %v1704 = vpop.xlane.xlu0 %1703
      %v1705 = vsel %vm347, %v1695, 0.0
      %1706 = vadd.xlane.f32.xlu0 %v1705
      %v1707 = vpop.xlane.xlu0 %1706
      %v1708 = vrcp.pop %v1698
      %v1709 = vrcp.pop %v1701
      %v1710 = vrcp.pop %v1704
      %v1711 = vrcp.pop %v1707
      %v1712 = vmul.f32 %v1689, %v1708
      %v1713 = vmul.f32 %v1691, %v1709
      %v1714 = vmul.f32 %v1693, %v1710
      %v1715 = vmul.f32 %v1695, %v1711
      %v1716 = vld [vmem:[%s237] sm:$0xff]
      %v1717 = vld [vmem:[%s237 + $0x8] sm:$0xff]
      %v1718 = vld [vmem:[%s237 + $0x10] sm:$0xff]
      %v1719 = vld [vmem:[%s237 + $0x18] sm:$0xff]
      %vm1720 = vcmp.eq.s32.totalorder %v1716, 4
      %vm1721 = vcmp.eq.s32.totalorder %v1717, 4
      %vm1722 = vcmp.eq.s32.totalorder %v1718, 4
      %vm1723 = vcmp.eq.s32.totalorder %v1719, 4
      %v1724 = vsel %vm1720, 1, 0
      %v1725 = vsel %vm1721, 1, 0
      %v1726 = vsel %vm1722, 1, 0
      %v1727 = vsel %vm1723, 1, 0
      %v1728 = vcvt.s32.f32 %v1724
      %v1729 = vcvt.s32.f32 %v1725
      %v1730 = vcvt.s32.f32 %v1726
      %v1731 = vcvt.s32.f32 %v1727
      %v1732 = vld [vmem:[%s2] sm:$0xff]
      %v1733 = vld [vmem:[%s2 + $0x8] sm:$0xff]
      %v1734 = vld [vmem:[%s2 + $0x10] sm:$0xff]
      %v1735 = vld [vmem:[%s2 + $0x18] sm:$0xff]
      %v1736 = vsub.f32 %v1712, %v1732
      %v1737 = vsub.f32 %v1713, %v1733
      %v1738 = vsub.f32 %v1714, %v1734
      %v1739 = vsub.f32 %v1715, %v1735
      %v1740 = vmul.f32 %v1728, 0.25
      %v1741 = vmul.f32 %v1729, 0.25
      %v1742 = vmul.f32 %v1730, 0.25
      %v1743 = vmul.f32 %v1731, 0.25
      %1745 = vset.pattern.permute.xlu0 0
      %1746 = vperm.xlu0 %1745, %v1740
      %v1747 = vpop.permute.xlu0 %1746
      %1750 = vset.pattern.permute.xlu0 0
      %1751 = vperm.xlu0 %1750, %v1741
      %v1752 = vpop.permute.xlu0 %1751
      %1755 = vset.pattern.permute.xlu0 0
      %1756 = vperm.xlu0 %1755, %v1742
      %v1757 = vpop.permute.xlu0 %1756
      %1760 = vset.pattern.permute.xlu0 0
      %1761 = vperm.xlu0 %1760, %v1743
      %v1762 = vpop.permute.xlu0 %1761
      %v1764 = vmul.f32 %v1736, %v1747
      %v1765 = vmul.f32 %v1737, %v1752
      %v1766 = vmul.f32 %v1738, %v1757
      %v1767 = vmul.f32 %v1739, %v1762
      %v1768 = vmul.f32 %v1575, 0.001
      %1769 = vxpose.xlu0.b32.start [1/16] %v1764, 128
      %1770 = vxpose.xlu0.b32.cont [2/16] %v1765, 128
      %1771 = vxpose.xlu0.b32.cont [3/16] %v1766, 128
      %1772 = vxpose.xlu0.b32.cont [4/16] %v1767, 128
      %1773 = vxpose.xlu0.b32.cont [5/16] 0.0, 128
      %1774 = vxpose.xlu0.b32.cont [6/16] 0.0, 128
      %1775 = vxpose.xlu0.b32.cont [7/16] 0.0, 128
      %1776 = vxpose.xlu0.b32.cont [8/16] 0.0, 128
      %1777 = vxpose.xlu0.b32.cont [9/16] 0.0, 128
      %1778 = vxpose.xlu0.b32.cont [10/16] 0.0, 128
      %1779 = vxpose.xlu0.b32.cont [11/16] 0.0, 128
      %1780 = vxpose.xlu0.b32.cont [12/16] 0.0, 128
      %1781 = vxpose.xlu0.b32.cont [13/16] 0.0, 128
      %1782 = vxpose.xlu0.b32.cont [14/16] 0.0, 128
      %1783 = vxpose.xlu0.b32.cont [15/16] 0.0, 128
      %1784 = vxpose.xlu0.b32.end [16/16] 0.0, 128
      %v1785 = vpop.trf.xlu0
      %v1786 = vpop.trf.xlu0
      %v1787 = vpop.trf.xlu0
      %v1788 = vpop.trf.xlu0
      %v1789 = vpop.trf.xlu0
      %v1790 = vpop.trf.xlu0
      %v1791 = vpop.trf.xlu0
      %v1792 = vpop.trf.xlu0
      %v1793 = vpop.trf.xlu0
      %v1794 = vpop.trf.xlu0
      %v1795 = vpop.trf.xlu0
      %v1796 = vpop.trf.xlu0
      %v1797 = vpop.trf.xlu0
      %v1798 = vpop.trf.xlu0
      %v1799 = vpop.trf.xlu0
      %v1800 = vpop.trf.xlu0
      %v1802 = vsel %vm477, %v1785, 0
      %1804 = vmatprep.subr.mxu0 0.0
      %1805 = vmatpush1.msra.mxu0 %v1577
      %1806 = vmatprep.subr.mxu0 0.0
      %1807 = vmatpush1.msra.mxu0 %v1578
      %1808 = vmatprep.subr.mxu0 0.0
      %1809 = vmatpush1.msra.mxu0 %v1579
      %1810 = vmatprep.subr.mxu0 0.0
      %1811 = vmatpush1.msra.mxu0 %v1580
      %1812 = vmatprep.subr.mxu0 0.0
      %1813 = vmatpush1.msra.mxu0 0.0
      %1814 = vmatprep.subr.mxu0 0.0
      %1815 = vmatpush1.msra.mxu0 0.0
      %1816 = vmatprep.subr.mxu0 0.0
      %1817 = vmatpush1.msra.mxu0 0.0
      %1818 = vmatprep.subr.mxu0 0.0
      %1819 = vmatpush1.msra.mxu0 0.0
      %1820 = vmatprep.subr.mxu0 0.0
      %1821 = vmatpush1.msra.mxu0 0.0
      %1822 = vmatprep.subr.mxu0 0.0
      %1823 = vmatpush1.msra.mxu0 0.0
      %1824 = vmatprep.subr.mxu0 0.0
      %1825 = vmatpush1.msra.mxu0 0.0
      %1826 = vmatprep.subr.mxu0 0.0
      %1827 = vmatpush1.msra.mxu0 0.0
      %1828 = vmatprep.subr.mxu0 0.0
      %1829 = vmatpush1.msra.mxu0 0.0
      %1830 = vmatprep.subr.mxu0 0.0
      %1831 = vmatpush1.msra.mxu0 0.0
      %1832 = vmatprep.subr.mxu0 0.0
      %1833 = vmatpush1.msra.mxu0 0.0
      %1834 = vmatprep.subr.mxu0 0.0
      %1835 = vmatpush1.msra.mxu0 0.0
      %1836 = vmatprep.subr.mxu0 0.0
      %1837 = vmatpush1.msra.mxu0 0.0
      %1838 = vmatprep.subr.mxu0 0.0
      %1839 = vmatpush1.msra.mxu0 0.0
      %1840 = vmatprep.subr.mxu0 0.0
      %1841 = vmatpush1.msra.mxu0 0.0
      %1842 = vmatprep.subr.mxu0 0.0
      %1843 = vmatpush1.msra.mxu0 0.0
      %1844 = vmatprep.subr.mxu0 0.0
      %1845 = vmatpush1.msra.mxu0 0.0
      %1846 = vmatprep.subr.mxu0 0.0
      %1847 = vmatpush1.msra.mxu0 0.0
      %1848 = vmatprep.subr.mxu0 0.0
      %1849 = vmatpush1.msra.mxu0 0.0
      %1850 = vmatprep.subr.mxu0 0.0
      %1851 = vmatpush1.msra.mxu0 0.0
      %1852 = vmatprep.subr.mxu0 0.0
      %1853 = vmatpush1.msra.mxu0 0.0
      %1854 = vmatprep.subr.mxu0 0.0
      %1855 = vmatpush1.msra.mxu0 0.0
      %1856 = vmatprep.subr.mxu0 0.0
      %1857 = vmatpush1.msra.mxu0 0.0
      %1858 = vmatprep.subr.mxu0 0.0
      %1859 = vmatpush1.msra.mxu0 0.0
      %1860 = vmatprep.subr.mxu0 0.0
      %1861 = vmatpush1.msra.mxu0 0.0
      %1862 = vmatprep.subr.mxu0 0.0
      %1863 = vmatpush1.msra.mxu0 0.0
      %1864 = vmatprep.subr.mxu0 0.0
      %1865 = vmatpush1.msra.mxu0 0.0
      %1866 = vmatprep.subr.mxu0 0.0
      %1867 = vmatpush1.msra.mxu0 0.0
      %1868 = vmatprep.mubr.f32.mxu0 0.0
      %1869 = vmatmul.mubr.f32.gmra.mrb[0].mxu0 %v1802
      %v1870 = vpop.f32.mrb[0].mxu0
      %v1871 = vadd.f32 %v1768, %v1870
      %v1872 = vpop.f32.mrb[0].mxu0
      %1873 = vdwg.mxu0
      %v1874 = vsel %vm347, %v1764, 0.0
      %v1875 = vsel %vm347, %v1765, 0.0
      %v1876 = vadd.f32 %v1874, %v1875
      %v1877 = vsel %vm347, %v1766, 0.0
      %v1878 = vadd.f32 %v1876, %v1877
      %v1879 = vsel %vm347, %v1767, 0.0
      %v1880 = vadd.f32 %v1878, %v1879
      %v1881 = vrot.slane %v1880, 4
      %v1882 = vadd.f32 %v1880, %v1881
      %v1883 = vrot.slane %v1882, 2
      %v1884 = vadd.f32 %v1882, %v1883
      %v1885 = vrot.slane %v1884, 1
      %v1886 = vadd.f32 %v1884, %v1885
      %v1887 = vmul.f32 %v1576, 0.001
      %v1888 = vadd.f32 %v1886, %v1887
      %v1889 = vld [vmem:[#allocation4] sm:$0x1f]
      %v1890 = vmul.f32 %v1889, 0.9
      %v1891 = vmul.f32 %v1871, 0.1
      %v1892 = vadd.f32 %v1890, %v1891
      %v1893 = vld [vmem:[#allocation5] sm:$0x1]
      %v1894 = vmul.f32 %v1893, 0.9
      %v1895 = vmul.f32 %v1888, 0.1
      %v1896 = vadd.f32 %v1894, %v1895
      %1897 = vst [vmem:[#allocation4] sm:$0x1f] %v1892
      %1898 = vst.msk [vmem:[#allocation5] sm:$0x1] %vm577, %v1896
      %v1899 = vmul.f32 %v1892, 0.01
      %v1900 = vsub.f32 %v1575, %v1899
      %1901 = vst [vmem:[#allocation2] sm:$0x1f] %v1900
      %v1902 = vmul.f32 %v1896, 0.01
      %v1903 = vsub.f32 %v1576, %v1902
      %1904 = vst.msk [vmem:[#allocation3] sm:$0x1] %vm577, %v1903
      %v1905 = vld [vmem:[#allocation2] sm:$0x1f]
      %v1906 = vld [vmem:[#allocation3] sm:$0x1]
      %v1907 = vld [vmem:[%s1] sm:$0xff]
      %v1908 = vld [vmem:[%s1 + $0x8] sm:$0xff]
      %v1909 = vld [vmem:[%s1 + $0x10] sm:$0xff]
      %v1910 = vld [vmem:[%s1 + $0x18] sm:$0xff]
      %v1912 = vlaneseq
      %v1913 = vshrl.u32 %v1912, 7
      %v1914 = vsub.s32 0, %v1913
      %v1915 = vrot.slane %v1906, %v1914
      %1917 = vmatprep.subr.mxu0 0.0
      %1918 = vmatpush1.xpose.msra.mxu0 %v1905
      %1919 = vmatprep.subr.mxu0 0.0
      %1920 = vmatpush1.xpose.msra.mxu0 0.0
      %1921 = vmatprep.subr.mxu0 0.0
      %1922 = vmatpush1.xpose.msra.mxu0 0.0
      %1923 = vmatprep.subr.mxu0 0.0
      %1924 = vmatpush1.xpose.msra.mxu0 0.0
      %1925 = vmatprep.subr.mxu0 0.0
      %1926 = vmatpush1.xpose.msra.mxu0 0.0
      %1927 = vmatprep.subr.mxu0 0.0
      %1928 = vmatpush1.xpose.msra.mxu0 0.0
      %1929 = vmatprep.subr.mxu0 0.0
      %1930 = vmatpush1.xpose.msra.mxu0 0.0
      %1931 = vmatprep.subr.mxu0 0.0
      %1932 = vmatpush1.xpose.msra.mxu0 0.0
      %1933 = vmatprep.subr.mxu0 0.0
      %1934 = vmatpush1.xpose.msra.mxu0 0.0
      %1935 = vmatprep.subr.mxu0 0.0
      %1936 = vmatpush1.xpose.msra.mxu0 0.0
      %1937 = vmatprep.subr.mxu0 0.0
      %1938 = vmatpush1.xpose.msra.mxu0 0.0
      %1939 = vmatprep.subr.mxu0 0.0
      %1940 = vmatpush1.xpose.msra.mxu0 0.0
      %1941 = vmatprep.subr.mxu0 0.0
      %1942 = vmatpush1.xpose.msra.mxu0 0.0
      %1943 = vmatprep.subr.mxu0 0.0
      %1944 = vmatpush1.xpose.msra.mxu0 0.0
      %1945 = vmatprep.subr.mxu0 0.0
      %1946 = vmatpush1.xpose.msra.mxu0 0.0
      %1947 = vmatprep.subr.mxu0 0.0
      %1948 = vmatpush1.xpose.msra.mxu0 0.0
      %1949 = vmatprep.subr.mxu0 0.0
      %1950 = vmatpush1.xpose.msra.mxu0 0.0
      %1951 = vmatprep.subr.mxu0 0.0
      %1952 = vmatpush1.xpose.msra.mxu0 0.0
      %1953 = vmatprep.subr.mxu0 0.0
      %1954 = vmatpush1.xpose.msra.mxu0 0.0
      %1955 = vmatprep.subr.mxu0 0.0
      %1956 = vmatpush1.xpose.msra.mxu0 0.0
      %1957 = vmatprep.subr.mxu0 0.0
      %1958 = vmatpush1.xpose.msra.mxu0 0.0
      %1959 = vmatprep.subr.mxu0 0.0
      %1960 = vmatpush1.xpose.msra.mxu0 0.0
      %1961 = vmatprep.subr.mxu0 0.0
      %1962 = vmatpush1.xpose.msra.mxu0 0.0
      %1963 = vmatprep.subr.mxu0 0.0
      %1964 = vmatpush1.xpose.msra.mxu0 0.0
      %1965 = vmatprep.subr.mxu0 0.0
      %1966 = vmatpush1.xpose.msra.mxu0 0.0
      %1967 = vmatprep.subr.mxu0 0.0
      %1968 = vmatpush1.xpose.msra.mxu0 0.0
      %1969 = vmatprep.subr.mxu0 0.0
      %1970 = vmatpush1.xpose.msra.mxu0 0.0
      %1971 = vmatprep.subr.mxu0 0.0
      %1972 = vmatpush1.xpose.msra.mxu0 0.0
      %1973 = vmatprep.subr.mxu0 0.0
      %1974 = vmatpush1.xpose.msra.mxu0 0.0
      %1975 = vmatprep.subr.mxu0 0.0
      %1976 = vmatpush1.xpose.msra.mxu0 0.0
      %1977 = vmatprep.subr.mxu0 0.0
      %1978 = vmatpush1.xpose.msra.mxu0 0.0
      %1979 = vmatprep.subr.mxu0 0.0
      %1980 = vmatpush1.xpose.msra.mxu0 0.0
      %1981 = vmatprep.mubr.f32.mxu0 0.0
      %1982 = vmatmul.mubr.f32.gmra.mrb[0].mxu0 %v1907
      %v1983 = vpop.f32.mrb[0].mxu0
      %v1984 = vadd.f32 %v1915, %v1983
      %v1985 = vpop.f32.mrb[0].mxu0
      %1986 = vmatprep.mubr.f32.mxu0 0.0
      %1987 = vmatmul.mubr.f32.gmra.mrb[0].mxu0 %v1908
      %v1988 = vpop.f32.mrb[0].mxu0
      %v1989 = vadd.f32 %v1915, %v1988
      %v1990 = vpop.f32.mrb[0].mxu0
      %1991 = vmatprep.mubr.f32.mxu0 0.0
      %1992 = vmatmul.mubr.f32.gmra.mrb[0].mxu0 %v1909
      %v1993 = vpop.f32.mrb[0].mxu0
      %v1994 = vadd.f32 %v1915, %v1993
      %v1995 = vpop.f32.mrb[0].mxu0
      %1996 = vmatprep.mubr.f32.mxu0 0.0
      %1997 = vmatmul.mubr.f32.gmra.mrb[0].mxu0 %v1910
      %v1998 = vpop.f32.mrb[0].mxu0
      %v1999 = vadd.f32 %v1915, %v1998
      %v2000 = vpop.f32.mrb[0].mxu0
      %2001 = vdwg.mxu0
      %v2002 = vsel %vm347, %v1984, -inf
      %2003 = vmax.xlane.f32.xlu0 %v2002
      %v2004 = vpop.xlane.xlu0 %2003
      %v2005 = vsel %vm347, %v1989, -inf
      %2006 = vmax.xlane.f32.xlu0 %v2005
      %v2007 = vpop.xlane.xlu0 %2006
      %v2008 = vsel %vm347, %v1994, -inf
      %2009 = vmax.xlane.f32.xlu0 %v2008
      %v2010 = vpop.xlane.xlu0 %2009
      %v2011 = vsel %vm347, %v1999, -inf
      %2012 = vmax.xlane.f32.xlu0 %v2011
      %v2013 = vpop.xlane.xlu0 %2012
      %v2014 = vsub.f32 %v1984, %v2004
      %v2015 = vsub.f32 %v1989, %v2007
      %v2016 = vsub.f32 %v1994, %v2010
      %v2017 = vsub.f32 %v1999, %v2013
      %v2018 = vmul.f32 %v2014, 1.442695
      %v2019 = vpow.pop %v2018
      %v2020 = vmul.f32 %v2015, 1.442695
      %v2021 = vpow.pop %v2020
      %v2022 = vmul.f32 %v2016, 1.442695
      %v2023 = vpow.pop %v2022
      %v2024 = vmul.f32 %v2017, 1.442695
      %v2025 = vpow.pop %v2024
      %v2026 = vsel %vm347, %v2019, 0.0
      %2027 = vadd.xlane.f32.xlu0 %v2026
      %v2028 = vpop.xlane.xlu0 %2027
      %v2029 = vsel %vm347, %v2021, 0.0
      %2030 = vadd.xlane.f32.xlu0 %v2029
      %v2031 = vpop.xlane.xlu0 %2030
      %v2032 = vsel %vm347, %v2023, 0.0
      %2033 = vadd.xlane.f32.xlu0 %v2032
      %v2034 = vpop.xlane.xlu0 %2033
      %v2035 = vsel %vm347, %v2025, 0.0
      %2036 = vadd.xlane.f32.xlu0 %v2035
      %v2037 = vpop.xlane.xlu0 %2036
      %v2038 = vrcp.pop %v2028
      %v2039 = vrcp.pop %v2031
      %v2040 = vrcp.pop %v2034
      %v2041 = vrcp.pop %v2037
      %v2042 = vmul.f32 %v2019, %v2038
      %v2043 = vmul.f32 %v2021, %v2039
      %v2044 = vmul.f32 %v2023, %v2040
      %v2045 = vmul.f32 %v2025, %v2041
      %v2046 = vld [vmem:[%s237] sm:$0xff]
      %v2047 = vld [vmem:[%s237 + $0x8] sm:$0xff]
      %v2048 = vld [vmem:[%s237 + $0x10] sm:$0xff]
      %v2049 = vld [vmem:[%s237 + $0x18] sm:$0xff]
      %vm2050 = vcmp.eq.s32.totalorder %v2046, 5
      %vm2051 = vcmp.eq.s32.totalorder %v2047, 5
      %vm2052 = vcmp.eq.s32.totalorder %v2048, 5
      %vm2053 = vcmp.eq.s32.totalorder %v2049, 5
      %v2054 = vsel %vm2050, 1, 0
      %v2055 = vsel %vm2051, 1, 0
      %v2056 = vsel %vm2052, 1, 0
      %v2057 = vsel %vm2053, 1, 0
      %v2058 = vcvt.s32.f32 %v2054
      %v2059 = vcvt.s32.f32 %v2055
      %v2060 = vcvt.s32.f32 %v2056
      %v2061 = vcvt.s32.f32 %v2057
      %v2062 = vld [vmem:[%s2] sm:$0xff]
      %v2063 = vld [vmem:[%s2 + $0x8] sm:$0xff]
      %v2064 = vld [vmem:[%s2 + $0x10] sm:$0xff]
      %v2065 = vld [vmem:[%s2 + $0x18] sm:$0xff]
      %v2066 = vsub.f32 %v2042, %v2062
      %v2067 = vsub.f32 %v2043, %v2063
      %v2068 = vsub.f32 %v2044, %v2064
      %v2069 = vsub.f32 %v2045, %v2065
      %v2070 = vmul.f32 %v2058, 0.25
      %v2071 = vmul.f32 %v2059, 0.25
      %v2072 = vmul.f32 %v2060, 0.25
      %v2073 = vmul.f32 %v2061, 0.25
      %2075 = vset.pattern.permute.xlu0 0
      %2076 = vperm.xlu0 %2075, %v2070
      %v2077 = vpop.permute.xlu0 %2076
      %2080 = vset.pattern.permute.xlu0 0
      %2081 = vperm.xlu0 %2080, %v2071
      %v2082 = vpop.permute.xlu0 %2081
      %2085 = vset.pattern.permute.xlu0 0
      %2086 = vperm.xlu0 %2085, %v2072
      %v2087 = vpop.permute.xlu0 %2086
      %2090 = vset.pattern.permute.xlu0 0
      %2091 = vperm.xlu0 %2090, %v2073
      %v2092 = vpop.permute.xlu0 %2091
      %v2094 = vmul.f32 %v2066, %v2077
      %v2095 = vmul.f32 %v2067, %v2082
      %v2096 = vmul.f32 %v2068, %v2087
      %v2097 = vmul.f32 %v2069, %v2092
      %v2098 = vmul.f32 %v1905, 0.001
      %2099 = vxpose.xlu0.b32.start [1/16] %v2094, 128
      %2100 = vxpose.xlu0.b32.cont [2/16] %v2095, 128
      %2101 = vxpose.xlu0.b32.cont [3/16] %v2096, 128
      %2102 = vxpose.xlu0.b32.cont [4/16] %v2097, 128
      %2103 = vxpose.xlu0.b32.cont [5/16] 0.0, 128
      %2104 = vxpose.xlu0.b32.cont [6/16] 0.0, 128
      %2105 = vxpose.xlu0.b32.cont [7/16] 0.0, 128
      %2106 = vxpose.xlu0.b32.cont [8/16] 0.0, 128
      %2107 = vxpose.xlu0.b32.cont [9/16] 0.0, 128
      %2108 = vxpose.xlu0.b32.cont [10/16] 0.0, 128
      %2109 = vxpose.xlu0.b32.cont [11/16] 0.0, 128
      %2110 = vxpose.xlu0.b32.cont [12/16] 0.0, 128
      %2111 = vxpose.xlu0.b32.cont [13/16] 0.0, 128
      %2112 = vxpose.xlu0.b32.cont [14/16] 0.0, 128
      %2113 = vxpose.xlu0.b32.cont [15/16] 0.0, 128
      %2114 = vxpose.xlu0.b32.end [16/16] 0.0, 128
      %v2115 = vpop.trf.xlu0
      %v2116 = vpop.trf.xlu0
      %v2117 = vpop.trf.xlu0
      %v2118 = vpop.trf.xlu0
      %v2119 = vpop.trf.xlu0
      %v2120 = vpop.trf.xlu0
      %v2121 = vpop.trf.xlu0
      %v2122 = vpop.trf.xlu0
      %v2123 = vpop.trf.xlu0
      %v2124 = vpop.trf.xlu0
      %v2125 = vpop.trf.xlu0
      %v2126 = vpop.trf.xlu0
      %v2127 = vpop.trf.xlu0
      %v2128 = vpop.trf.xlu0
      %v2129 = vpop.trf.xlu0
      %v2130 = vpop.trf.xlu0
      %v2132 = vsel %vm477, %v2115, 0
      %2134 = vmatprep.subr.mxu0 0.0
      %2135 = vmatpush1.msra.mxu0 %v1907
      %2136 = vmatprep.subr.mxu0 0.0
      %2137 = vmatpush1.msra.mxu0 %v1908
      %2138 = vmatprep.subr.mxu0 0.0
      %2139 = vmatpush1.msra.mxu0 %v1909
      %2140 = vmatprep.subr.mxu0 0.0
      %2141 = vmatpush1.msra.mxu0 %v1910
      %2142 = vmatprep.subr.mxu0 0.0
      %2143 = vmatpush1.msra.mxu0 0.0
      %2144 = vmatprep.subr.mxu0 0.0
      %2145 = vmatpush1.msra.mxu0 0.0
      %2146 = vmatprep.subr.mxu0 0.0
      %2147 = vmatpush1.msra.mxu0 0.0
      %2148 = vmatprep.subr.mxu0 0.0
      %2149 = vmatpush1.msra.mxu0 0.0
      %2150 = vmatprep.subr.mxu0 0.0
      %2151 = vmatpush1.msra.mxu0 0.0
      %2152 = vmatprep.subr.mxu0 0.0
      %2153 = vmatpush1.msra.mxu0 0.0
      %2154 = vmatprep.subr.mxu0 0.0
      %2155 = vmatpush1.msra.mxu0 0.0
      %2156 = vmatprep.subr.mxu0 0.0
      %2157 = vmatpush1.msra.mxu0 0.0
      %2158 = vmatprep.subr.mxu0 0.0
      %2159 = vmatpush1.msra.mxu0 0.0
      %2160 = vmatprep.subr.mxu0 0.0
      %2161 = vmatpush1.msra.mxu0 0.0
      %2162 = vmatprep.subr.mxu0 0.0
      %2163 = vmatpush1.msra.mxu0 0.0
      %2164 = vmatprep.subr.mxu0 0.0
      %2165 = vmatpush1.msra.mxu0 0.0
      %2166 = vmatprep.subr.mxu0 0.0
      %2167 = vmatpush1.msra.mxu0 0.0
      %2168 = vmatprep.subr.mxu0 0.0
      %2169 = vmatpush1.msra.mxu0 0.0
      %2170 = vmatprep.subr.mxu0 0.0
      %2171 = vmatpush1.msra.mxu0 0.0
      %2172 = vmatprep.subr.mxu0 0.0
      %2173 = vmatpush1.msra.mxu0 0.0
      %2174 = vmatprep.subr.mxu0 0.0
      %2175 = vmatpush1.msra.mxu0 0.0
      %2176 = vmatprep.subr.mxu0 0.0
      %2177 = vmatpush1.msra.mxu0 0.0
      %2178 = vmatprep.subr.mxu0 0.0
      %2179 = vmatpush1.msra.mxu0 0.0
      %2180 = vmatprep.subr.mxu0 0.0
      %2181 = vmatpush1.msra.mxu0 0.0
      %2182 = vmatprep.subr.mxu0 0.0
      %2183 = vmatpush1.msra.mxu0 0.0
      %2184 = vmatprep.subr.mxu0 0.0
      %2185 = vmatpush1.msra.mxu0 0.0
      %2186 = vmatprep.subr.mxu0 0.0
      %2187 = vmatpush1.msra.mxu0 0.0
      %2188 = vmatprep.subr.mxu0 0.0
      %2189 = vmatpush1.msra.mxu0 0.0
      %2190 = vmatprep.subr.mxu0 0.0
      %2191 = vmatpush1.msra.mxu0 0.0
      %2192 = vmatprep.subr.mxu0 0.0
      %2193 = vmatpush1.msra.mxu0 0.0
      %2194 = vmatprep.subr.mxu0 0.0
      %2195 = vmatpush1.msra.mxu0 0.0
      %2196 = vmatprep.subr.mxu0 0.0
      %2197 = vmatpush1.msra.mxu0 0.0
      %2198 = vmatprep.mubr.f32.mxu0 0.0
      %2199 = vmatmul.mubr.f32.gmra.mrb[0].mxu0 %v2132
      %v2200 = vpop.f32.mrb[0].mxu0
      %v2201 = vadd.f32 %v2098, %v2200
      %v2202 = vpop.f32.mrb[0].mxu0
      %2203 = vdwg.mxu0
      %v2204 = vsel %vm347, %v2094, 0.0
      %v2205 = vsel %vm347, %v2095, 0.0
      %v2206 = vadd.f32 %v2204, %v2205
      %v2207 = vsel %vm347, %v2096, 0.0
      %v2208 = vadd.f32 %v2206, %v2207
      %v2209 = vsel %vm347, %v2097, 0.0
      %v2210 = vadd.f32 %v2208, %v2209
      %v2211 = vrot.slane %v2210, 4
      %v2212 = vadd.f32 %v2210, %v2211
      %v2213 = vrot.slane %v2212, 2
      %v2214 = vadd.f32 %v2212, %v2213
      %v2215 = vrot.slane %v2214, 1
      %v2216 = vadd.f32 %v2214, %v2215
      %v2217 = vmul.f32 %v1906, 0.001
      %v2218 = vadd.f32 %v2216, %v2217
      %v2219 = vld [vmem:[#allocation4] sm:$0x1f]
      %v2220 = vmul.f32 %v2219, 0.9
      %v2221 = vmul.f32 %v2201, 0.1
      %v2222 = vadd.f32 %v2220, %v2221
      %v2223 = vld [vmem:[#allocation5] sm:$0x1]
      %v2224 = vmul.f32 %v2223, 0.9
      %v2225 = vmul.f32 %v2218, 0.1
      %v2226 = vadd.f32 %v2224, %v2225
      %2227 = vst [vmem:[#allocation4] sm:$0x1f] %v2222
      %2228 = vst.msk [vmem:[#allocation5] sm:$0x1] %vm577, %v2226
      %v2229 = vmul.f32 %v2222, 0.01
      %v2230 = vsub.f32 %v1905, %v2229
      %2231 = vst [vmem:[#allocation2] sm:$0x1f] %v2230
      %v2232 = vmul.f32 %v2226, 0.01
      %v2233 = vsub.f32 %v1906, %v2232
      %2234 = vst.msk [vmem:[#allocation3] sm:$0x1] %vm577, %v2233
      %v2235 = vld [vmem:[#allocation2] sm:$0x1f]
      %v2236 = vld [vmem:[#allocation3] sm:$0x1]
      %v2237 = vld [vmem:[%s1] sm:$0xff]
      %v2238 = vld [vmem:[%s1 + $0x8] sm:$0xff]
      %v2239 = vld [vmem:[%s1 + $0x10] sm:$0xff]
      %v2240 = vld [vmem:[%s1 + $0x18] sm:$0xff]
      %v2242 = vlaneseq
      %v2243 = vshrl.u32 %v2242, 7
      %v2244 = vsub.s32 0, %v2243
      %v2245 = vrot.slane %v2236, %v2244
      %2247 = vmatprep.subr.mxu0 0.0
      %2248 = vmatpush1.xpose.msra.mxu0 %v2235
      %2249 = vmatprep.subr.mxu0 0.0
      %2250 = vmatpush1.xpose.msra.mxu0 0.0
      %2251 = vmatprep.subr.mxu0 0.0
      %2252 = vmatpush1.xpose.msra.mxu0 0.0
      %2253 = vmatprep.subr.mxu0 0.0
      %2254 = vmatpush1.xpose.msra.mxu0 0.0
      %2255 = vmatprep.subr.mxu0 0.0
      %2256 = vmatpush1.xpose.msra.mxu0 0.0
      %2257 = vmatprep.subr.mxu0 0.0
      %2258 = vmatpush1.xpose.msra.mxu0 0.0
      %2259 = vmatprep.subr.mxu0 0.0
      %2260 = vmatpush1.xpose.msra.mxu0 0.0
      %2261 = vmatprep.subr.mxu0 0.0
      %2262 = vmatpush1.xpose.msra.mxu0 0.0
      %2263 = vmatprep.subr.mxu0 0.0
      %2264 = vmatpush1.xpose.msra.mxu0 0.0
      %2265 = vmatprep.subr.mxu0 0.0
      %2266 = vmatpush1.xpose.msra.mxu0 0.0
      %2267 = vmatprep.subr.mxu0 0.0
      %2268 = vmatpush1.xpose.msra.mxu0 0.0
      %2269 = vmatprep.subr.mxu0 0.0
      %2270 = vmatpush1.xpose.msra.mxu0 0.0
      %2271 = vmatprep.subr.mxu0 0.0
      %2272 = vmatpush1.xpose.msra.mxu0 0.0
      %2273 = vmatprep.subr.mxu0 0.0
      %2274 = vmatpush1.xpose.msra.mxu0 0.0
      %2275 = vmatprep.subr.mxu0 0.0
      %2276 = vmatpush1.xpose.msra.mxu0 0.0
      %2277 = vmatprep.subr.mxu0 0.0
      %2278 = vmatpush1.xpose.msra.mxu0 0.0
      %2279 = vmatprep.subr.mxu0 0.0
      %2280 = vmatpush1.xpose.msra.mxu0 0.0
      %2281 = vmatprep.subr.mxu0 0.0
      %2282 = vmatpush1.xpose.msra.mxu0 0.0
      %2283 = vmatprep.subr.mxu0 0.0
      %2284 = vmatpush1.xpose.msra.mxu0 0.0
      %2285 = vmatprep.subr.mxu0 0.0
      %2286 = vmatpush1.xpose.msra.mxu0 0.0
      %2287 = vmatprep.subr.mxu0 0.0
      %2288 = vmatpush1.xpose.msra.mxu0 0.0
      %2289 = vmatprep.subr.mxu0 0.0
      %2290 = vmatpush1.xpose.msra.mxu0 0.0
      %2291 = vmatprep.subr.mxu0 0.0
      %2292 = vmatpush1.xpose.msra.mxu0 0.0
      %2293 = vmatprep.subr.mxu0 0.0
      %2294 = vmatpush1.xpose.msra.mxu0 0.0
      %2295 = vmatprep.subr.mxu0 0.0
      %2296 = vmatpush1.xpose.msra.mxu0 0.0
      %2297 = vmatprep.subr.mxu0 0.0
      %2298 = vmatpush1.xpose.msra.mxu0 0.0
      %2299 = vmatprep.subr.mxu0 0.0
      %2300 = vmatpush1.xpose.msra.mxu0 0.0
      %2301 = vmatprep.subr.mxu0 0.0
      %2302 = vmatpush1.xpose.msra.mxu0 0.0
      %2303 = vmatprep.subr.mxu0 0.0
      %2304 = vmatpush1.xpose.msra.mxu0 0.0
      %2305 = vmatprep.subr.mxu0 0.0
      %2306 = vmatpush1.xpose.msra.mxu0 0.0
      %2307 = vmatprep.subr.mxu0 0.0
      %2308 = vmatpush1.xpose.msra.mxu0 0.0
      %2309 = vmatprep.subr.mxu0 0.0
      %2310 = vmatpush1.xpose.msra.mxu0 0.0
      %2311 = vmatprep.mubr.f32.mxu0 0.0
      %2312 = vmatmul.mubr.f32.gmra.mrb[0].mxu0 %v2237
      %v2313 = vpop.f32.mrb[0].mxu0
      %v2314 = vadd.f32 %v2245, %v2313
      %v2315 = vpop.f32.mrb[0].mxu0
      %2316 = vmatprep.mubr.f32.mxu0 0.0
      %2317 = vmatmul.mubr.f32.gmra.mrb[0].mxu0 %v2238
      %v2318 = vpop.f32.mrb[0].mxu0
      %v2319 = vadd.f32 %v2245, %v2318
      %v2320 = vpop.f32.mrb[0].mxu0
      %2321 = vmatprep.mubr.f32.mxu0 0.0
      %2322 = vmatmul.mubr.f32.gmra.mrb[0].mxu0 %v2239
      %v2323 = vpop.f32.mrb[0].mxu0
      %v2324 = vadd.f32 %v2245, %v2323
      %v2325 = vpop.f32.mrb[0].mxu0
      %2326 = vmatprep.mubr.f32.mxu0 0.0
      %2327 = vmatmul.mubr.f32.gmra.mrb[0].mxu0 %v2240
      %v2328 = vpop.f32.mrb[0].mxu0
      %v2329 = vadd.f32 %v2245, %v2328
      %v2330 = vpop.f32.mrb[0].mxu0
      %2331 = vdwg.mxu0
      %v2332 = vsel %vm347, %v2314, -inf
      %2333 = vmax.xlane.f32.xlu0 %v2332
      %v2334 = vpop.xlane.xlu0 %2333
      %v2335 = vsel %vm347, %v2319, -inf
      %2336 = vmax.xlane.f32.xlu0 %v2335
      %v2337 = vpop.xlane.xlu0 %2336
      %v2338 = vsel %vm347, %v2324, -inf
      %2339 = vmax.xlane.f32.xlu0 %v2338
      %v2340 = vpop.xlane.xlu0 %2339
      %v2341 = vsel %vm347, %v2329, -inf
      %2342 = vmax.xlane.f32.xlu0 %v2341
      %v2343 = vpop.xlane.xlu0 %2342
      %v2344 = vsub.f32 %v2314, %v2334
      %v2345 = vsub.f32 %v2319, %v2337
      %v2346 = vsub.f32 %v2324, %v2340
      %v2347 = vsub.f32 %v2329, %v2343
      %v2348 = vmul.f32 %v2344, 1.442695
      %v2349 = vpow.pop %v2348
      %v2350 = vmul.f32 %v2345, 1.442695
      %v2351 = vpow.pop %v2350
      %v2352 = vmul.f32 %v2346, 1.442695
      %v2353 = vpow.pop %v2352
      %v2354 = vmul.f32 %v2347, 1.442695
      %v2355 = vpow.pop %v2354
      %v2356 = vsel %vm347, %v2349, 0.0
      %2357 = vadd.xlane.f32.xlu0 %v2356
      %v2358 = vpop.xlane.xlu0 %2357
      %v2359 = vsel %vm347, %v2351, 0.0
      %2360 = vadd.xlane.f32.xlu0 %v2359
      %v2361 = vpop.xlane.xlu0 %2360
      %v2362 = vsel %vm347, %v2353, 0.0
      %2363 = vadd.xlane.f32.xlu0 %v2362
      %v2364 = vpop.xlane.xlu0 %2363
      %v2365 = vsel %vm347, %v2355, 0.0
      %2366 = vadd.xlane.f32.xlu0 %v2365
      %v2367 = vpop.xlane.xlu0 %2366
      %v2368 = vrcp.pop %v2358
      %v2369 = vrcp.pop %v2361
      %v2370 = vrcp.pop %v2364
      %v2371 = vrcp.pop %v2367
      %v2372 = vmul.f32 %v2349, %v2368
      %v2373 = vmul.f32 %v2351, %v2369
      %v2374 = vmul.f32 %v2353, %v2370
      %v2375 = vmul.f32 %v2355, %v2371
      %v2376 = vld [vmem:[%s237] sm:$0xff]
      %v2377 = vld [vmem:[%s237 + $0x8] sm:$0xff]
      %v2378 = vld [vmem:[%s237 + $0x10] sm:$0xff]
      %v2379 = vld [vmem:[%s237 + $0x18] sm:$0xff]
      %vm2380 = vcmp.eq.s32.totalorder %v2376, 6
      %vm2381 = vcmp.eq.s32.totalorder %v2377, 6
      %vm2382 = vcmp.eq.s32.totalorder %v2378, 6
      %vm2383 = vcmp.eq.s32.totalorder %v2379, 6
      %v2384 = vsel %vm2380, 1, 0
      %v2385 = vsel %vm2381, 1, 0
      %v2386 = vsel %vm2382, 1, 0
      %v2387 = vsel %vm2383, 1, 0
      %v2388 = vcvt.s32.f32 %v2384
      %v2389 = vcvt.s32.f32 %v2385
      %v2390 = vcvt.s32.f32 %v2386
      %v2391 = vcvt.s32.f32 %v2387
      %v2392 = vld [vmem:[%s2] sm:$0xff]
      %v2393 = vld [vmem:[%s2 + $0x8] sm:$0xff]
      %v2394 = vld [vmem:[%s2 + $0x10] sm:$0xff]
      %v2395 = vld [vmem:[%s2 + $0x18] sm:$0xff]
      %v2396 = vsub.f32 %v2372, %v2392
      %v2397 = vsub.f32 %v2373, %v2393
      %v2398 = vsub.f32 %v2374, %v2394
      %v2399 = vsub.f32 %v2375, %v2395
      %2401 = vset.pattern.permute.xlu0 0
      %2402 = vperm.xlu0 %2401, %v2388
      %v2403 = vpop.permute.xlu0 %2402
      %2406 = vset.pattern.permute.xlu0 0
      %2407 = vperm.xlu0 %2406, %v2389
      %v2408 = vpop.permute.xlu0 %2407
      %2411 = vset.pattern.permute.xlu0 0
      %2412 = vperm.xlu0 %2411, %v2390
      %v2413 = vpop.permute.xlu0 %2412
      %2416 = vset.pattern.permute.xlu0 0
      %2417 = vperm.xlu0 %2416, %v2391
      %v2418 = vpop.permute.xlu0 %2417
      %v2420 = vmul.f32 %v2396, %v2403
      %v2421 = vmul.f32 %v2397, %v2408
      %v2422 = vmul.f32 %v2398, %v2413
      %v2423 = vmul.f32 %v2399, %v2418
      %v2424 = vmul.f32 %v2235, 0.001
      %2425 = vxpose.xlu0.b32.start [1/16] %v2420, 128
      %2426 = vxpose.xlu0.b32.cont [2/16] %v2421, 128
      %2427 = vxpose.xlu0.b32.cont [3/16] %v2422, 128
      %2428 = vxpose.xlu0.b32.cont [4/16] %v2423, 128
      %2429 = vxpose.xlu0.b32.cont [5/16] 0.0, 128
      %2430 = vxpose.xlu0.b32.cont [6/16] 0.0, 128
      %2431 = vxpose.xlu0.b32.cont [7/16] 0.0, 128
      %2432 = vxpose.xlu0.b32.cont [8/16] 0.0, 128
      %2433 = vxpose.xlu0.b32.cont [9/16] 0.0, 128
      %2434 = vxpose.xlu0.b32.cont [10/16] 0.0, 128
      %2435 = vxpose.xlu0.b32.cont [11/16] 0.0, 128
      %2436 = vxpose.xlu0.b32.cont [12/16] 0.0, 128
      %2437 = vxpose.xlu0.b32.cont [13/16] 0.0, 128
      %2438 = vxpose.xlu0.b32.cont [14/16] 0.0, 128
      %2439 = vxpose.xlu0.b32.cont [15/16] 0.0, 128
      %2440 = vxpose.xlu0.b32.end [16/16] 0.0, 128
      %v2441 = vpop.trf.xlu0
      %v2442 = vpop.trf.xlu0
      %v2443 = vpop.trf.xlu0
      %v2444 = vpop.trf.xlu0
      %v2445 = vpop.trf.xlu0
      %v2446 = vpop.trf.xlu0
      %v2447 = vpop.trf.xlu0
      %v2448 = vpop.trf.xlu0
      %v2449 = vpop.trf.xlu0
      %v2450 = vpop.trf.xlu0
      %v2451 = vpop.trf.xlu0
      %v2452 = vpop.trf.xlu0
      %v2453 = vpop.trf.xlu0
      %v2454 = vpop.trf.xlu0
      %v2455 = vpop.trf.xlu0
      %v2456 = vpop.trf.xlu0
      %v2458 = vsel %vm477, %v2441, 0
      %2460 = vmatprep.subr.mxu0 0.0
      %2461 = vmatpush1.msra.mxu0 %v2237
      %2462 = vmatprep.subr.mxu0 0.0
      %2463 = vmatpush1.msra.mxu0 %v2238
      %2464 = vmatprep.subr.mxu0 0.0
      %2465 = vmatpush1.msra.mxu0 %v2239
      %2466 = vmatprep.subr.mxu0 0.0
      %2467 = vmatpush1.msra.mxu0 %v2240
      %2468 = vmatprep.subr.mxu0 0.0
      %2469 = vmatpush1.msra.mxu0 0.0
      %2470 = vmatprep.subr.mxu0 0.0
      %2471 = vmatpush1.msra.mxu0 0.0
      %2472 = vmatprep.subr.mxu0 0.0
      %2473 = vmatpush1.msra.mxu0 0.0
      %2474 = vmatprep.subr.mxu0 0.0
      %2475 = vmatpush1.msra.mxu0 0.0
      %2476 = vmatprep.subr.mxu0 0.0
      %2477 = vmatpush1.msra.mxu0 0.0
      %2478 = vmatprep.subr.mxu0 0.0
      %2479 = vmatpush1.msra.mxu0 0.0
      %2480 = vmatprep.subr.mxu0 0.0
      %2481 = vmatpush1.msra.mxu0 0.0
      %2482 = vmatprep.subr.mxu0 0.0
      %2483 = vmatpush1.msra.mxu0 0.0
      %2484 = vmatprep.subr.mxu0 0.0
      %2485 = vmatpush1.msra.mxu0 0.0
      %2486 = vmatprep.subr.mxu0 0.0
      %2487 = vmatpush1.msra.mxu0 0.0
      %2488 = vmatprep.subr.mxu0 0.0
      %2489 = vmatpush1.msra.mxu0 0.0
      %2490 = vmatprep.subr.mxu0 0.0
      %2491 = vmatpush1.msra.mxu0 0.0
      %2492 = vmatprep.subr.mxu0 0.0
      %2493 = vmatpush1.msra.mxu0 0.0
      %2494 = vmatprep.subr.mxu0 0.0
      %2495 = vmatpush1.msra.mxu0 0.0
      %2496 = vmatprep.subr.mxu0 0.0
      %2497 = vmatpush1.msra.mxu0 0.0
      %2498 = vmatprep.subr.mxu0 0.0
      %2499 = vmatpush1.msra.mxu0 0.0
      %2500 = vmatprep.subr.mxu0 0.0
      %2501 = vmatpush1.msra.mxu0 0.0
      %2502 = vmatprep.subr.mxu0 0.0
      %2503 = vmatpush1.msra.mxu0 0.0
      %2504 = vmatprep.subr.mxu0 0.0
      %2505 = vmatpush1.msra.mxu0 0.0
      %2506 = vmatprep.subr.mxu0 0.0
      %2507 = vmatpush1.msra.mxu0 0.0
      %2508 = vmatprep.subr.mxu0 0.0
      %2509 = vmatpush1.msra.mxu0 0.0
      %2510 = vmatprep.subr.mxu0 0.0
      %2511 = vmatpush1.msra.mxu0 0.0
      %2512 = vmatprep.subr.mxu0 0.0
      %2513 = vmatpush1.msra.mxu0 0.0
      %2514 = vmatprep.subr.mxu0 0.0
      %2515 = vmatpush1.msra.mxu0 0.0
      %2516 = vmatprep.subr.mxu0 0.0
      %2517 = vmatpush1.msra.mxu0 0.0
      %2518 = vmatprep.subr.mxu0 0.0
      %2519 = vmatpush1.msra.mxu0 0.0
      %2520 = vmatprep.subr.mxu0 0.0
      %2521 = vmatpush1.msra.mxu0 0.0
      %2522 = vmatprep.subr.mxu0 0.0
      %2523 = vmatpush1.msra.mxu0 0.0
      %2524 = vmatprep.mubr.f32.mxu0 0.0
      %2525 = vmatmul.mubr.f32.gmra.mrb[0].mxu0 %v2458
      %v2526 = vpop.f32.mrb[0].mxu0
      %v2527 = vadd.f32 %v2424, %v2526
      %v2528 = vpop.f32.mrb[0].mxu0
      %2529 = vdwg.mxu0
      %v2530 = vsel %vm347, %v2420, 0.0
      %v2531 = vsel %vm347, %v2421, 0.0
      %v2532 = vadd.f32 %v2530, %v2531
      %v2533 = vsel %vm347, %v2422, 0.0
      %v2534 = vadd.f32 %v2532, %v2533
      %v2535 = vsel %vm347, %v2423, 0.0
      %v2536 = vadd.f32 %v2534, %v2535
      %v2537 = vrot.slane %v2536, 4
      %v2538 = vadd.f32 %v2536, %v2537
      %v2539 = vrot.slane %v2538, 2
      %v2540 = vadd.f32 %v2538, %v2539
      %v2541 = vrot.slane %v2540, 1
      %v2542 = vadd.f32 %v2540, %v2541
      %v2543 = vmul.f32 %v2236, 0.001
      %v2544 = vadd.f32 %v2542, %v2543
      %v2545 = vld [vmem:[#allocation4] sm:$0x1f]
      %v2546 = vmul.f32 %v2545, 0.9
      %v2547 = vmul.f32 %v2527, 0.1
      %v2548 = vadd.f32 %v2546, %v2547
      %v2549 = vld [vmem:[#allocation5] sm:$0x1]
      %v2550 = vmul.f32 %v2549, 0.9
      %v2551 = vmul.f32 %v2544, 0.1
      %v2552 = vadd.f32 %v2550, %v2551
      %2553 = vst [vmem:[#allocation4] sm:$0x1f] %v2548
      %2554 = vst.msk [vmem:[#allocation5] sm:$0x1] %vm577, %v2552
      %v2555 = vmul.f32 %v2548, 0.01
      %v2556 = vsub.f32 %v2235, %v2555
      %2557 = vst [vmem:[#allocation2] sm:$0x1f] %v2556
      %v2558 = vmul.f32 %v2552, 0.01
      %v2559 = vsub.f32 %v2236, %v2558
      %2560 = vst.msk [vmem:[#allocation3] sm:$0x1] %vm577, %v2559
      %p2561 = scmp.eq.s32.totalorder %s17, 99
      // Predicated region
      $region49: #{tpu_custom_call.1} parent=43 // pred_check
        %p2562 = pneg %p2561
      $region50: #{tpu_custom_call.1} parent=43 // pred_check_branch
        %2564 = sbr.rel (%p2562) target = $region52
      $region51: #{tpu_custom_call.1} parent=43 // pred_region
        %v2565 = vld [vmem:[%s5] sm:$0xff]
        %v2566 = vld [vmem:[%s5 + $0x8] sm:$0x7f]
        %v2567 = vld [vmem:[#allocation2] sm:$0x1f]
        %v2568 = vld [vmem:[#allocation3] sm:$0x1]
        %v2570 = vlaneseq
        %v2571 = vshrl.u32 %v2570, 7
        %v2572 = vsub.s32 0, %v2571
        %v2573 = vrot.slane %v2568, %v2572
        %2575 = vmatprep.subr.mxu0 0.0
        %2576 = vmatpush1.xpose.msra.mxu0 %v2567
        %2577 = vmatprep.subr.mxu0 0.0
        %2578 = vmatpush1.xpose.msra.mxu0 0.0
        %2579 = vmatprep.subr.mxu0 0.0
        %2580 = vmatpush1.xpose.msra.mxu0 0.0
        %2581 = vmatprep.subr.mxu0 0.0
        %2582 = vmatpush1.xpose.msra.mxu0 0.0
        %2583 = vmatprep.subr.mxu0 0.0
        %2584 = vmatpush1.xpose.msra.mxu0 0.0
        %2585 = vmatprep.subr.mxu0 0.0
        %2586 = vmatpush1.xpose.msra.mxu0 0.0
        %2587 = vmatprep.subr.mxu0 0.0
        %2588 = vmatpush1.xpose.msra.mxu0 0.0
        %2589 = vmatprep.subr.mxu0 0.0
        %2590 = vmatpush1.xpose.msra.mxu0 0.0
        %2591 = vmatprep.subr.mxu0 0.0
        %2592 = vmatpush1.xpose.msra.mxu0 0.0
        %2593 = vmatprep.subr.mxu0 0.0
        %2594 = vmatpush1.xpose.msra.mxu0 0.0
        %2595 = vmatprep.subr.mxu0 0.0
        %2596 = vmatpush1.xpose.msra.mxu0 0.0
        %2597 = vmatprep.subr.mxu0 0.0
        %2598 = vmatpush1.xpose.msra.mxu0 0.0
        %2599 = vmatprep.subr.mxu0 0.0
        %2600 = vmatpush1.xpose.msra.mxu0 0.0
        %2601 = vmatprep.subr.mxu0 0.0
        %2602 = vmatpush1.xpose.msra.mxu0 0.0
        %2603 = vmatprep.subr.mxu0 0.0
        %2604 = vmatpush1.xpose.msra.mxu0 0.0
        %2605 = vmatprep.subr.mxu0 0.0
        %2606 = vmatpush1.xpose.msra.mxu0 0.0
        %2607 = vmatprep.subr.mxu0 0.0
        %2608 = vmatpush1.xpose.msra.mxu0 0.0
        %2609 = vmatprep.subr.mxu0 0.0
        %2610 = vmatpush1.xpose.msra.mxu0 0.0
        %2611 = vmatprep.subr.mxu0 0.0
        %2612 = vmatpush1.xpose.msra.mxu0 0.0
        %2613 = vmatprep.subr.mxu0 0.0
        %2614 = vmatpush1.xpose.msra.mxu0 0.0
        %2615 = vmatprep.subr.mxu0 0.0
        %2616 = vmatpush1.xpose.msra.mxu0 0.0
        %2617 = vmatprep.subr.mxu0 0.0
        %2618 = vmatpush1.xpose.msra.mxu0 0.0
        %2619 = vmatprep.subr.mxu0 0.0
        %2620 = vmatpush1.xpose.msra.mxu0 0.0
        %2621 = vmatprep.subr.mxu0 0.0
        %2622 = vmatpush1.xpose.msra.mxu0 0.0
        %2623 = vmatprep.subr.mxu0 0.0
        %2624 = vmatpush1.xpose.msra.mxu0 0.0
        %2625 = vmatprep.subr.mxu0 0.0
        %2626 = vmatpush1.xpose.msra.mxu0 0.0
        %2627 = vmatprep.subr.mxu0 0.0
        %2628 = vmatpush1.xpose.msra.mxu0 0.0
        %2629 = vmatprep.subr.mxu0 0.0
        %2630 = vmatpush1.xpose.msra.mxu0 0.0
        %2631 = vmatprep.subr.mxu0 0.0
        %2632 = vmatpush1.xpose.msra.mxu0 0.0
        %2633 = vmatprep.subr.mxu0 0.0
        %2634 = vmatpush1.xpose.msra.mxu0 0.0
        %2635 = vmatprep.subr.mxu0 0.0
        %2636 = vmatpush1.xpose.msra.mxu0 0.0
        %2637 = vmatprep.subr.mxu0 0.0
        %2638 = vmatpush1.xpose.msra.mxu0 0.0
        %2639 = vmatprep.mubr.f32.mxu0 0.0
        %2640 = vmatmul.mubr.f32.gmra.mrb[0].mxu0 %v2565
        %v2641 = vpop.f32.mrb[0].mxu0
        %v2642 = vadd.f32 %v2573, %v2641
        %v2643 = vpop.f32.mrb[0].mxu0
        %2644 = vmatprep.mubr.f32.mxu0 0.0
        %2645 = vmatmul.mubr.f32.gmra.mrb[0].mxu0 %v2566
        %v2646 = vpop.f32.mrb[0].mxu0
        %v2647 = vadd.f32 %v2573, %v2646
        %v2648 = vpop.f32.mrb[0].mxu0
        %2649 = vdwg.mxu0
        %2650 = vst.msk [vmem:[%s6] sm:$0xff] %vm347, %v2642
        %vm2651 = vcmask 38912
        %2652 = vst.msk [vmem:[%s6 + $0x8] sm:$0x7f] %vm2651, %v2647
      $region52: #{tpu_custom_call.1} parent=43 // pred_fallthru
        _
      // Predicated region
      $region53: #{tpu_custom_call.1} parent=43 // pred_check
        %p2653 = pneg %p161
      $region54: #{tpu_custom_call.1} parent=43 // pred_check_branch
        %2655 = sbr.rel (%p2653) target = $region56
      $region55: #{tpu_custom_call.1} parent=43 // pred_region
        _
      $region56: #{tpu_custom_call.1} parent=43 // pred_fallthru
        _
      // Predicated region
      $region57: #{tpu_custom_call.1} parent=43 // pred_check
        %p2656 = pneg %p161
      $region58: #{tpu_custom_call.1} parent=43 // pred_check_branch
        %2658 = sbr.rel (%p2656) target = $region60
      $region59: #{tpu_custom_call.1} parent=43 // pred_region
        _
      $region60: #{tpu_custom_call.1} parent=43 // pred_fallthru
        _
    $region44: #{tpu_custom_call.1} parent=5 // pred_fallthru
      _
    %p2659 = scmp.le.s32.totalorder 2, %s12
    // Predicated region
    $region61: #{tpu_custom_call.1} parent=5 // pred_check
      %p2660 = pneg %p2659
    $region62: #{tpu_custom_call.1} parent=5 // pred_check_branch
      %2662 = sbr.rel (%p2660) target = $region64
    $region63: #{tpu_custom_call.1} parent=5 // pred_region
      %s2663 = ssub.s32 %s12, 2
    $region64: #{tpu_custom_call.1} parent=5 // pred_fallthru
      _
  $region6: #{tpu_custom_call.1} parent=0 // loop_footer
    %s16 = sadd.s32 1, %s12
  $region7: #{tpu_custom_call.1} parent=0 // loop_footer_branch
    %11 = sbr.rel target = $region3
  $region8: #{tpu_custom_call.1} parent=0 // loop_exit
    _

</llo_original>
